<compile_context>
chip_gen: v7x
topology: tpu7x:2x2x1
jax: 0.10.0
libtpu: 0.0.40
codegen_flags: <defaults>
</compile_context>

<pallas_src>
import functools

import numpy as np
import jax
import jax.numpy as jnp
from jax import lax
from jax.experimental import pallas as pl
from jax.experimental.pallas import tpu as pltpu

EPS = 1e-5  # PyTorch BatchNorm default eps

# 3x3 taps as (dy, dx), row-major over (ky, kx), padding=1 ("same" conv).
_TAP_OFFSETS = tuple((ky - 1, kx - 1) for ky in range(3) for kx in range(3))

# Column indices inside the packed per-channel vector table.
_V_GATE_G, _V_GATE_B = 0, 1
_V_BLK_G1, _V_BLK_B1 = 2, 3
_V_BLK_G2, _V_BLK_B2 = 4, 5
_V_HEAD_G, _V_HEAD_B = 6, 7          # concat(state, vconv) gamma / beta
_V_FF1_B, _V_BN1D_G, _V_BN1D_B, _V_FF2_B = 8, 9, 10, 11
_NUM_VECS = 12


# ---------------------------------------------------------------------------
# Fused forward kernel
# ---------------------------------------------------------------------------
def fused_resnet_g_kernel(x_ref, masks_ref, wmat_ref, vecs_ref, ff1w_ref,
                          out_ref, *, n, cin, f, cs, heads, h, w, eps):
  hw = h * w
  m = n * hw
  inv_m = 1.0 / m
  inv_n = 1.0 / n

  # Static row offsets inside the consolidated weight matrix.
  r_gate, r_blk1, r_blk2 = 0, f, 2 * f
  r_head, r_ff2 = 3 * f, 3 * f + cs + f

  masks = masks_ref[...]                       # (n + 9, m)
  smasks = masks[0:n, :]                       # (n, m) per-sample lane masks

  def vcol(j, rows):                           # packed vector j -> (rows, 1)
    return vecs_ref[0:rows, j:j + 1]

  def bn_lanes(acc, gamma, beta, inv_count):
    # Training-mode BatchNorm over the lane axis (N*H*W for BN2d, N for BN1d),
    # two-pass (centered) variance for better f32 numerics.
    mu = jnp.sum(acc, axis=1, keepdims=True) * inv_count
    xc = acc - mu
    var = jnp.sum(xc * xc, axis=1, keepdims=True) * inv_count
    return xc * (gamma * lax.rsqrt(var + eps)) + beta

  def conv3x3_bn_relu(act, w_row, k_in, gcol, bcol, residual=None):
    # act: (k_in, m).  9 tap-wise matmuls accumulated in vregs (no scratch).
    acc = None
    for t, (dy, dx) in enumerate(_TAP_OFFSETS):
      d = dy * w + dx                          # lane offset of the tapped pixel
      shifted = act if d == 0 else pltpu.roll(act, shift=(-d) % m, axis=1)
      patch = shifted * masks[n + t:n + t + 1, :]        # zero wrapped lanes
      wt = wmat_ref[w_row:w_row + f, t * k_in:(t + 1) * k_in]   # (f, k_in)
      part = jnp.dot(wt, patch, preferred_element_type=jnp.float32)
      acc = part if acc is None else acc + part
    y = bn_lanes(acc, vcol(gcol, f), vcol(bcol, f), inv_m)
    if residual is not None:
      y = y + residual
    return jnp.maximum(y, 0.0)

  x = x_ref[...]                               # (cin, m), lane-dense

  # --- Encoder: gate conv + one ResNetBasicBlock (identity shortcut) ---
  g = conv3x3_bn_relu(x, r_gate, cin, _V_GATE_G, _V_GATE_B)
  h1 = conv3x3_bn_relu(g, r_blk1, f, _V_BLK_G1, _V_BLK_B1)
  enc = conv3x3_bn_relu(h1, r_blk2, f, _V_BLK_G2, _V_BLK_B2, residual=g)  # (f, m)

  # --- State + value 1x1 convs fused into a single MXU matmul ---
  head_w = wmat_ref[r_head:r_head + cs + f, 0:f]                 # (cs+f, f)
  head = jnp.dot(head_w, enc, preferred_element_type=jnp.float32)
  head = jnp.maximum(
      bn_lanes(head, vcol(_V_HEAD_G, cs + f), vcol(_V_HEAD_B, cs + f), inv_m),
      0.0)
  s = head[0:cs, :]                            # StateHead conv output (cs, m)
  v = head[cs:cs + f, :]                       # valueHead conv output (f, m)

  # --- StateHead per-sample min/max normalization (channel reduce hoisted) ---
  row_min = jnp.min(s, axis=0, keepdims=True)                    # (1, m)
  row_max = jnp.max(s, axis=0, keepdims=True)
  mn_full = jnp.zeros((1, m), jnp.float32)
  inv_full = jnp.zeros((1, m), jnp.float32)
  for b in range(n):
    sm = smasks[b:b + 1, :]                                      # (1, m)
    mn_b = jnp.min(jnp.where(sm > 0.5, row_min, jnp.inf), axis=1, keepdims=True)
    mx_b = jnp.max(jnp.where(sm > 0.5, row_max, -jnp.inf), axis=1, keepdims=True)
    rng = mx_b - mn_b
    rng = jnp.where(rng > 0.0, rng, 1.0)       # guard constant per-sample state
    mn_full = mn_full + mn_b * sm
    inv_full = inv_full + (1.0 / rng) * sm     # exact divide (no approx recip)
  out_ref[0:cs, :] = (s - mn_full) * inv_full  # lane-dense state store

  # --- valueHead: Linear(F*HW -> F) + ReLU + BN1d, Linear(F -> heads), lsm ---
  acc_v = ff1w_ref[0] * v[0:1, :]              # lane-replicated ff1 weights
  for ff in range(1, f):
    acc_v = acc_v + ff1w_ref[ff] * v[ff:ff + 1, :]               # (f, m)
  # Per-sample spatial sum as one MXU matmul against the sample-mask matrix.
  ht = lax.dot_general(acc_v, smasks, (((1,), (1,)), ((), ())),
                       preferred_element_type=jnp.float32)       # (f, n)
  ht = jnp.maximum(ht + vcol(_V_FF1_B, f), 0.0)
  hbn = bn_lanes(ht, vcol(_V_BN1D_G, f), vcol(_V_BN1D_B, f), inv_n)
  ff2_w = wmat_ref[r_ff2:r_ff2 + heads, 0:f]                     # (heads, f)
  logits = jnp.dot(ff2_w, hbn, preferred_element_type=jnp.float32) \
      + vcol(_V_FF2_B, heads)                                    # (heads, n)
  z = logits - jnp.max(logits, axis=0, keepdims=True)            # log_softmax
  out_ref[cs:cs + heads, 0:n] = z - jnp.log(
      jnp.sum(jnp.exp(z), axis=0, keepdims=True))


# ---------------------------------------------------------------------------
# Host-side parameter packing (done once, outside the forward hot path)
# ---------------------------------------------------------------------------
def pack_params(raw, n, h, w):
  hw = h * w
  m = n * hw
  cin = raw["gate_w"].shape[2]
  f = raw["gate_w"].shape[3]
  cs = raw["state_w"].shape[1]
  heads = raw["ff2_w"].shape[1]
  kw = 9 * f                                    # lane width of weight matrix

  def conv3x3_mat(w_hwio):
    # (3,3,kin,cout) -> (cout, 9*kin), tap = ky*3+kx (matches _TAP_OFFSETS).
    kin, cout = w_hwio.shape[2], w_hwio.shape[3]
    mat = np.asarray(w_hwio, np.float32).reshape(9, kin, cout) \
        .transpose(2, 0, 1).reshape(cout, 9 * kin)
    return np.pad(mat, ((0, 0), (0, kw - 9 * kin)))

  def pad_lanes(mat):
    mat = np.asarray(mat, np.float32)
    return np.pad(mat, ((0, 0), (0, kw - mat.shape[1])))

  # Consolidated MXU weight matrix (one DMA).
  head1x1 = np.concatenate([np.asarray(raw["state_w"], np.float32).T,   # (cs,f)
                            np.asarray(raw["vconv_w"], np.float32).T],  # (f,f)
                           axis=0)
  wmat = np.concatenate([
      conv3x3_mat(raw["gate_w"]),
      conv3x3_mat(raw["blk_w1"]),
      conv3x3_mat(raw["blk_w2"]),
      pad_lanes(head1x1),
      pad_lanes(np.asarray(raw["ff2_w"], np.float32).T),
  ], axis=0)                                    # (3f + cs + f + heads, 9f)

  # Consolidated per-channel vectors (one DMA, columns zero-padded).
  rows = cs + f
  def col(v):
    v = np.asarray(v, np.float32).reshape(-1)
    out = np.zeros((rows,), np.float32)
    out[:v.shape[0]] = v
    return out
  vec_list = [
      raw["gate_gamma"], raw["gate_beta"],
      raw["blk_gamma1"], raw["blk_beta1"],
      raw["blk_gamma2"], raw["blk_beta2"],
      np.concatenate([np.asarray(raw["state_gamma"]), np.asarray(raw["vconv_gamma"])]),
      np.concatenate([np.asarray(raw["state_beta"]), np.asarray(raw["vconv_beta"])]),
      raw["ff1_b"], raw["bn1d_gamma"], raw["bn1d_beta"], raw["ff2_b"],
  ]
  assert len(vec_list) == _NUM_VECS
  vecs = np.stack([col(v) for v in vec_list], axis=1)            # (cs+f, 12)

  # Masks (one DMA): rows 0:n per-sample lane masks, rows n:n+9 conv tap masks.
  cols = np.arange(m)
  hh = (cols % hw) // w
  ww = cols % w
  sample_masks = np.stack(
      [((cols // hw) == b).astype(np.float32) for b in range(n)], axis=0)
  tap_masks = np.stack(
      [((hh + dy >= 0) & (hh + dy < h) & (ww + dx >= 0) & (ww + dx < w))
       .astype(np.float32) for dy, dx in _TAP_OFFSETS], axis=0)
  masks = np.concatenate([sample_masks, tap_masks], axis=0)      # (n+9, m)

  # ff1 weights (F*HW, Fout) -> (F, Fout, M), lane-replicated over samples.
  # TODO(synk): at large batch, replace the replication with a per-sample
  # reduce + (N, F*HW) @ (F*HW, F) matmul to keep VMEM/DMA bounded (v7x 64 MiB).
  fout = raw["ff1_w"].shape[1]
  ff1 = np.asarray(raw["ff1_w"], np.float32).reshape(f, hw, fout).transpose(0, 2, 1)
  ff1 = np.tile(ff1, (1, 1, n))                                  # (f, fout, m)

  return {"masks": jnp.asarray(masks), "wmat": jnp.asarray(wmat),
          "vecs": jnp.asarray(vecs), "ff1_w": jnp.asarray(ff1)}


# ---------------------------------------------------------------------------
# pallas_call wrapper (single fused call, whole problem resident in VMEM)
# ---------------------------------------------------------------------------
def build_fused_forward(n, cin, h, w, f, cs, heads):
  assert f % 8 == 0, "filter_size must be a multiple of 8 (sublane alignment)"
  assert cs % 8 == 0, "output_channel must be a multiple of 8 (sublane alignment)"
  hw = h * w
  m = n * hw
  out_rows = cs + heads

  kernel = functools.partial(fused_resnet_g_kernel, n=n, cin=cin, f=f, cs=cs,
                             heads=heads, h=h, w=w, eps=EPS)
  vmem = pl.BlockSpec(memory_space=pltpu.MemorySpace.VMEM)
  call = pl.pallas_call(
      kernel,
      out_shape=jax.ShapeDtypeStruct((out_rows, m), jnp.float32),
      in_specs=[vmem] * 5,
      out_specs=vmem,
  )
  # NOTE: no grid -> single TensorCore; only worth gridding over lane-blocks of
  # M (v7x megacore) once the batch grows well beyond 2 samples.

  def forward(packed, x_nchw):
    # NCHW -> lane-dense (Cin, M): column index = n*H*W + h*W + w (one copy op).
    x_cm = jnp.transpose(x_nchw.astype(jnp.float32), (1, 0, 2, 3)).reshape(cin, m)
    out = call(x_cm, packed["masks"], packed["wmat"], packed["vecs"],
               packed["ff1_w"])
    state = jnp.transpose(out[:cs].reshape(cs, n, h, w), (1, 0, 2, 3))
    value = jnp.transpose(out[cs:cs + heads, :n], (1, 0))
    return state, value

  return forward


# ---------------------------------------------------------------------------
# Deterministic synthetic parameters (PyTorch-convention "raw" layout)
# ---------------------------------------------------------------------------
def init_params(key, in_channels, filter_size, state_channels, heads, h, w):
  ks = jax.random.split(key, 7)

  def nrm(k, shape, scale):
    return (scale * jax.random.normal(k, shape)).astype(jnp.float32)

  f, cs = filter_size, state_channels
  p = {}
  p["gate_w"] = nrm(ks[0], (3, 3, in_channels, f), 0.1)
  p["gate_gamma"], p["gate_beta"] = jnp.ones((f,)), jnp.zeros((f,))
  p["blk_w1"] = nrm(ks[1], (3, 3, f, f), 0.1)
  p["blk_gamma1"], p["blk_beta1"] = jnp.ones((f,)), jnp.zeros((f,))
  p["blk_w2"] = nrm(ks[2], (3, 3, f, f), 0.1)
  p["blk_gamma2"], p["blk_beta2"] = jnp.ones((f,)), jnp.zeros((f,))
  p["state_w"] = nrm(ks[3], (f, cs), 0.1)
  p["state_gamma"], p["state_beta"] = jnp.ones((cs,)), jnp.zeros((cs,))
  p["vconv_w"] = nrm(ks[4], (f, f), 0.1)
  p["vconv_gamma"], p["vconv_beta"] = jnp.ones((f,)), jnp.zeros((f,))
  output_size = f * h * w                 # valueHead output_size (view target)
  p["ff1_w"] = nrm(ks[5], (output_size, f), 0.05)
  p["ff1_b"] = nrm(ks[6], (f,), 0.05)
  p["bn1d_gamma"], p["bn1d_beta"] = jnp.ones((f,)), jnp.zeros((f,))
  p["ff2_w"] = jnp.ones((f, heads), jnp.float32)        # nn.init.constant_(weight, 1)
  p["ff2_b"] = jnp.full((heads,), 1000.0, jnp.float32)  # nn.init.constant_(bias, 1000)
  return p


if __name__ == "__main__":
  key = jax.random.PRNGKey(0)
  kx, kp = jax.random.split(key)

  # Shapes consistent with the module: in_channels=4, filter_size=16, H=W=8,
  # policy_output_shape=(8, 8), output_channel=8,
  # valueHead output_size = filter_size*H*W = 1024, support length = 5.
  N, CIN, H, W = 2, 4, 8, 8
  FILTER, STATE_C, HEADS = 16, 8, 5
  support = jnp.linspace(-2.0, 2.0, HEADS)  # only its length matters in forward()

  x = jax.random.normal(kx, (N, CIN, H, W), jnp.float32)
  raw_params = init_params(kp, CIN, FILTER, STATE_C, HEADS, H, W)
  packed = pack_params(raw_params, N, H, W)

  fwd = jax.jit(build_fused_forward(N, CIN, H, W, FILTER, STATE_C, HEADS))
  state, value = fwd(packed, x)
  jax.block_until_ready((state, value))

  assert state.shape == (N, STATE_C, H, W), state.shape
  assert value.shape == (N, HEADS), value.shape
  assert bool(jnp.all(jnp.isfinite(state))) and bool(jnp.all(jnp.isfinite(value)))
  print("KERNEL_OK")
</pallas_src>

<mosaic_0001>
module attributes {stable_mosaic.version = 11 : i64} {
  func.func @fused_resnet_g_kernel(%arg0: memref<4x128xf32, #tpu.memory_space<vmem>>, %arg1: memref<11x128xf32, #tpu.memory_space<vmem>>, %arg2: memref<77x144xf32, #tpu.memory_space<vmem>>, %arg3: memref<24x12xf32, #tpu.memory_space<vmem>>, %arg4: memref<16x16x128xf32, #tpu.memory_space<vmem>>, %arg5: memref<13x128xf32, #tpu.memory_space<vmem>>) attributes {dimension_semantics = [], scalar_prefetch = 0 : i64, scratch_operands = 0 : i64, tpu.core_type = #tpu.core_type<tc>} {
    %c0 = arith.constant 0 : index
    %c0_0 = arith.constant 0 : index
    %0 = vector.load %arg1[%c0, %c0_0] : memref<11x128xf32, #tpu.memory_space<vmem>>, vector<11x128xf32>
    %1 = vector.extract_strided_slice %0 {offsets = [0, 0], sizes = [2, 128], strides = [1, 1]} : vector<11x128xf32> to vector<2x128xf32>
    %c0_1 = arith.constant 0 : index
    %c0_2 = arith.constant 0 : index
    %2 = vector.load %arg0[%c0_1, %c0_2] : memref<4x128xf32, #tpu.memory_space<vmem>>, vector<4x128xf32>
    %c9_i32 = arith.constant 9 : i32
    %3 = tpu.dynamic_rotate %2 by %c9_i32 dim 1 : vector<4x128xf32>, i32 -> vector<4x128xf32>
    %4 = vector.extract_strided_slice %0 {offsets = [2, 0], sizes = [1, 128], strides = [1, 1]} : vector<11x128xf32> to vector<1x128xf32>
    %5 = vector.broadcast %4 : vector<1x128xf32> to vector<4x128xf32>
    %6 = arith.mulf %3, %5 : vector<4x128xf32>
    %c0_3 = arith.constant 0 : index
    %c0_4 = arith.constant 0 : index
    %7 = vector.load %arg2[%c0_3, %c0_4] : memref<77x144xf32, #tpu.memory_space<vmem>>, vector<16x4xf32>
    %cst = arith.constant dense<0.000000e+00> : vector<16x128xf32>
    %8 = tpu.matmul %7, %6, %cst {dimension_numbers = #tpu.dot_dimension_numbers<[1], [0], [0], [1], [0, 0, 1, 1], [], []>} : vector<16x4xf32>, vector<4x128xf32>, vector<16x128xf32> -> vector<16x128xf32>
    %c8_i32 = arith.constant 8 : i32
    %9 = tpu.dynamic_rotate %2 by %c8_i32 dim 1 : vector<4x128xf32>, i32 -> vector<4x128xf32>
    %10 = vector.extract_strided_slice %0 {offsets = [3, 0], sizes = [1, 128], strides = [1, 1]} : vector<11x128xf32> to vector<1x128xf32>
    %11 = vector.broadcast %10 : vector<1x128xf32> to vector<4x128xf32>
    %12 = arith.mulf %9, %11 : vector<4x128xf32>
    %c0_5 = arith.constant 0 : index
    %c4 = arith.constant 4 : index
    %13 = vector.load %arg2[%c0_5, %c4] : memref<77x144xf32, #tpu.memory_space<vmem>>, vector<16x4xf32>
    %cst_6 = arith.constant dense<0.000000e+00> : vector<16x128xf32>
    %14 = tpu.matmul %13, %12, %cst_6 {dimension_numbers = #tpu.dot_dimension_numbers<[1], [0], [0], [1], [0, 0, 1, 1], [], []>} : vector<16x4xf32>, vector<4x128xf32>, vector<16x128xf32> -> vector<16x128xf32>
    %15 = arith.addf %8, %14 : vector<16x128xf32>
    %c7_i32 = arith.constant 7 : i32
    %16 = tpu.dynamic_rotate %2 by %c7_i32 dim 1 : vector<4x128xf32>, i32 -> vector<4x128xf32>
    %17 = vector.extract_strided_slice %0 {offsets = [4, 0], sizes = [1, 128], strides = [1, 1]} : vector<11x128xf32> to vector<1x128xf32>
    %18 = vector.broadcast %17 : vector<1x128xf32> to vector<4x128xf32>
    %19 = arith.mulf %16, %18 : vector<4x128xf32>
    %c0_7 = arith.constant 0 : index
    %c8 = arith.constant 8 : index
    %20 = vector.load %arg2[%c0_7, %c8] : memref<77x144xf32, #tpu.memory_space<vmem>>, vector<16x4xf32>
    %cst_8 = arith.constant dense<0.000000e+00> : vector<16x128xf32>
    %21 = tpu.matmul %20, %19, %cst_8 {dimension_numbers = #tpu.dot_dimension_numbers<[1], [0], [0], [1], [0, 0, 1, 1], [], []>} : vector<16x4xf32>, vector<4x128xf32>, vector<16x128xf32> -> vector<16x128xf32>
    %22 = arith.addf %15, %21 : vector<16x128xf32>
    %c1_i32 = arith.constant 1 : i32
    %23 = tpu.dynamic_rotate %2 by %c1_i32 dim 1 : vector<4x128xf32>, i32 -> vector<4x128xf32>
    %24 = vector.extract_strided_slice %0 {offsets = [5, 0], sizes = [1, 128], strides = [1, 1]} : vector<11x128xf32> to vector<1x128xf32>
    %25 = vector.broadcast %24 : vector<1x128xf32> to vector<4x128xf32>
    %26 = arith.mulf %23, %25 : vector<4x128xf32>
    %c0_9 = arith.constant 0 : index
    %c12 = arith.constant 12 : index
    %27 = vector.load %arg2[%c0_9, %c12] : memref<77x144xf32, #tpu.memory_space<vmem>>, vector<16x4xf32>
    %cst_10 = arith.constant dense<0.000000e+00> : vector<16x128xf32>
    %28 = tpu.matmul %27, %26, %cst_10 {dimension_numbers = #tpu.dot_dimension_numbers<[1], [0], [0], [1], [0, 0, 1, 1], [], []>} : vector<16x4xf32>, vector<4x128xf32>, vector<16x128xf32> -> vector<16x128xf32>
    %29 = arith.addf %22, %28 : vector<16x128xf32>
    %30 = vector.extract_strided_slice %0 {offsets = [6, 0], sizes = [1, 128], strides = [1, 1]} : vector<11x128xf32> to vector<1x128xf32>
    %31 = vector.broadcast %30 : vector<1x128xf32> to vector<4x128xf32>
    %32 = arith.mulf %2, %31 : vector<4x128xf32>
    %c0_11 = arith.constant 0 : index
    %c16 = arith.constant 16 : index
    %33 = vector.load %arg2[%c0_11, %c16] : memref<77x144xf32, #tpu.memory_space<vmem>>, vector<16x4xf32>
    %cst_12 = arith.constant dense<0.000000e+00> : vector<16x128xf32>
    %34 = tpu.matmul %33, %32, %cst_12 {dimension_numbers = #tpu.dot_dimension_numbers<[1], [0], [0], [1], [0, 0, 1, 1], [], []>} : vector<16x4xf32>, vector<4x128xf32>, vector<16x128xf32> -> vector<16x128xf32>
    %35 = arith.addf %29, %34 : vector<16x128xf32>
    %c127_i32 = arith.constant 127 : i32
    %36 = tpu.dynamic_rotate %2 by %c127_i32 dim 1 : vector<4x128xf32>, i32 -> vector<4x128xf32>
    %37 = vector.extract_strided_slice %0 {offsets = [7, 0], sizes = [1, 128], strides = [1, 1]} : vector<11x128xf32> to vector<1x128xf32>
    %38 = vector.broadcast %37 : vector<1x128xf32> to vector<4x128xf32>
    %39 = arith.mulf %36, %38 : vector<4x128xf32>
    %c0_13 = arith.constant 0 : index
    %c20 = arith.constant 20 : index
    %40 = vector.load %arg2[%c0_13, %c20] : memref<77x144xf32, #tpu.memory_space<vmem>>, vector<16x4xf32>
    %cst_14 = arith.constant dense<0.000000e+00> : vector<16x128xf32>
    %41 = tpu.matmul %40, %39, %cst_14 {dimension_numbers = #tpu.dot_dimension_numbers<[1], [0], [0], [1], [0, 0, 1, 1], [], []>} : vector<16x4xf32>, vector<4x128xf32>, vector<16x128xf32> -> vector<16x128xf32>
    %42 = arith.addf %35, %41 : vector<16x128xf32>
    %c121_i32 = arith.constant 121 : i32
    %43 = tpu.dynamic_rotate %2 by %c121_i32 dim 1 : vector<4x128xf32>, i32 -> vector<4x128xf32>
    %44 = vector.extract_strided_slice %0 {offsets = [8, 0], sizes = [1, 128], strides = [1, 1]} : vector<11x128xf32> to vector<1x128xf32>
    %45 = vector.broadcast %44 : vector<1x128xf32> to vector<4x128xf32>
    %46 = arith.mulf %43, %45 : vector<4x128xf32>
    %c0_15 = arith.constant 0 : index
    %c24 = arith.constant 24 : index
    %47 = vector.load %arg2[%c0_15, %c24] : memref<77x144xf32, #tpu.memory_space<vmem>>, vector<16x4xf32>
    %cst_16 = arith.constant dense<0.000000e+00> : vector<16x128xf32>
    %48 = tpu.matmul %47, %46, %cst_16 {dimension_numbers = #tpu.dot_dimension_numbers<[1], [0], [0], [1], [0, 0, 1, 1], [], []>} : vector<16x4xf32>, vector<4x128xf32>, vector<16x128xf32> -> vector<16x128xf32>
    %49 = arith.addf %42, %48 : vector<16x128xf32>
    %c120_i32 = arith.constant 120 : i32
    %50 = tpu.dynamic_rotate %2 by %c120_i32 dim 1 : vector<4x128xf32>, i32 -> vector<4x128xf32>
    %51 = vector.extract_strided_slice %0 {offsets = [9, 0], sizes = [1, 128], strides = [1, 1]} : vector<11x128xf32> to vector<1x128xf32>
    %52 = vector.broadcast %51 : vector<1x128xf32> to vector<4x128xf32>
    %53 = arith.mulf %50, %52 : vector<4x128xf32>
    %c0_17 = arith.constant 0 : index
    %c28 = arith.constant 28 : index
    %54 = vector.load %arg2[%c0_17, %c28] : memref<77x144xf32, #tpu.memory_space<vmem>>, vector<16x4xf32>
    %cst_18 = arith.constant dense<0.000000e+00> : vector<16x128xf32>
    %55 = tpu.matmul %54, %53, %cst_18 {dimension_numbers = #tpu.dot_dimension_numbers<[1], [0], [0], [1], [0, 0, 1, 1], [], []>} : vector<16x4xf32>, vector<4x128xf32>, vector<16x128xf32> -> vector<16x128xf32>
    %56 = arith.addf %49, %55 : vector<16x128xf32>
    %c119_i32 = arith.constant 119 : i32
    %57 = tpu.dynamic_rotate %2 by %c119_i32 dim 1 : vector<4x128xf32>, i32 -> vector<4x128xf32>
    %58 = vector.extract_strided_slice %0 {offsets = [10, 0], sizes = [1, 128], strides = [1, 1]} : vector<11x128xf32> to vector<1x128xf32>
    %59 = vector.broadcast %58 : vector<1x128xf32> to vector<4x128xf32>
    %60 = arith.mulf %57, %59 : vector<4x128xf32>
    %c0_19 = arith.constant 0 : index
    %c32 = arith.constant 32 : index
    %61 = vector.load %arg2[%c0_19, %c32] : memref<77x144xf32, #tpu.memory_space<vmem>>, vector<16x4xf32>
    %cst_20 = arith.constant dense<0.000000e+00> : vector<16x128xf32>
    %62 = tpu.matmul %61, %60, %cst_20 {dimension_numbers = #tpu.dot_dimension_numbers<[1], [0], [0], [1], [0, 0, 1, 1], [], []>} : vector<16x4xf32>, vector<4x128xf32>, vector<16x128xf32> -> vector<16x128xf32>
    %63 = arith.addf %56, %62 : vector<16x128xf32>
    %c0_21 = arith.constant 0 : index
    %c0_22 = arith.constant 0 : index
    %64 = vector.load %arg3[%c0_21, %c0_22] : memref<24x12xf32, #tpu.memory_space<vmem>>, vector<16x1xf32>
    %c0_23 = arith.constant 0 : index
    %c1 = arith.constant 1 : index
    %65 = vector.load %arg3[%c0_23, %c1] : memref<24x12xf32, #tpu.memory_space<vmem>>, vector<16x1xf32>
    %cst_24 = arith.constant dense<0.000000e+00> : vector<16xf32>
    %66 = vector.multi_reduction <add>, %63, %cst_24 [1] : vector<16x128xf32> to vector<16xf32>
    %67 = vector.shape_cast %66 : vector<16xf32> to vector<16x1xf32>
    %cst_25 = arith.constant 7.812500e-03 : f32
    %68 = vector.broadcast %cst_25 : f32 to vector<16x1xf32>
    %69 = arith.mulf %67, %68 : vector<16x1xf32>
    %70 = vector.broadcast %69 : vector<16x1xf32> to vector<16x128xf32>
    %71 = arith.subf %63, %70 : vector<16x128xf32>
    %72 = arith.mulf %71, %71 : vector<16x128xf32>
    %cst_26 = arith.constant dense<0.000000e+00> : vector<16xf32>
    %73 = vector.multi_reduction <add>, %72, %cst_26 [1] : vector<16x128xf32> to vector<16xf32>
    %74 = vector.shape_cast %73 : vector<16xf32> to vector<16x1xf32>
    %cst_27 = arith.constant 7.812500e-03 : f32
    %75 = vector.broadcast %cst_27 : f32 to vector<16x1xf32>
    %76 = arith.mulf %74, %75 : vector<16x1xf32>
    %cst_28 = arith.constant 9.99999974E-6 : f32
    %77 = vector.broadcast %cst_28 : f32 to vector<16x1xf32>
    %78 = arith.addf %76, %77 : vector<16x1xf32>
    %79 = math.rsqrt %78 : vector<16x1xf32>
    %80 = arith.mulf %64, %79 : vector<16x1xf32>
    %81 = vector.broadcast %80 : vector<16x1xf32> to vector<16x128xf32>
    %82 = arith.mulf %71, %81 : vector<16x128xf32>
    %83 = vector.broadcast %65 : vector<16x1xf32> to vector<16x128xf32>
    %84 = arith.addf %82, %83 : vector<16x128xf32>
    %cst_29 = arith.constant 0.000000e+00 : f32
    %85 = vector.broadcast %cst_29 : f32 to vector<16x128xf32>
    %86 = arith.maximumf %84, %85 : vector<16x128xf32>
    %c9_i32_30 = arith.constant 9 : i32
    %87 = tpu.dynamic_rotate %86 by %c9_i32_30 dim 1 : vector<16x128xf32>, i32 -> vector<16x128xf32>
    %88 = vector.extract_strided_slice %0 {offsets = [2, 0], sizes = [1, 128], strides = [1, 1]} : vector<11x128xf32> to vector<1x128xf32>
    %89 = vector.broadcast %88 : vector<1x128xf32> to vector<16x128xf32>
    %90 = arith.mulf %87, %89 : vector<16x128xf32>
    %c16_31 = arith.constant 16 : index
    %c0_32 = arith.constant 0 : index
    %91 = vector.load %arg2[%c16_31, %c0_32] : memref<77x144xf32, #tpu.memory_space<vmem>>, vector<16x16xf32>
    %cst_33 = arith.constant dense<0.000000e+00> : vector<16x128xf32>
    %92 = tpu.matmul %91, %90, %cst_33 {dimension_numbers = #tpu.dot_dimension_numbers<[1], [0], [0], [1], [0, 0, 1, 1], [], []>} : vector<16x16xf32>, vector<16x128xf32>, vector<16x128xf32> -> vector<16x128xf32>
    %c8_i32_34 = arith.constant 8 : i32
    %93 = tpu.dynamic_rotate %86 by %c8_i32_34 dim 1 : vector<16x128xf32>, i32 -> vector<16x128xf32>
    %94 = vector.extract_strided_slice %0 {offsets = [3, 0], sizes = [1, 128], strides = [1, 1]} : vector<11x128xf32> to vector<1x128xf32>
    %95 = vector.broadcast %94 : vector<1x128xf32> to vector<16x128xf32>
    %96 = arith.mulf %93, %95 : vector<16x128xf32>
    %c16_35 = arith.constant 16 : index
    %c16_36 = arith.constant 16 : index
    %97 = vector.load %arg2[%c16_35, %c16_36] : memref<77x144xf32, #tpu.memory_space<vmem>>, vector<16x16xf32>
    %cst_37 = arith.constant dense<0.000000e+00> : vector<16x128xf32>
    %98 = tpu.matmul %97, %96, %cst_37 {dimension_numbers = #tpu.dot_dimension_numbers<[1], [0], [0], [1], [0, 0, 1, 1], [], []>} : vector<16x16xf32>, vector<16x128xf32>, vector<16x128xf32> -> vector<16x128xf32>
    %99 = arith.addf %92, %98 : vector<16x128xf32>
    %c7_i32_38 = arith.constant 7 : i32
    %100 = tpu.dynamic_rotate %86 by %c7_i32_38 dim 1 : vector<16x128xf32>, i32 -> vector<16x128xf32>
    %101 = vector.extract_strided_slice %0 {offsets = [4, 0], sizes = [1, 128], strides = [1, 1]} : vector<11x128xf32> to vector<1x128xf32>
    %102 = vector.broadcast %101 : vector<1x128xf32> to vector<16x128xf32>
    %103 = arith.mulf %100, %102 : vector<16x128xf32>
    %c16_39 = arith.constant 16 : index
    %c32_40 = arith.constant 32 : index
    %104 = vector.load %arg2[%c16_39, %c32_40] : memref<77x144xf32, #tpu.memory_space<vmem>>, vector<16x16xf32>
    %cst_41 = arith.constant dense<0.000000e+00> : vector<16x128xf32>
    %105 = tpu.matmul %104, %103, %cst_41 {dimension_numbers = #tpu.dot_dimension_numbers<[1], [0], [0], [1], [0, 0, 1, 1], [], []>} : vector<16x16xf32>, vector<16x128xf32>, vector<16x128xf32> -> vector<16x128xf32>
    %106 = arith.addf %99, %105 : vector<16x128xf32>
    %c1_i32_42 = arith.constant 1 : i32
    %107 = tpu.dynamic_rotate %86 by %c1_i32_42 dim 1 : vector<16x128xf32>, i32 -> vector<16x128xf32>
    %108 = vector.extract_strided_slice %0 {offsets = [5, 0], sizes = [1, 128], strides = [1, 1]} : vector<11x128xf32> to vector<1x128xf32>
    %109 = vector.broadcast %108 : vector<1x128xf32> to vector<16x128xf32>
    %110 = arith.mulf %107, %109 : vector<16x128xf32>
    %c16_43 = arith.constant 16 : index
    %c48 = arith.constant 48 : index
    %111 = vector.load %arg2[%c16_43, %c48] : memref<77x144xf32, #tpu.memory_space<vmem>>, vector<16x16xf32>
    %cst_44 = arith.constant dense<0.000000e+00> : vector<16x128xf32>
    %112 = tpu.matmul %111, %110, %cst_44 {dimension_numbers = #tpu.dot_dimension_numbers<[1], [0], [0], [1], [0, 0, 1, 1], [], []>} : vector<16x16xf32>, vector<16x128xf32>, vector<16x128xf32> -> vector<16x128xf32>
    %113 = arith.addf %106, %112 : vector<16x128xf32>
    %114 = vector.extract_strided_slice %0 {offsets = [6, 0], sizes = [1, 128], strides = [1, 1]} : vector<11x128xf32> to vector<1x128xf32>
    %115 = vector.broadcast %114 : vector<1x128xf32> to vector<16x128xf32>
    %116 = arith.mulf %86, %115 : vector<16x128xf32>
    %c16_45 = arith.constant 16 : index
    %c64 = arith.constant 64 : index
    %117 = vector.load %arg2[%c16_45, %c64] : memref<77x144xf32, #tpu.memory_space<vmem>>, vector<16x16xf32>
    %cst_46 = arith.constant dense<0.000000e+00> : vector<16x128xf32>
    %118 = tpu.matmul %117, %116, %cst_46 {dimension_numbers = #tpu.dot_dimension_numbers<[1], [0], [0], [1], [0, 0, 1, 1], [], []>} : vector<16x16xf32>, vector<16x128xf32>, vector<16x128xf32> -> vector<16x128xf32>
    %119 = arith.addf %113, %118 : vector<16x128xf32>
    %c127_i32_47 = arith.constant 127 : i32
    %120 = tpu.dynamic_rotate %86 by %c127_i32_47 dim 1 : vector<16x128xf32>, i32 -> vector<16x128xf32>
    %121 = vector.extract_strided_slice %0 {offsets = [7, 0], sizes = [1, 128], strides = [1, 1]} : vector<11x128xf32> to vector<1x128xf32>
    %122 = vector.broadcast %121 : vector<1x128xf32> to vector<16x128xf32>
    %123 = arith.mulf %120, %122 : vector<16x128xf32>
    %c16_48 = arith.constant 16 : index
    %c80 = arith.constant 80 : index
    %124 = vector.load %arg2[%c16_48, %c80] : memref<77x144xf32, #tpu.memory_space<vmem>>, vector<16x16xf32>
    %cst_49 = arith.constant dense<0.000000e+00> : vector<16x128xf32>
    %125 = tpu.matmul %124, %123, %cst_49 {dimension_numbers = #tpu.dot_dimension_numbers<[1], [0], [0], [1], [0, 0, 1, 1], [], []>} : vector<16x16xf32>, vector<16x128xf32>, vector<16x128xf32> -> vector<16x128xf32>
    %126 = arith.addf %119, %125 : vector<16x128xf32>
    %c121_i32_50 = arith.constant 121 : i32
    %127 = tpu.dynamic_rotate %86 by %c121_i32_50 dim 1 : vector<16x128xf32>, i32 -> vector<16x128xf32>
    %128 = vector.extract_strided_slice %0 {offsets = [8, 0], sizes = [1, 128], strides = [1, 1]} : vector<11x128xf32> to vector<1x128xf32>
    %129 = vector.broadcast %128 : vector<1x128xf32> to vector<16x128xf32>
    %130 = arith.mulf %127, %129 : vector<16x128xf32>
    %c16_51 = arith.constant 16 : index
    %c96 = arith.constant 96 : index
    %131 = vector.load %arg2[%c16_51, %c96] : memref<77x144xf32, #tpu.memory_space<vmem>>, vector<16x16xf32>
    %cst_52 = arith.constant dense<0.000000e+00> : vector<16x128xf32>
    %132 = tpu.matmul %131, %130, %cst_52 {dimension_numbers = #tpu.dot_dimension_numbers<[1], [0], [0], [1], [0, 0, 1, 1], [], []>} : vector<16x16xf32>, vector<16x128xf32>, vector<16x128xf32> -> vector<16x128xf32>
    %133 = arith.addf %126, %132 : vector<16x128xf32>
    %c120_i32_53 = arith.constant 120 : i32
    %134 = tpu.dynamic_rotate %86 by %c120_i32_53 dim 1 : vector<16x128xf32>, i32 -> vector<16x128xf32>
    %135 = vector.extract_strided_slice %0 {offsets = [9, 0], sizes = [1, 128], strides = [1, 1]} : vector<11x128xf32> to vector<1x128xf32>
    %136 = vector.broadcast %135 : vector<1x128xf32> to vector<16x128xf32>
    %137 = arith.mulf %134, %136 : vector<16x128xf32>
    %c16_54 = arith.constant 16 : index
    %c112 = arith.constant 112 : index
    %138 = vector.load %arg2[%c16_54, %c112] : memref<77x144xf32, #tpu.memory_space<vmem>>, vector<16x16xf32>
    %cst_55 = arith.constant dense<0.000000e+00> : vector<16x128xf32>
    %139 = tpu.matmul %138, %137, %cst_55 {dimension_numbers = #tpu.dot_dimension_numbers<[1], [0], [0], [1], [0, 0, 1, 1], [], []>} : vector<16x16xf32>, vector<16x128xf32>, vector<16x128xf32> -> vector<16x128xf32>
    %140 = arith.addf %133, %139 : vector<16x128xf32>
    %c119_i32_56 = arith.constant 119 : i32
    %141 = tpu.dynamic_rotate %86 by %c119_i32_56 dim 1 : vector<16x128xf32>, i32 -> vector<16x128xf32>
    %142 = vector.extract_strided_slice %0 {offsets = [10, 0], sizes = [1, 128], strides = [1, 1]} : vector<11x128xf32> to vector<1x128xf32>
    %143 = vector.broadcast %142 : vector<1x128xf32> to vector<16x128xf32>
    %144 = arith.mulf %141, %143 : vector<16x128xf32>
    %c16_57 = arith.constant 16 : index
    %c128 = arith.constant 128 : index
    %145 = vector.load %arg2[%c16_57, %c128] : memref<77x144xf32, #tpu.memory_space<vmem>>, vector<16x16xf32>
    %cst_58 = arith.constant dense<0.000000e+00> : vector<16x128xf32>
    %146 = tpu.matmul %145, %144, %cst_58 {dimension_numbers = #tpu.dot_dimension_numbers<[1], [0], [0], [1], [0, 0, 1, 1], [], []>} : vector<16x16xf32>, vector<16x128xf32>, vector<16x128xf32> -> vector<16x128xf32>
    %147 = arith.addf %140, %146 : vector<16x128xf32>
    %c0_59 = arith.constant 0 : index
    %c2 = arith.constant 2 : index
    %148 = vector.load %arg3[%c0_59, %c2] : memref<24x12xf32, #tpu.memory_space<vmem>>, vector<16x1xf32>
    %c0_60 = arith.constant 0 : index
    %c3 = arith.constant 3 : index
    %149 = vector.load %arg3[%c0_60, %c3] : memref<24x12xf32, #tpu.memory_space<vmem>>, vector<16x1xf32>
    %cst_61 = arith.constant dense<0.000000e+00> : vector<16xf32>
    %150 = vector.multi_reduction <add>, %147, %cst_61 [1] : vector<16x128xf32> to vector<16xf32>
    %151 = vector.shape_cast %150 : vector<16xf32> to vector<16x1xf32>
    %cst_62 = arith.constant 7.812500e-03 : f32
    %152 = vector.broadcast %cst_62 : f32 to vector<16x1xf32>
    %153 = arith.mulf %151, %152 : vector<16x1xf32>
    %154 = vector.broadcast %153 : vector<16x1xf32> to vector<16x128xf32>
    %155 = arith.subf %147, %154 : vector<16x128xf32>
    %156 = arith.mulf %155, %155 : vector<16x128xf32>
    %cst_63 = arith.constant dense<0.000000e+00> : vector<16xf32>
    %157 = vector.multi_reduction <add>, %156, %cst_63 [1] : vector<16x128xf32> to vector<16xf32>
    %158 = vector.shape_cast %157 : vector<16xf32> to vector<16x1xf32>
    %cst_64 = arith.constant 7.812500e-03 : f32
    %159 = vector.broadcast %cst_64 : f32 to vector<16x1xf32>
    %160 = arith.mulf %158, %159 : vector<16x1xf32>
    %cst_65 = arith.constant 9.99999974E-6 : f32
    %161 = vector.broadcast %cst_65 : f32 to vector<16x1xf32>
    %162 = arith.addf %160, %161 : vector<16x1xf32>
    %163 = math.rsqrt %162 : vector<16x1xf32>
    %164 = arith.mulf %148, %163 : vector<16x1xf32>
    %165 = vector.broadcast %164 : vector<16x1xf32> to vector<16x128xf32>
    %166 = arith.mulf %155, %165 : vector<16x128xf32>
    %167 = vector.broadcast %149 : vector<16x1xf32> to vector<16x128xf32>
    %168 = arith.addf %166, %167 : vector<16x128xf32>
    %cst_66 = arith.constant 0.000000e+00 : f32
    %169 = vector.broadcast %cst_66 : f32 to vector<16x128xf32>
    %170 = arith.maximumf %168, %169 : vector<16x128xf32>
    %c9_i32_67 = arith.constant 9 : i32
    %171 = tpu.dynamic_rotate %170 by %c9_i32_67 dim 1 : vector<16x128xf32>, i32 -> vector<16x128xf32>
    %172 = vector.extract_strided_slice %0 {offsets = [2, 0], sizes = [1, 128], strides = [1, 1]} : vector<11x128xf32> to vector<1x128xf32>
    %173 = vector.broadcast %172 : vector<1x128xf32> to vector<16x128xf32>
    %174 = arith.mulf %171, %173 : vector<16x128xf32>
    %c32_68 = arith.constant 32 : index
    %c0_69 = arith.constant 0 : index
    %175 = vector.load %arg2[%c32_68, %c0_69] : memref<77x144xf32, #tpu.memory_space<vmem>>, vector<16x16xf32>
    %cst_70 = arith.constant dense<0.000000e+00> : vector<16x128xf32>
    %176 = tpu.matmul %175, %174, %cst_70 {dimension_numbers = #tpu.dot_dimension_numbers<[1], [0], [0], [1], [0, 0, 1, 1], [], []>} : vector<16x16xf32>, vector<16x128xf32>, vector<16x128xf32> -> vector<16x128xf32>
    %c8_i32_71 = arith.constant 8 : i32
    %177 = tpu.dynamic_rotate %170 by %c8_i32_71 dim 1 : vector<16x128xf32>, i32 -> vector<16x128xf32>
    %178 = vector.extract_strided_slice %0 {offsets = [3, 0], sizes = [1, 128], strides = [1, 1]} : vector<11x128xf32> to vector<1x128xf32>
    %179 = vector.broadcast %178 : vector<1x128xf32> to vector<16x128xf32>
    %180 = arith.mulf %177, %179 : vector<16x128xf32>
    %c32_72 = arith.constant 32 : index
    %c16_73 = arith.constant 16 : index
    %181 = vector.load %arg2[%c32_72, %c16_73] : memref<77x144xf32, #tpu.memory_space<vmem>>, vector<16x16xf32>
    %cst_74 = arith.constant dense<0.000000e+00> : vector<16x128xf32>
    %182 = tpu.matmul %181, %180, %cst_74 {dimension_numbers = #tpu.dot_dimension_numbers<[1], [0], [0], [1], [0, 0, 1, 1], [], []>} : vector<16x16xf32>, vector<16x128xf32>, vector<16x128xf32> -> vector<16x128xf32>
    %183 = arith.addf %176, %182 : vector<16x128xf32>
    %c7_i32_75 = arith.constant 7 : i32
    %184 = tpu.dynamic_rotate %170 by %c7_i32_75 dim 1 : vector<16x128xf32>, i32 -> vector<16x128xf32>
    %185 = vector.extract_strided_slice %0 {offsets = [4, 0], sizes = [1, 128], strides = [1, 1]} : vector<11x128xf32> to vector<1x128xf32>
    %186 = vector.broadcast %185 : vector<1x128xf32> to vector<16x128xf32>
    %187 = arith.mulf %184, %186 : vector<16x128xf32>
    %c32_76 = arith.constant 32 : index
    %c32_77 = arith.constant 32 : index
    %188 = vector.load %arg2[%c32_76, %c32_77] : memref<77x144xf32, #tpu.memory_space<vmem>>, vector<16x16xf32>
    %cst_78 = arith.constant dense<0.000000e+00> : vector<16x128xf32>
    %189 = tpu.matmul %188, %187, %cst_78 {dimension_numbers = #tpu.dot_dimension_numbers<[1], [0], [0], [1], [0, 0, 1, 1], [], []>} : vector<16x16xf32>, vector<16x128xf32>, vector<16x128xf32> -> vector<16x128xf32>
    %190 = arith.addf %183, %189 : vector<16x128xf32>
    %c1_i32_79 = arith.constant 1 : i32
    %191 = tpu.dynamic_rotate %170 by %c1_i32_79 dim 1 : vector<16x128xf32>, i32 -> vector<16x128xf32>
    %192 = vector.extract_strided_slice %0 {offsets = [5, 0], sizes = [1, 128], strides = [1, 1]} : vector<11x128xf32> to vector<1x128xf32>
    %193 = vector.broadcast %192 : vector<1x128xf32> to vector<16x128xf32>
    %194 = arith.mulf %191, %193 : vector<16x128xf32>
    %c32_80 = arith.constant 32 : index
    %c48_81 = arith.constant 48 : index
    %195 = vector.load %arg2[%c32_80, %c48_81] : memref<77x144xf32, #tpu.memory_space<vmem>>, vector<16x16xf32>
    %cst_82 = arith.constant dense<0.000000e+00> : vector<16x128xf32>
    %196 = tpu.matmul %195, %194, %cst_82 {dimension_numbers = #tpu.dot_dimension_numbers<[1], [0], [0], [1], [0, 0, 1, 1], [], []>} : vector<16x16xf32>, vector<16x128xf32>, vector<16x128xf32> -> vector<16x128xf32>
    %197 = arith.addf %190, %196 : vector<16x128xf32>
    %198 = vector.extract_strided_slice %0 {offsets = [6, 0], sizes = [1, 128], strides = [1, 1]} : vector<11x128xf32> to vector<1x128xf32>
    %199 = vector.broadcast %198 : vector<1x128xf32> to vector<16x128xf32>
    %200 = arith.mulf %170, %199 : vector<16x128xf32>
    %c32_83 = arith.constant 32 : index
    %c64_84 = arith.constant 64 : index
    %201 = vector.load %arg2[%c32_83, %c64_84] : memref<77x144xf32, #tpu.memory_space<vmem>>, vector<16x16xf32>
    %cst_85 = arith.constant dense<0.000000e+00> : vector<16x128xf32>
    %202 = tpu.matmul %201, %200, %cst_85 {dimension_numbers = #tpu.dot_dimension_numbers<[1], [0], [0], [1], [0, 0, 1, 1], [], []>} : vector<16x16xf32>, vector<16x128xf32>, vector<16x128xf32> -> vector<16x128xf32>
    %203 = arith.addf %197, %202 : vector<16x128xf32>
    %c127_i32_86 = arith.constant 127 : i32
    %204 = tpu.dynamic_rotate %170 by %c127_i32_86 dim 1 : vector<16x128xf32>, i32 -> vector<16x128xf32>
    %205 = vector.extract_strided_slice %0 {offsets = [7, 0], sizes = [1, 128], strides = [1, 1]} : vector<11x128xf32> to vector<1x128xf32>
    %206 = vector.broadcast %205 : vector<1x128xf32> to vector<16x128xf32>
    %207 = arith.mulf %204, %206 : vector<16x128xf32>
    %c32_87 = arith.constant 32 : index
    %c80_88 = arith.constant 80 : index
    %208 = vector.load %arg2[%c32_87, %c80_88] : memref<77x144xf32, #tpu.memory_space<vmem>>, vector<16x16xf32>
    %cst_89 = arith.constant dense<0.000000e+00> : vector<16x128xf32>
    %209 = tpu.matmul %208, %207, %cst_89 {dimension_numbers = #tpu.dot_dimension_numbers<[1], [0], [0], [1], [0, 0, 1, 1], [], []>} : vector<16x16xf32>, vector<16x128xf32>, vector<16x128xf32> -> vector<16x128xf32>
    %210 = arith.addf %203, %209 : vector<16x128xf32>
    %c121_i32_90 = arith.constant 121 : i32
    %211 = tpu.dynamic_rotate %170 by %c121_i32_90 dim 1 : vector<16x128xf32>, i32 -> vector<16x128xf32>
    %212 = vector.extract_strided_slice %0 {offsets = [8, 0], sizes = [1, 128], strides = [1, 1]} : vector<11x128xf32> to vector<1x128xf32>
    %213 = vector.broadcast %212 : vector<1x128xf32> to vector<16x128xf32>
    %214 = arith.mulf %211, %213 : vector<16x128xf32>
    %c32_91 = arith.constant 32 : index
    %c96_92 = arith.constant 96 : index
    %215 = vector.load %arg2[%c32_91, %c96_92] : memref<77x144xf32, #tpu.memory_space<vmem>>, vector<16x16xf32>
    %cst_93 = arith.constant dense<0.000000e+00> : vector<16x128xf32>
    %216 = tpu.matmul %215, %214, %cst_93 {dimension_numbers = #tpu.dot_dimension_numbers<[1], [0], [0], [1], [0, 0, 1, 1], [], []>} : vector<16x16xf32>, vector<16x128xf32>, vector<16x128xf32> -> vector<16x128xf32>
    %217 = arith.addf %210, %216 : vector<16x128xf32>
    %c120_i32_94 = arith.constant 120 : i32
    %218 = tpu.dynamic_rotate %170 by %c120_i32_94 dim 1 : vector<16x128xf32>, i32 -> vector<16x128xf32>
    %219 = vector.extract_strided_slice %0 {offsets = [9, 0], sizes = [1, 128], strides = [1, 1]} : vector<11x128xf32> to vector<1x128xf32>
    %220 = vector.broadcast %219 : vector<1x128xf32> to vector<16x128xf32>
    %221 = arith.mulf %218, %220 : vector<16x128xf32>
    %c32_95 = arith.constant 32 : index
    %c112_96 = arith.constant 112 : index
    %222 = vector.load %arg2[%c32_95, %c112_96] : memref<77x144xf32, #tpu.memory_space<vmem>>, vector<16x16xf32>
    %cst_97 = arith.constant dense<0.000000e+00> : vector<16x128xf32>
    %223 = tpu.matmul %222, %221, %cst_97 {dimension_numbers = #tpu.dot_dimension_numbers<[1], [0], [0], [1], [0, 0, 1, 1], [], []>} : vector<16x16xf32>, vector<16x128xf32>, vector<16x128xf32> -> vector<16x128xf32>
    %224 = arith.addf %217, %223 : vector<16x128xf32>
    %c119_i32_98 = arith.constant 119 : i32
    %225 = tpu.dynamic_rotate %170 by %c119_i32_98 dim 1 : vector<16x128xf32>, i32 -> vector<16x128xf32>
    %226 = vector.extract_strided_slice %0 {offsets = [10, 0], sizes = [1, 128], strides = [1, 1]} : vector<11x128xf32> to vector<1x128xf32>
    %227 = vector.broadcast %226 : vector<1x128xf32> to vector<16x128xf32>
    %228 = arith.mulf %225, %227 : vector<16x128xf32>
    %c32_99 = arith.constant 32 : index
    %c128_100 = arith.constant 128 : index
    %229 = vector.load %arg2[%c32_99, %c128_100] : memref<77x144xf32, #tpu.memory_space<vmem>>, vector<16x16xf32>
    %cst_101 = arith.constant dense<0.000000e+00> : vector<16x128xf32>
    %230 = tpu.matmul %229, %228, %cst_101 {dimension_numbers = #tpu.dot_dimension_numbers<[1], [0], [0], [1], [0, 0, 1, 1], [], []>} : vector<16x16xf32>, vector<16x128xf32>, vector<16x128xf32> -> vector<16x128xf32>
    %231 = arith.addf %224, %230 : vector<16x128xf32>
    %c0_102 = arith.constant 0 : index
    %c4_103 = arith.constant 4 : index
    %232 = vector.load %arg3[%c0_102, %c4_103] : memref<24x12xf32, #tpu.memory_space<vmem>>, vector<16x1xf32>
    %c0_104 = arith.constant 0 : index
    %c5 = arith.constant 5 : index
    %233 = vector.load %arg3[%c0_104, %c5] : memref<24x12xf32, #tpu.memory_space<vmem>>, vector<16x1xf32>
    %cst_105 = arith.constant dense<0.000000e+00> : vector<16xf32>
    %234 = vector.multi_reduction <add>, %231, %cst_105 [1] : vector<16x128xf32> to vector<16xf32>
    %235 = vector.shape_cast %234 : vector<16xf32> to vector<16x1xf32>
    %cst_106 = arith.constant 7.812500e-03 : f32
    %236 = vector.broadcast %cst_106 : f32 to vector<16x1xf32>
    %237 = arith.mulf %235, %236 : vector<16x1xf32>
    %238 = vector.broadcast %237 : vector<16x1xf32> to vector<16x128xf32>
    %239 = arith.subf %231, %238 : vector<16x128xf32>
    %240 = arith.mulf %239, %239 : vector<16x128xf32>
    %cst_107 = arith.constant dense<0.000000e+00> : vector<16xf32>
    %241 = vector.multi_reduction <add>, %240, %cst_107 [1] : vector<16x128xf32> to vector<16xf32>
    %242 = vector.shape_cast %241 : vector<16xf32> to vector<16x1xf32>
    %cst_108 = arith.constant 7.812500e-03 : f32
    %243 = vector.broadcast %cst_108 : f32 to vector<16x1xf32>
    %244 = arith.mulf %242, %243 : vector<16x1xf32>
    %cst_109 = arith.constant 9.99999974E-6 : f32
    %245 = vector.broadcast %cst_109 : f32 to vector<16x1xf32>
    %246 = arith.addf %244, %245 : vector<16x1xf32>
    %247 = math.rsqrt %246 : vector<16x1xf32>
    %248 = arith.mulf %232, %247 : vector<16x1xf32>
    %249 = vector.broadcast %248 : vector<16x1xf32> to vector<16x128xf32>
    %250 = arith.mulf %239, %249 : vector<16x128xf32>
    %251 = vector.broadcast %233 : vector<16x1xf32> to vector<16x128xf32>
    %252 = arith.addf %250, %251 : vector<16x128xf32>
    %253 = arith.addf %252, %86 : vector<16x128xf32>
    %cst_110 = arith.constant 0.000000e+00 : f32
    %254 = vector.broadcast %cst_110 : f32 to vector<16x128xf32>
    %255 = arith.maximumf %253, %254 : vector<16x128xf32>
    %c48_111 = arith.constant 48 : index
    %c0_112 = arith.constant 0 : index
    %256 = vector.load %arg2[%c48_111, %c0_112] : memref<77x144xf32, #tpu.memory_space<vmem>>, vector<24x16xf32>
    %cst_113 = arith.constant dense<0.000000e+00> : vector<24x128xf32>
    %257 = tpu.matmul %256, %255, %cst_113 {dimension_numbers = #tpu.dot_dimension_numbers<[1], [0], [0], [1], [0, 0, 1, 1], [], []>} : vector<24x16xf32>, vector<16x128xf32>, vector<24x128xf32> -> vector<24x128xf32>
    %c0_114 = arith.constant 0 : index
    %c6 = arith.constant 6 : index
    %258 = vector.load %arg3[%c0_114, %c6] : memref<24x12xf32, #tpu.memory_space<vmem>>, vector<24x1xf32>
    %c0_115 = arith.constant 0 : index
    %c7 = arith.constant 7 : index
    %259 = vector.load %arg3[%c0_115, %c7] : memref<24x12xf32, #tpu.memory_space<vmem>>, vector<24x1xf32>
    %cst_116 = arith.constant dense<0.000000e+00> : vector<24xf32>
    %260 = vector.multi_reduction <add>, %257, %cst_116 [1] : vector<24x128xf32> to vector<24xf32>
    %261 = vector.shape_cast %260 : vector<24xf32> to vector<24x1xf32>
    %cst_117 = arith.constant 7.812500e-03 : f32
    %262 = vector.broadcast %cst_117 : f32 to vector<24x1xf32>
    %263 = arith.mulf %261, %262 : vector<24x1xf32>
    %264 = vector.broadcast %263 : vector<24x1xf32> to vector<24x128xf32>
    %265 = arith.subf %257, %264 : vector<24x128xf32>
    %266 = arith.mulf %265, %265 : vector<24x128xf32>
    %cst_118 = arith.constant dense<0.000000e+00> : vector<24xf32>
    %267 = vector.multi_reduction <add>, %266, %cst_118 [1] : vector<24x128xf32> to vector<24xf32>
    %268 = vector.shape_cast %267 : vector<24xf32> to vector<24x1xf32>
    %cst_119 = arith.constant 7.812500e-03 : f32
    %269 = vector.broadcast %cst_119 : f32 to vector<24x1xf32>
    %270 = arith.mulf %268, %269 : vector<24x1xf32>
    %cst_120 = arith.constant 9.99999974E-6 : f32
    %271 = vector.broadcast %cst_120 : f32 to vector<24x1xf32>
    %272 = arith.addf %270, %271 : vector<24x1xf32>
    %273 = math.rsqrt %272 : vector<24x1xf32>
    %274 = arith.mulf %258, %273 : vector<24x1xf32>
    %275 = vector.broadcast %274 : vector<24x1xf32> to vector<24x128xf32>
    %276 = arith.mulf %265, %275 : vector<24x128xf32>
    %277 = vector.broadcast %259 : vector<24x1xf32> to vector<24x128xf32>
    %278 = arith.addf %276, %277 : vector<24x128xf32>
    %cst_121 = arith.constant 0.000000e+00 : f32
    %279 = vector.broadcast %cst_121 : f32 to vector<24x128xf32>
    %280 = arith.maximumf %278, %279 : vector<24x128xf32>
    %281 = vector.extract_strided_slice %280 {offsets = [0, 0], sizes = [8, 128], strides = [1, 1]} : vector<24x128xf32> to vector<8x128xf32>
    %282 = vector.extract_strided_slice %280 {offsets = [8, 0], sizes = [16, 128], strides = [1, 1]} : vector<24x128xf32> to vector<16x128xf32>
    %cst_122 = arith.constant dense<0x7F800000> : vector<128xf32>
    %283 = vector.multi_reduction <minimumf>, %281, %cst_122 [0] : vector<8x128xf32> to vector<128xf32>
    %284 = vector.shape_cast %283 : vector<128xf32> to vector<1x128xf32>
    %cst_123 = arith.constant dense<0xFF800000> : vector<128xf32>
    %285 = vector.multi_reduction <maximumf>, %281, %cst_123 [0] : vector<8x128xf32> to vector<128xf32>
    %286 = vector.shape_cast %285 : vector<128xf32> to vector<1x128xf32>
    %cst_124 = arith.constant 0.000000e+00 : f32
    %287 = vector.broadcast %cst_124 : f32 to vector<1x128xf32>
    %cst_125 = arith.constant 0.000000e+00 : f32
    %288 = vector.broadcast %cst_125 : f32 to vector<1x128xf32>
    %289 = vector.extract_strided_slice %1 {offsets = [0, 0], sizes = [1, 128], strides = [1, 1]} : vector<2x128xf32> to vector<1x128xf32>
    %cst_126 = arith.constant 5.000000e-01 : f32
    %290 = vector.broadcast %cst_126 : f32 to vector<1x128xf32>
    %291 = arith.cmpf ogt, %289, %290 : vector<1x128xf32>
    %cst_127 = arith.constant 0x7F800000 : f32
    %292 = vector.broadcast %cst_127 : f32 to vector<1x128xf32>
    %293 = arith.select %291, %284, %292 : vector<1x128xi1>, vector<1x128xf32>
    %cst_128 = arith.constant dense<0x7F800000> : vector<1xf32>
    %294 = vector.multi_reduction <minimumf>, %293, %cst_128 [1] : vector<1x128xf32> to vector<1xf32>
    %295 = vector.shape_cast %294 : vector<1xf32> to vector<1x1xf32>
    %cst_129 = arith.constant 5.000000e-01 : f32
    %296 = vector.broadcast %cst_129 : f32 to vector<1x128xf32>
    %297 = arith.cmpf ogt, %289, %296 : vector<1x128xf32>
    %cst_130 = arith.constant 0xFF800000 : f32
    %298 = vector.broadcast %cst_130 : f32 to vector<1x128xf32>
    %299 = arith.select %297, %286, %298 : vector<1x128xi1>, vector<1x128xf32>
    %cst_131 = arith.constant dense<0xFF800000> : vector<1xf32>
    %300 = vector.multi_reduction <maximumf>, %299, %cst_131 [1] : vector<1x128xf32> to vector<1xf32>
    %301 = vector.shape_cast %300 : vector<1xf32> to vector<1x1xf32>
    %302 = arith.subf %301, %295 : vector<1x1xf32>
    %cst_132 = arith.constant 0.000000e+00 : f32
    %303 = vector.broadcast %cst_132 : f32 to vector<1x1xf32>
    %304 = arith.cmpf ogt, %302, %303 : vector<1x1xf32>
    %cst_133 = arith.constant 1.000000e+00 : f32
    %305 = vector.broadcast %cst_133 : f32 to vector<1x1xf32>
    %306 = arith.select %304, %302, %305 : vector<1x1xi1>, vector<1x1xf32>
    %307 = vector.broadcast %295 : vector<1x1xf32> to vector<1x128xf32>
    %308 = arith.mulf %307, %289 : vector<1x128xf32>
    %309 = arith.addf %287, %308 : vector<1x128xf32>
    %cst_134 = arith.constant 1.000000e+00 : f32
    %310 = vector.broadcast %cst_134 : f32 to vector<1x1xf32>
    %311 = arith.divf %310, %306 : vector<1x1xf32>
    %312 = vector.broadcast %311 : vector<1x1xf32> to vector<1x128xf32>
    %313 = arith.mulf %312, %289 : vector<1x128xf32>
    %314 = arith.addf %288, %313 : vector<1x128xf32>
    %315 = vector.extract_strided_slice %1 {offsets = [1, 0], sizes = [1, 128], strides = [1, 1]} : vector<2x128xf32> to vector<1x128xf32>
    %cst_135 = arith.constant 5.000000e-01 : f32
    %316 = vector.broadcast %cst_135 : f32 to vector<1x128xf32>
    %317 = arith.cmpf ogt, %315, %316 : vector<1x128xf32>
    %cst_136 = arith.constant 0x7F800000 : f32
    %318 = vector.broadcast %cst_136 : f32 to vector<1x128xf32>
    %319 = arith.select %317, %284, %318 : vector<1x128xi1>, vector<1x128xf32>
    %cst_137 = arith.constant dense<0x7F800000> : vector<1xf32>
    %320 = vector.multi_reduction <minimumf>, %319, %cst_137 [1] : vector<1x128xf32> to vector<1xf32>
    %321 = vector.shape_cast %320 : vector<1xf32> to vector<1x1xf32>
    %cst_138 = arith.constant 5.000000e-01 : f32
    %322 = vector.broadcast %cst_138 : f32 to vector<1x128xf32>
    %323 = arith.cmpf ogt, %315, %322 : vector<1x128xf32>
    %cst_139 = arith.constant 0xFF800000 : f32
    %324 = vector.broadcast %cst_139 : f32 to vector<1x128xf32>
    %325 = arith.select %323, %286, %324 : vector<1x128xi1>, vector<1x128xf32>
    %cst_140 = arith.constant dense<0xFF800000> : vector<1xf32>
    %326 = vector.multi_reduction <maximumf>, %325, %cst_140 [1] : vector<1x128xf32> to vector<1xf32>
    %327 = vector.shape_cast %326 : vector<1xf32> to vector<1x1xf32>
    %328 = arith.subf %327, %321 : vector<1x1xf32>
    %cst_141 = arith.constant 0.000000e+00 : f32
    %329 = vector.broadcast %cst_141 : f32 to vector<1x1xf32>
    %330 = arith.cmpf ogt, %328, %329 : vector<1x1xf32>
    %cst_142 = arith.constant 1.000000e+00 : f32
    %331 = vector.broadcast %cst_142 : f32 to vector<1x1xf32>
    %332 = arith.select %330, %328, %331 : vector<1x1xi1>, vector<1x1xf32>
    %333 = vector.broadcast %321 : vector<1x1xf32> to vector<1x128xf32>
    %334 = arith.mulf %333, %315 : vector<1x128xf32>
    %335 = arith.addf %309, %334 : vector<1x128xf32>
    %cst_143 = arith.constant 1.000000e+00 : f32
    %336 = vector.broadcast %cst_143 : f32 to vector<1x1xf32>
    %337 = arith.divf %336, %332 : vector<1x1xf32>
    %338 = vector.broadcast %337 : vector<1x1xf32> to vector<1x128xf32>
    %339 = arith.mulf %338, %315 : vector<1x128xf32>
    %340 = arith.addf %314, %339 : vector<1x128xf32>
    %341 = vector.broadcast %335 : vector<1x128xf32> to vector<8x128xf32>
    %342 = arith.subf %281, %341 : vector<8x128xf32>
    %343 = vector.broadcast %340 : vector<1x128xf32> to vector<8x128xf32>
    %344 = arith.mulf %342, %343 : vector<8x128xf32>
    %c0_144 = arith.constant 0 : index
    %c0_145 = arith.constant 0 : index
    %345 = vector.load %arg5[%c0_144, %c0_145] : memref<13x128xf32, #tpu.memory_space<vmem>>, vector<8x128xf32>
    tpu.vector_store %arg5[%c0_144, %c0_145], %344 {strides = array<i32>} : memref<13x128xf32, #tpu.memory_space<vmem>>, vector<8x128xf32>,
    %c0_146 = arith.constant 0 : index
    %c0_147 = arith.constant 0 : index
    %c0_148 = arith.constant 0 : index
    %346 = vector.load %arg4[%c0_146, %c0_147, %c0_148] : memref<16x16x128xf32, #tpu.memory_space<vmem>>, vector<1x16x128xf32>
    %347 = vector.shape_cast %346 : vector<1x16x128xf32> to vector<16x128xf32>
    %348 = vector.extract_strided_slice %282 {offsets = [0, 0], sizes = [1, 128], strides = [1, 1]} : vector<16x128xf32> to vector<1x128xf32>
    %349 = vector.broadcast %348 : vector<1x128xf32> to vector<16x128xf32>
    %350 = arith.mulf %347, %349 : vector<16x128xf32>
    %c1_149 = arith.constant 1 : index
    %c0_150 = arith.constant 0 : index
    %c0_151 = arith.constant 0 : index
    %351 = vector.load %arg4[%c1_149, %c0_150, %c0_151] : memref<16x16x128xf32, #tpu.memory_space<vmem>>, vector<1x16x128xf32>
    %352 = vector.shape_cast %351 : vector<1x16x128xf32> to vector<16x128xf32>
    %353 = vector.extract_strided_slice %282 {offsets = [1, 0], sizes = [1, 128], strides = [1, 1]} : vector<16x128xf32> to vector<1x128xf32>
    %354 = vector.broadcast %353 : vector<1x128xf32> to vector<16x128xf32>
    %355 = arith.mulf %352, %354 : vector<16x128xf32>
    %356 = arith.addf %350, %355 : vector<16x128xf32>
    %c2_152 = arith.constant 2 : index
    %c0_153 = arith.constant 0 : index
    %c0_154 = arith.constant 0 : index
    %357 = vector.load %arg4[%c2_152, %c0_153, %c0_154] : memref<16x16x128xf32, #tpu.memory_space<vmem>>, vector<1x16x128xf32>
    %358 = vector.shape_cast %357 : vector<1x16x128xf32> to vector<16x128xf32>
    %359 = vector.extract_strided_slice %282 {offsets = [2, 0], sizes = [1, 128], strides = [1, 1]} : vector<16x128xf32> to vector<1x128xf32>
    %360 = vector.broadcast %359 : vector<1x128xf32> to vector<16x128xf32>
    %361 = arith.mulf %358, %360 : vector<16x128xf32>
    %362 = arith.addf %356, %361 : vector<16x128xf32>
    %c3_155 = arith.constant 3 : index
    %c0_156 = arith.constant 0 : index
    %c0_157 = arith.constant 0 : index
    %363 = vector.load %arg4[%c3_155, %c0_156, %c0_157] : memref<16x16x128xf32, #tpu.memory_space<vmem>>, vector<1x16x128xf32>
    %364 = vector.shape_cast %363 : vector<1x16x128xf32> to vector<16x128xf32>
    %365 = vector.extract_strided_slice %282 {offsets = [3, 0], sizes = [1, 128], strides = [1, 1]} : vector<16x128xf32> to vector<1x128xf32>
    %366 = vector.broadcast %365 : vector<1x128xf32> to vector<16x128xf32>
    %367 = arith.mulf %364, %366 : vector<16x128xf32>
    %368 = arith.addf %362, %367 : vector<16x128xf32>
    %c4_158 = arith.constant 4 : index
    %c0_159 = arith.constant 0 : index
    %c0_160 = arith.constant 0 : index
    %369 = vector.load %arg4[%c4_158, %c0_159, %c0_160] : memref<16x16x128xf32, #tpu.memory_space<vmem>>, vector<1x16x128xf32>
    %370 = vector.shape_cast %369 : vector<1x16x128xf32> to vector<16x128xf32>
    %371 = vector.extract_strided_slice %282 {offsets = [4, 0], sizes = [1, 128], strides = [1, 1]} : vector<16x128xf32> to vector<1x128xf32>
    %372 = vector.broadcast %371 : vector<1x128xf32> to vector<16x128xf32>
    %373 = arith.mulf %370, %372 : vector<16x128xf32>
    %374 = arith.addf %368, %373 : vector<16x128xf32>
    %c5_161 = arith.constant 5 : index
    %c0_162 = arith.constant 0 : index
    %c0_163 = arith.constant 0 : index
    %375 = vector.load %arg4[%c5_161, %c0_162, %c0_163] : memref<16x16x128xf32, #tpu.memory_space<vmem>>, vector<1x16x128xf32>
    %376 = vector.shape_cast %375 : vector<1x16x128xf32> to vector<16x128xf32>
    %377 = vector.extract_strided_slice %282 {offsets = [5, 0], sizes = [1, 128], strides = [1, 1]} : vector<16x128xf32> to vector<1x128xf32>
    %378 = vector.broadcast %377 : vector<1x128xf32> to vector<16x128xf32>
    %379 = arith.mulf %376, %378 : vector<16x128xf32>
    %380 = arith.addf %374, %379 : vector<16x128xf32>
    %c6_164 = arith.constant 6 : index
    %c0_165 = arith.constant 0 : index
    %c0_166 = arith.constant 0 : index
    %381 = vector.load %arg4[%c6_164, %c0_165, %c0_166] : memref<16x16x128xf32, #tpu.memory_space<vmem>>, vector<1x16x128xf32>
    %382 = vector.shape_cast %381 : vector<1x16x128xf32> to vector<16x128xf32>
    %383 = vector.extract_strided_slice %282 {offsets = [6, 0], sizes = [1, 128], strides = [1, 1]} : vector<16x128xf32> to vector<1x128xf32>
    %384 = vector.broadcast %383 : vector<1x128xf32> to vector<16x128xf32>
    %385 = arith.mulf %382, %384 : vector<16x128xf32>
    %386 = arith.addf %380, %385 : vector<16x128xf32>
    %c7_167 = arith.constant 7 : index
    %c0_168 = arith.constant 0 : index
    %c0_169 = arith.constant 0 : index
    %387 = vector.load %arg4[%c7_167, %c0_168, %c0_169] : memref<16x16x128xf32, #tpu.memory_space<vmem>>, vector<1x16x128xf32>
    %388 = vector.shape_cast %387 : vector<1x16x128xf32> to vector<16x128xf32>
    %389 = vector.extract_strided_slice %282 {offsets = [7, 0], sizes = [1, 128], strides = [1, 1]} : vector<16x128xf32> to vector<1x128xf32>
    %390 = vector.broadcast %389 : vector<1x128xf32> to vector<16x128xf32>
    %391 = arith.mulf %388, %390 : vector<16x128xf32>
    %392 = arith.addf %386, %391 : vector<16x128xf32>
    %c8_170 = arith.constant 8 : index
    %c0_171 = arith.constant 0 : index
    %c0_172 = arith.constant 0 : index
    %393 = vector.load %arg4[%c8_170, %c0_171, %c0_172] : memref<16x16x128xf32, #tpu.memory_space<vmem>>, vector<1x16x128xf32>
    %394 = vector.shape_cast %393 : vector<1x16x128xf32> to vector<16x128xf32>
    %395 = vector.extract_strided_slice %282 {offsets = [8, 0], sizes = [1, 128], strides = [1, 1]} : vector<16x128xf32> to vector<1x128xf32>
    %396 = vector.broadcast %395 : vector<1x128xf32> to vector<16x128xf32>
    %397 = arith.mulf %394, %396 : vector<16x128xf32>
    %398 = arith.addf %392, %397 : vector<16x128xf32>
    %c9 = arith.constant 9 : index
    %c0_173 = arith.constant 0 : index
    %c0_174 = arith.constant 0 : index
    %399 = vector.load %arg4[%c9, %c0_173, %c0_174] : memref<16x16x128xf32, #tpu.memory_space<vmem>>, vector<1x16x128xf32>
    %400 = vector.shape_cast %399 : vector<1x16x128xf32> to vector<16x128xf32>
    %401 = vector.extract_strided_slice %282 {offsets = [9, 0], sizes = [1, 128], strides = [1, 1]} : vector<16x128xf32> to vector<1x128xf32>
    %402 = vector.broadcast %401 : vector<1x128xf32> to vector<16x128xf32>
    %403 = arith.mulf %400, %402 : vector<16x128xf32>
    %404 = arith.addf %398, %403 : vector<16x128xf32>
    %c10 = arith.constant 10 : index
    %c0_175 = arith.constant 0 : index
    %c0_176 = arith.constant 0 : index
    %405 = vector.load %arg4[%c10, %c0_175, %c0_176] : memref<16x16x128xf32, #tpu.memory_space<vmem>>, vector<1x16x128xf32>
    %406 = vector.shape_cast %405 : vector<1x16x128xf32> to vector<16x128xf32>
    %407 = vector.extract_strided_slice %282 {offsets = [10, 0], sizes = [1, 128], strides = [1, 1]} : vector<16x128xf32> to vector<1x128xf32>
    %408 = vector.broadcast %407 : vector<1x128xf32> to vector<16x128xf32>
    %409 = arith.mulf %406, %408 : vector<16x128xf32>
    %410 = arith.addf %404, %409 : vector<16x128xf32>
    %c11 = arith.constant 11 : index
    %c0_177 = arith.constant 0 : index
    %c0_178 = arith.constant 0 : index
    %411 = vector.load %arg4[%c11, %c0_177, %c0_178] : memref<16x16x128xf32, #tpu.memory_space<vmem>>, vector<1x16x128xf32>
    %412 = vector.shape_cast %411 : vector<1x16x128xf32> to vector<16x128xf32>
    %413 = vector.extract_strided_slice %282 {offsets = [11, 0], sizes = [1, 128], strides = [1, 1]} : vector<16x128xf32> to vector<1x128xf32>
    %414 = vector.broadcast %413 : vector<1x128xf32> to vector<16x128xf32>
    %415 = arith.mulf %412, %414 : vector<16x128xf32>
    %416 = arith.addf %410, %415 : vector<16x128xf32>
    %c12_179 = arith.constant 12 : index
    %c0_180 = arith.constant 0 : index
    %c0_181 = arith.constant 0 : index
    %417 = vector.load %arg4[%c12_179, %c0_180, %c0_181] : memref<16x16x128xf32, #tpu.memory_space<vmem>>, vector<1x16x128xf32>
    %418 = vector.shape_cast %417 : vector<1x16x128xf32> to vector<16x128xf32>
    %419 = vector.extract_strided_slice %282 {offsets = [12, 0], sizes = [1, 128], strides = [1, 1]} : vector<16x128xf32> to vector<1x128xf32>
    %420 = vector.broadcast %419 : vector<1x128xf32> to vector<16x128xf32>
    %421 = arith.mulf %418, %420 : vector<16x128xf32>
    %422 = arith.addf %416, %421 : vector<16x128xf32>
    %c13 = arith.constant 13 : index
    %c0_182 = arith.constant 0 : index
    %c0_183 = arith.constant 0 : index
    %423 = vector.load %arg4[%c13, %c0_182, %c0_183] : memref<16x16x128xf32, #tpu.memory_space<vmem>>, vector<1x16x128xf32>
    %424 = vector.shape_cast %423 : vector<1x16x128xf32> to vector<16x128xf32>
    %425 = vector.extract_strided_slice %282 {offsets = [13, 0], sizes = [1, 128], strides = [1, 1]} : vector<16x128xf32> to vector<1x128xf32>
    %426 = vector.broadcast %425 : vector<1x128xf32> to vector<16x128xf32>
    %427 = arith.mulf %424, %426 : vector<16x128xf32>
    %428 = arith.addf %422, %427 : vector<16x128xf32>
    %c14 = arith.constant 14 : index
    %c0_184 = arith.constant 0 : index
    %c0_185 = arith.constant 0 : index
    %429 = vector.load %arg4[%c14, %c0_184, %c0_185] : memref<16x16x128xf32, #tpu.memory_space<vmem>>, vector<1x16x128xf32>
    %430 = vector.shape_cast %429 : vector<1x16x128xf32> to vector<16x128xf32>
    %431 = vector.extract_strided_slice %282 {offsets = [14, 0], sizes = [1, 128], strides = [1, 1]} : vector<16x128xf32> to vector<1x128xf32>
    %432 = vector.broadcast %431 : vector<1x128xf32> to vector<16x128xf32>
    %433 = arith.mulf %430, %432 : vector<16x128xf32>
    %434 = arith.addf %428, %433 : vector<16x128xf32>
    %c15 = arith.constant 15 : index
    %c0_186 = arith.constant 0 : index
    %c0_187 = arith.constant 0 : index
    %435 = vector.load %arg4[%c15, %c0_186, %c0_187] : memref<16x16x128xf32, #tpu.memory_space<vmem>>, vector<1x16x128xf32>
    %436 = vector.shape_cast %435 : vector<1x16x128xf32> to vector<16x128xf32>
    %437 = vector.extract_strided_slice %282 {offsets = [15, 0], sizes = [1, 128], strides = [1, 1]} : vector<16x128xf32> to vector<1x128xf32>
    %438 = vector.broadcast %437 : vector<1x128xf32> to vector<16x128xf32>
    %439 = arith.mulf %436, %438 : vector<16x128xf32>
    %440 = arith.addf %434, %439 : vector<16x128xf32>
    %cst_188 = arith.constant dense<0.000000e+00> : vector<16x2xf32>
    %441 = tpu.matmul %440, %1, %cst_188 {dimension_numbers = #tpu.dot_dimension_numbers<[1], [1], [0], [0], [0, 0, 1, 0], [], []>} : vector<16x128xf32>, vector<2x128xf32>, vector<16x2xf32> -> vector<16x2xf32>
    %c0_189 = arith.constant 0 : index
    %c8_190 = arith.constant 8 : index
    %442 = vector.load %arg3[%c0_189, %c8_190] : memref<24x12xf32, #tpu.memory_space<vmem>>, vector<16x1xf32>
    %443 = vector.broadcast %442 : vector<16x1xf32> to vector<16x2xf32>
    %444 = arith.addf %441, %443 : vector<16x2xf32>
    %cst_191 = arith.constant 0.000000e+00 : f32
    %445 = vector.broadcast %cst_191 : f32 to vector<16x2xf32>
    %446 = arith.maximumf %444, %445 : vector<16x2xf32>
    %c0_192 = arith.constant 0 : index
    %c9_193 = arith.constant 9 : index
    %447 = vector.load %arg3[%c0_192, %c9_193] : memref<24x12xf32, #tpu.memory_space<vmem>>, vector<16x1xf32>
    %c0_194 = arith.constant 0 : index
    %c10_195 = arith.constant 10 : index
    %448 = vector.load %arg3[%c0_194, %c10_195] : memref<24x12xf32, #tpu.memory_space<vmem>>, vector<16x1xf32>
    %cst_196 = arith.constant dense<0.000000e+00> : vector<16xf32>
    %449 = vector.multi_reduction <add>, %446, %cst_196 [1] : vector<16x2xf32> to vector<16xf32>
    %450 = vector.shape_cast %449 : vector<16xf32> to vector<16x1xf32>
    %cst_197 = arith.constant 5.000000e-01 : f32
    %451 = vector.broadcast %cst_197 : f32 to vector<16x1xf32>
    %452 = arith.mulf %450, %451 : vector<16x1xf32>
    %453 = vector.broadcast %452 : vector<16x1xf32> to vector<16x2xf32>
    %454 = arith.subf %446, %453 : vector<16x2xf32>
    %455 = arith.mulf %454, %454 : vector<16x2xf32>
    %cst_198 = arith.constant dense<0.000000e+00> : vector<16xf32>
    %456 = vector.multi_reduction <add>, %455, %cst_198 [1] : vector<16x2xf32> to vector<16xf32>
    %457 = vector.shape_cast %456 : vector<16xf32> to vector<16x1xf32>
    %cst_199 = arith.constant 5.000000e-01 : f32
    %458 = vector.broadcast %cst_199 : f32 to vector<16x1xf32>
    %459 = arith.mulf %457, %458 : vector<16x1xf32>
    %cst_200 = arith.constant 9.99999974E-6 : f32
    %460 = vector.broadcast %cst_200 : f32 to vector<16x1xf32>
    %461 = arith.addf %459, %460 : vector<16x1xf32>
    %462 = math.rsqrt %461 : vector<16x1xf32>
    %463 = arith.mulf %447, %462 : vector<16x1xf32>
    %464 = vector.broadcast %463 : vector<16x1xf32> to vector<16x2xf32>
    %465 = arith.mulf %454, %464 : vector<16x2xf32>
    %466 = vector.broadcast %448 : vector<16x1xf32> to vector<16x2xf32>
    %467 = arith.addf %465, %466 : vector<16x2xf32>
    %c72 = arith.constant 72 : index
    %c0_201 = arith.constant 0 : index
    %468 = vector.load %arg2[%c72, %c0_201] : memref<77x144xf32, #tpu.memory_space<vmem>>, vector<5x16xf32>
    %cst_202 = arith.constant dense<0.000000e+00> : vector<5x2xf32>
    %469 = tpu.matmul %468, %467, %cst_202 {dimension_numbers = #tpu.dot_dimension_numbers<[1], [0], [0], [1], [0, 0, 1, 1], [], []>} : vector<5x16xf32>, vector<16x2xf32>, vector<5x2xf32> -> vector<5x2xf32>
    %c0_203 = arith.constant 0 : index
    %c11_204 = arith.constant 11 : index
    %470 = vector.load %arg3[%c0_203, %c11_204] : memref<24x12xf32, #tpu.memory_space<vmem>>, vector<5x1xf32>
    %471 = vector.broadcast %470 : vector<5x1xf32> to vector<5x2xf32>
    %472 = arith.addf %469, %471 : vector<5x2xf32>
    %cst_205 = arith.constant dense<0xFF800000> : vector<2xf32>
    %473 = vector.multi_reduction <maximumf>, %472, %cst_205 [0] : vector<5x2xf32> to vector<2xf32>
    %474 = vector.shape_cast %473 : vector<2xf32> to vector<1x2xf32>
    %475 = vector.broadcast %474 : vector<1x2xf32> to vector<5x2xf32>
    %476 = arith.subf %472, %475 : vector<5x2xf32>
    %477 = math.exp %476 : vector<5x2xf32>
    %cst_206 = arith.constant dense<0.000000e+00> : vector<2xf32>
    %478 = vector.multi_reduction <add>, %477, %cst_206 [0] : vector<5x2xf32> to vector<2xf32>
    %479 = vector.shape_cast %478 : vector<2xf32> to vector<1x2xf32>
    %480 = math.log %479 : vector<1x2xf32>
    %481 = vector.broadcast %480 : vector<1x2xf32> to vector<5x2xf32>
    %482 = arith.subf %476, %481 : vector<5x2xf32>
    %c8_207 = arith.constant 8 : index
    %c0_208 = arith.constant 0 : index
    %483 = vector.load %arg5[%c8_207, %c0_208] : memref<13x128xf32, #tpu.memory_space<vmem>>, vector<5x2xf32>
    tpu.vector_store %arg5[%c8_207, %c0_208], %482 {strides = array<i32>} : memref<13x128xf32, #tpu.memory_space<vmem>>, vector<5x2xf32>,
    return
  }
}

</mosaic_0001>

<llo_original>
// kernel: forward.1
$region0: #{forward.1}
  #allocation0 [shape = 'u32[]', space=smem, size = 0x4, offset = 0x4, fixed_abs, tag = 'smem constant byte address 0x4 - core index']
  #allocation1 [shape = 'u32[144,128]{1,0:T(1,128)}', space=vmem, size = 0x12000, scoped, tag = 'internal scratch']
  %s0 = inlined_call_operand.vmem [shape: f32[4,128], index: 0, kind: input, shape index: {}]
  %s1 = inlined_call_operand.vmem [shape: f32[11,128], index: 1, kind: input, shape index: {}]
  %s2 = inlined_call_operand.vmem [shape: f32[77,144], index: 2, kind: input, shape index: {}]
  %s3 = inlined_call_operand.vmem [shape: f32[24,12], index: 3, kind: input, shape index: {}]
  %s4 = inlined_call_operand.vmem [shape: f32[16,16,128], index: 4, kind: input, shape index: {}]
  %s5 = inlined_call_operand.vmem [shape: f32[13,128], index: 5, kind: output, shape index: {}]
  %s6 = sld [smem:[#allocation0]]
  $region30: #{forward.1} parent=0
    _
  %s8 = ssub.s32 1, %s6
  %s9 = scalar_select 0, %s8, %s6
  // Predicated region
  $region2: #{forward.1} parent=0 // pred_check
    _
  $region3: #{forward.1} parent=0 // pred_check_branch
    %11 = sbr.rel (0) target = $region5
  $region4: #{forward.1} parent=0 // pred_region
    _
  $region5: #{forward.1} parent=0 // pred_fallthru
    _
  // Predicated region
  $region6: #{forward.1} parent=0 // pred_check
    _
  $region7: #{forward.1} parent=0 // pred_check_branch
    %13 = sbr.rel (0) target = $region9
  $region8: #{forward.1} parent=0 // pred_region
    _
  $region9: #{forward.1} parent=0 // pred_fallthru
    _
  // Predicated region
  $region10: #{forward.1} parent=0 // pred_check
    _
  $region11: #{forward.1} parent=0 // pred_check_branch
    %15 = sbr.rel (0) target = $region13
  $region12: #{forward.1} parent=0 // pred_region
    _
  $region13: #{forward.1} parent=0 // pred_fallthru
    _
  // Predicated region
  $region14: #{forward.1} parent=0 // pred_check
    _
  $region15: #{forward.1} parent=0 // pred_check_branch
    %17 = sbr.rel (0) target = $region17
  $region16: #{forward.1} parent=0 // pred_region
    _
  $region17: #{forward.1} parent=0 // pred_fallthru
    _
  // Predicated region
  $region18: #{forward.1} parent=0 // pred_check
    _
  $region19: #{forward.1} parent=0 // pred_check_branch
    %19 = sbr.rel (0) target = $region21
  $region20: #{forward.1} parent=0 // pred_region
    _
  $region21: #{forward.1} parent=0 // pred_fallthru
    _
  %v20 = vld [vmem:[%s1] sm:$0xff]
  %v21 = vld [vmem:[%s1 + $0x8] sm:$0x7]
  %v22 = vld [vmem:[%s0] sm:$0xf]
  %23 = vrot.lane.b32.xlu0 %v22, 9
  %v24 = vpop.permute.xlu0 %23
  %v25 = vlaneseq
  %v26 = vshrl.u32 %v25, 7
  %v27 = vsub.s32 2, %v26
  %v28 = vrot.slane %v20, %v27
  %v29 = vmul.f32 %v24, %v28
  %v30 = vld [vmem:[%s2] sm:$0xff]
  %v31 = vld [vmem:[%s2 + $0x10] sm:$0xff]
  %32 = vrot.lane.b32.xlu0 %v22, 8
  %v33 = vpop.permute.xlu0 %32
  %v34 = vlaneseq
  %v35 = vshrl.u32 %v34, 7
  %v36 = vsub.s32 3, %v35
  %v37 = vrot.slane %v20, %v36
  %v38 = vmul.f32 %v33, %v37
  %41 = vrot.lane.b32.xlu0 %v30, 124
  %v42 = vpop.permute.xlu0 %41
  %43 = vrot.lane.b32.xlu0 %v31, 124
  %v44 = vpop.permute.xlu0 %43
  %vm45 = vcmask 31744
  %v46 = vsel %vm45, %v42, 0
  %v48 = vsel %vm45, %v44, 0
  %vm50 = vcmask 1043456
  %v52 = vsel %vm50, %v38, 0
  %54 = vmatprep.subr.mxu0 0.0
  %55 = vmatpush1.msra.mxu0 %v52
  %56 = vmatprep.subr.mxu0 0.0
  %57 = vmatpush1.msra.mxu0 0.0
  %58 = vmatprep.subr.mxu0 0.0
  %59 = vmatpush1.msra.mxu0 0.0
  %60 = vmatprep.subr.mxu0 0.0
  %61 = vmatpush1.msra.mxu0 0.0
  %62 = vmatprep.subr.mxu0 0.0
  %63 = vmatpush1.msra.mxu0 0.0
  %64 = vmatprep.subr.mxu0 0.0
  %65 = vmatpush1.msra.mxu0 0.0
  %66 = vmatprep.subr.mxu0 0.0
  %67 = vmatpush1.msra.mxu0 0.0
  %68 = vmatprep.subr.mxu0 0.0
  %69 = vmatpush1.msra.mxu0 0.0
  %70 = vmatprep.subr.mxu0 0.0
  %71 = vmatpush1.msra.mxu0 0.0
  %72 = vmatprep.subr.mxu0 0.0
  %73 = vmatpush1.msra.mxu0 0.0
  %74 = vmatprep.subr.mxu0 0.0
  %75 = vmatpush1.msra.mxu0 0.0
  %76 = vmatprep.subr.mxu0 0.0
  %77 = vmatpush1.msra.mxu0 0.0
  %78 = vmatprep.subr.mxu0 0.0
  %79 = vmatpush1.msra.mxu0 0.0
  %80 = vmatprep.subr.mxu0 0.0
  %81 = vmatpush1.msra.mxu0 0.0
  %82 = vmatprep.subr.mxu0 0.0
  %83 = vmatpush1.msra.mxu0 0.0
  %84 = vmatprep.subr.mxu0 0.0
  %85 = vmatpush1.msra.mxu0 0.0
  %86 = vmatprep.subr.mxu0 0.0
  %87 = vmatpush1.msra.mxu0 0.0
  %88 = vmatprep.subr.mxu0 0.0
  %89 = vmatpush1.msra.mxu0 0.0
  %90 = vmatprep.subr.mxu0 0.0
  %91 = vmatpush1.msra.mxu0 0.0
  %92 = vmatprep.subr.mxu0 0.0
  %93 = vmatpush1.msra.mxu0 0.0
  %94 = vmatprep.subr.mxu0 0.0
  %95 = vmatpush1.msra.mxu0 0.0
  %96 = vmatprep.subr.mxu0 0.0
  %97 = vmatpush1.msra.mxu0 0.0
  %98 = vmatprep.subr.mxu0 0.0
  %99 = vmatpush1.msra.mxu0 0.0
  %100 = vmatprep.subr.mxu0 0.0
  %101 = vmatpush1.msra.mxu0 0.0
  %102 = vmatprep.subr.mxu0 0.0
  %103 = vmatpush1.msra.mxu0 0.0
  %104 = vmatprep.subr.mxu0 0.0
  %105 = vmatpush1.msra.mxu0 0.0
  %106 = vmatprep.subr.mxu0 0.0
  %107 = vmatpush1.msra.mxu0 0.0
  %108 = vmatprep.subr.mxu0 0.0
  %109 = vmatpush1.msra.mxu0 0.0
  %110 = vmatprep.subr.mxu0 0.0
  %111 = vmatpush1.msra.mxu0 0.0
  %112 = vmatprep.subr.mxu0 0.0
  %113 = vmatpush1.msra.mxu0 0.0
  %114 = vmatprep.subr.mxu0 0.0
  %115 = vmatpush1.msra.mxu0 0.0
  %116 = vmatprep.subr.mxu0 0.0
  %117 = vmatpush1.msra.mxu0 0.0
  %118 = vmatprep.mubr.f32.mxu0 0.0
  %119 = vmatmul.mubr.f32.gmra.mrb[0].mxu0 %v46
  %v120 = vpop.f32.mrb[0].mxu0
  %v121 = vadd.f32 0.0, %v120
  %v122 = vpop.f32.mrb[0].mxu0
  %123 = vmatprep.mubr.f32.mxu0 0.0
  %124 = vmatmul.mubr.f32.gmra.mrb[0].mxu0 %v48
  %v125 = vpop.f32.mrb[0].mxu0
  %v126 = vadd.f32 0.0, %v125
  %v127 = vpop.f32.mrb[0].mxu0
  %128 = vdwg.mxu0
  %v129 = vsel %vm45, %v30, 0
  %v131 = vsel %vm45, %v31, 0
  %v134 = vsel %vm50, %v29, 0
  %136 = vmatprep.subr.mxu0 0.0
  %137 = vmatpush1.msra.mxu0 %v134
  %138 = vmatprep.subr.mxu0 0.0
  %139 = vmatpush1.msra.mxu0 0.0
  %140 = vmatprep.subr.mxu0 0.0
  %141 = vmatpush1.msra.mxu0 0.0
  %142 = vmatprep.subr.mxu0 0.0
  %143 = vmatpush1.msra.mxu0 0.0
  %144 = vmatprep.subr.mxu0 0.0
  %145 = vmatpush1.msra.mxu0 0.0
  %146 = vmatprep.subr.mxu0 0.0
  %147 = vmatpush1.msra.mxu0 0.0
  %148 = vmatprep.subr.mxu0 0.0
  %149 = vmatpush1.msra.mxu0 0.0
  %150 = vmatprep.subr.mxu0 0.0
  %151 = vmatpush1.msra.mxu0 0.0
  %152 = vmatprep.subr.mxu0 0.0
  %153 = vmatpush1.msra.mxu0 0.0
  %154 = vmatprep.subr.mxu0 0.0
  %155 = vmatpush1.msra.mxu0 0.0
  %156 = vmatprep.subr.mxu0 0.0
  %157 = vmatpush1.msra.mxu0 0.0
  %158 = vmatprep.subr.mxu0 0.0
  %159 = vmatpush1.msra.mxu0 0.0
  %160 = vmatprep.subr.mxu0 0.0
  %161 = vmatpush1.msra.mxu0 0.0
  %162 = vmatprep.subr.mxu0 0.0
  %163 = vmatpush1.msra.mxu0 0.0
  %164 = vmatprep.subr.mxu0 0.0
  %165 = vmatpush1.msra.mxu0 0.0
  %166 = vmatprep.subr.mxu0 0.0
  %167 = vmatpush1.msra.mxu0 0.0
  %168 = vmatprep.subr.mxu0 0.0
  %169 = vmatpush1.msra.mxu0 0.0
  %170 = vmatprep.subr.mxu0 0.0
  %171 = vmatpush1.msra.mxu0 0.0
  %172 = vmatprep.subr.mxu0 0.0
  %173 = vmatpush1.msra.mxu0 0.0
  %174 = vmatprep.subr.mxu0 0.0
  %175 = vmatpush1.msra.mxu0 0.0
  %176 = vmatprep.subr.mxu0 0.0
  %177 = vmatpush1.msra.mxu0 0.0
  %178 = vmatprep.subr.mxu0 0.0
  %179 = vmatpush1.msra.mxu0 0.0
  %180 = vmatprep.subr.mxu0 0.0
  %181 = vmatpush1.msra.mxu0 0.0
  %182 = vmatprep.subr.mxu0 0.0
  %183 = vmatpush1.msra.mxu0 0.0
  %184 = vmatprep.subr.mxu0 0.0
  %185 = vmatpush1.msra.mxu0 0.0
  %186 = vmatprep.subr.mxu0 0.0
  %187 = vmatpush1.msra.mxu0 0.0
  %188 = vmatprep.subr.mxu0 0.0
  %189 = vmatpush1.msra.mxu0 0.0
  %190 = vmatprep.subr.mxu0 0.0
  %191 = vmatpush1.msra.mxu0 0.0
  %192 = vmatprep.subr.mxu0 0.0
  %193 = vmatpush1.msra.mxu0 0.0
  %194 = vmatprep.subr.mxu0 0.0
  %195 = vmatpush1.msra.mxu0 0.0
  %196 = vmatprep.subr.mxu0 0.0
  %197 = vmatpush1.msra.mxu0 0.0
  %198 = vmatprep.subr.mxu0 0.0
  %199 = vmatpush1.msra.mxu0 0.0
  %200 = vmatprep.mubr.f32.mxu0 0.0
  %201 = vmatmul.mubr.f32.gmra.mrb[0].mxu0 %v129
  %v202 = vpop.f32.mrb[0].mxu0
  %v203 = vadd.f32 %v121, %v202
  %v204 = vpop.f32.mrb[0].mxu0
  %205 = vmatprep.mubr.f32.mxu0 0.0
  %206 = vmatmul.mubr.f32.gmra.mrb[0].mxu0 %v131
  %v207 = vpop.f32.mrb[0].mxu0
  %v208 = vadd.f32 %v126, %v207
  %v209 = vpop.f32.mrb[0].mxu0
  %210 = vdwg.mxu0
  %211 = vrot.lane.b32.xlu0 %v22, 7
  %v212 = vpop.permute.xlu0 %211
  %v213 = vlaneseq
  %v214 = vshrl.u32 %v213, 7
  %v215 = vsub.s32 4, %v214
  %v216 = vrot.slane %v20, %v215
  %v217 = vmul.f32 %v212, %v216
  %218 = vrot.lane.b32.xlu0 %v30, 120
  %v219 = vpop.permute.xlu0 %218
  %220 = vrot.lane.b32.xlu0 %v31, 120
  %v221 = vpop.permute.xlu0 %220
  %v222 = vsel %vm45, %v219, 0
  %v224 = vsel %vm45, %v221, 0
  %v227 = vsel %vm50, %v217, 0
  %229 = vmatprep.subr.mxu0 0.0
  %230 = vmatpush1.msra.mxu0 %v227
  %231 = vmatprep.subr.mxu0 0.0
  %232 = vmatpush1.msra.mxu0 0.0
  %233 = vmatprep.subr.mxu0 0.0
  %234 = vmatpush1.msra.mxu0 0.0
  %235 = vmatprep.subr.mxu0 0.0
  %236 = vmatpush1.msra.mxu0 0.0
  %237 = vmatprep.subr.mxu0 0.0
  %238 = vmatpush1.msra.mxu0 0.0
  %239 = vmatprep.subr.mxu0 0.0
  %240 = vmatpush1.msra.mxu0 0.0
  %241 = vmatprep.subr.mxu0 0.0
  %242 = vmatpush1.msra.mxu0 0.0
  %243 = vmatprep.subr.mxu0 0.0
  %244 = vmatpush1.msra.mxu0 0.0
  %245 = vmatprep.subr.mxu0 0.0
  %246 = vmatpush1.msra.mxu0 0.0
  %247 = vmatprep.subr.mxu0 0.0
  %248 = vmatpush1.msra.mxu0 0.0
  %249 = vmatprep.subr.mxu0 0.0
  %250 = vmatpush1.msra.mxu0 0.0
  %251 = vmatprep.subr.mxu0 0.0
  %252 = vmatpush1.msra.mxu0 0.0
  %253 = vmatprep.subr.mxu0 0.0
  %254 = vmatpush1.msra.mxu0 0.0
  %255 = vmatprep.subr.mxu0 0.0
  %256 = vmatpush1.msra.mxu0 0.0
  %257 = vmatprep.subr.mxu0 0.0
  %258 = vmatpush1.msra.mxu0 0.0
  %259 = vmatprep.subr.mxu0 0.0
  %260 = vmatpush1.msra.mxu0 0.0
  %261 = vmatprep.subr.mxu0 0.0
  %262 = vmatpush1.msra.mxu0 0.0
  %263 = vmatprep.subr.mxu0 0.0
  %264 = vmatpush1.msra.mxu0 0.0
  %265 = vmatprep.subr.mxu0 0.0
  %266 = vmatpush1.msra.mxu0 0.0
  %267 = vmatprep.subr.mxu0 0.0
  %268 = vmatpush1.msra.mxu0 0.0
  %269 = vmatprep.subr.mxu0 0.0
  %270 = vmatpush1.msra.mxu0 0.0
  %271 = vmatprep.subr.mxu0 0.0
  %272 = vmatpush1.msra.mxu0 0.0
  %273 = vmatprep.subr.mxu0 0.0
  %274 = vmatpush1.msra.mxu0 0.0
  %275 = vmatprep.subr.mxu0 0.0
  %276 = vmatpush1.msra.mxu0 0.0
  %277 = vmatprep.subr.mxu0 0.0
  %278 = vmatpush1.msra.mxu0 0.0
  %279 = vmatprep.subr.mxu0 0.0
  %280 = vmatpush1.msra.mxu0 0.0
  %281 = vmatprep.subr.mxu0 0.0
  %282 = vmatpush1.msra.mxu0 0.0
  %283 = vmatprep.subr.mxu0 0.0
  %284 = vmatpush1.msra.mxu0 0.0
  %285 = vmatprep.subr.mxu0 0.0
  %286 = vmatpush1.msra.mxu0 0.0
  %287 = vmatprep.subr.mxu0 0.0
  %288 = vmatpush1.msra.mxu0 0.0
  %289 = vmatprep.subr.mxu0 0.0
  %290 = vmatpush1.msra.mxu0 0.0
  %291 = vmatprep.subr.mxu0 0.0
  %292 = vmatpush1.msra.mxu0 0.0
  %293 = vmatprep.mubr.f32.mxu0 0.0
  %294 = vmatmul.mubr.f32.gmra.mrb[0].mxu0 %v222
  %v295 = vpop.f32.mrb[0].mxu0
  %v296 = vadd.f32 0.0, %v295
  %v297 = vpop.f32.mrb[0].mxu0
  %298 = vmatprep.mubr.f32.mxu0 0.0
  %299 = vmatmul.mubr.f32.gmra.mrb[0].mxu0 %v224
  %v300 = vpop.f32.mrb[0].mxu0
  %v301 = vadd.f32 0.0, %v300
  %v302 = vpop.f32.mrb[0].mxu0
  %303 = vdwg.mxu0
  %v304 = vadd.f32 %v203, %v296
  %v305 = vadd.f32 %v208, %v301
  %306 = vrot.lane.b32.xlu0 %v22, 1
  %v307 = vpop.permute.xlu0 %306
  %v308 = vlaneseq
  %v309 = vshrl.u32 %v308, 7
  %v310 = vsub.s32 5, %v309
  %v311 = vrot.slane %v20, %v310
  %v312 = vmul.f32 %v307, %v311
  %313 = vrot.lane.b32.xlu0 %v30, 116
  %v314 = vpop.permute.xlu0 %313
  %315 = vrot.lane.b32.xlu0 %v31, 116
  %v316 = vpop.permute.xlu0 %315
  %v317 = vsel %vm45, %v314, 0
  %v319 = vsel %vm45, %v316, 0
  %v322 = vsel %vm50, %v312, 0
  %324 = vmatprep.subr.mxu0 0.0
  %325 = vmatpush1.msra.mxu0 %v322
  %326 = vmatprep.subr.mxu0 0.0
  %327 = vmatpush1.msra.mxu0 0.0
  %328 = vmatprep.subr.mxu0 0.0
  %329 = vmatpush1.msra.mxu0 0.0
  %330 = vmatprep.subr.mxu0 0.0
  %331 = vmatpush1.msra.mxu0 0.0
  %332 = vmatprep.subr.mxu0 0.0
  %333 = vmatpush1.msra.mxu0 0.0
  %334 = vmatprep.subr.mxu0 0.0
  %335 = vmatpush1.msra.mxu0 0.0
  %336 = vmatprep.subr.mxu0 0.0
  %337 = vmatpush1.msra.mxu0 0.0
  %338 = vmatprep.subr.mxu0 0.0
  %339 = vmatpush1.msra.mxu0 0.0
  %340 = vmatprep.subr.mxu0 0.0
  %341 = vmatpush1.msra.mxu0 0.0
  %342 = vmatprep.subr.mxu0 0.0
  %343 = vmatpush1.msra.mxu0 0.0
  %344 = vmatprep.subr.mxu0 0.0
  %345 = vmatpush1.msra.mxu0 0.0
  %346 = vmatprep.subr.mxu0 0.0
  %347 = vmatpush1.msra.mxu0 0.0
  %348 = vmatprep.subr.mxu0 0.0
  %349 = vmatpush1.msra.mxu0 0.0
  %350 = vmatprep.subr.mxu0 0.0
  %351 = vmatpush1.msra.mxu0 0.0
  %352 = vmatprep.subr.mxu0 0.0
  %353 = vmatpush1.msra.mxu0 0.0
  %354 = vmatprep.subr.mxu0 0.0
  %355 = vmatpush1.msra.mxu0 0.0
  %356 = vmatprep.subr.mxu0 0.0
  %357 = vmatpush1.msra.mxu0 0.0
  %358 = vmatprep.subr.mxu0 0.0
  %359 = vmatpush1.msra.mxu0 0.0
  %360 = vmatprep.subr.mxu0 0.0
  %361 = vmatpush1.msra.mxu0 0.0
  %362 = vmatprep.subr.mxu0 0.0
  %363 = vmatpush1.msra.mxu0 0.0
  %364 = vmatprep.subr.mxu0 0.0
  %365 = vmatpush1.msra.mxu0 0.0
  %366 = vmatprep.subr.mxu0 0.0
  %367 = vmatpush1.msra.mxu0 0.0
  %368 = vmatprep.subr.mxu0 0.0
  %369 = vmatpush1.msra.mxu0 0.0
  %370 = vmatprep.subr.mxu0 0.0
  %371 = vmatpush1.msra.mxu0 0.0
  %372 = vmatprep.subr.mxu0 0.0
  %373 = vmatpush1.msra.mxu0 0.0
  %374 = vmatprep.subr.mxu0 0.0
  %375 = vmatpush1.msra.mxu0 0.0
  %376 = vmatprep.subr.mxu0 0.0
  %377 = vmatpush1.msra.mxu0 0.0
  %378 = vmatprep.subr.mxu0 0.0
  %379 = vmatpush1.msra.mxu0 0.0
  %380 = vmatprep.subr.mxu0 0.0
  %381 = vmatpush1.msra.mxu0 0.0
  %382 = vmatprep.subr.mxu0 0.0
  %383 = vmatpush1.msra.mxu0 0.0
  %384 = vmatprep.subr.mxu0 0.0
  %385 = vmatpush1.msra.mxu0 0.0
  %386 = vmatprep.subr.mxu0 0.0
  %387 = vmatpush1.msra.mxu0 0.0
  %388 = vmatprep.mubr.f32.mxu0 0.0
  %389 = vmatmul.mubr.f32.gmra.mrb[0].mxu0 %v317
  %v390 = vpop.f32.mrb[0].mxu0
  %v391 = vadd.f32 0.0, %v390
  %v392 = vpop.f32.mrb[0].mxu0
  %393 = vmatprep.mubr.f32.mxu0 0.0
  %394 = vmatmul.mubr.f32.gmra.mrb[0].mxu0 %v319
  %v395 = vpop.f32.mrb[0].mxu0
  %v396 = vadd.f32 0.0, %v395
  %v397 = vpop.f32.mrb[0].mxu0
  %398 = vdwg.mxu0
  %v399 = vadd.f32 %v304, %v391
  %v400 = vadd.f32 %v305, %v396
  %v401 = vlaneseq
  %v402 = vshrl.u32 %v401, 7
  %v403 = vsub.s32 6, %v402
  %v404 = vrot.slane %v20, %v403
  %v405 = vmul.f32 %v22, %v404
  %406 = vrot.lane.b32.xlu0 %v30, 112
  %v407 = vpop.permute.xlu0 %406
  %408 = vrot.lane.b32.xlu0 %v31, 112
  %v409 = vpop.permute.xlu0 %408
  %v410 = vsel %vm45, %v407, 0
  %v412 = vsel %vm45, %v409, 0
  %v415 = vsel %vm50, %v405, 0
  %417 = vmatprep.subr.mxu0 0.0
  %418 = vmatpush1.msra.mxu0 %v415
  %419 = vmatprep.subr.mxu0 0.0
  %420 = vmatpush1.msra.mxu0 0.0
  %421 = vmatprep.subr.mxu0 0.0
  %422 = vmatpush1.msra.mxu0 0.0
  %423 = vmatprep.subr.mxu0 0.0
  %424 = vmatpush1.msra.mxu0 0.0
  %425 = vmatprep.subr.mxu0 0.0
  %426 = vmatpush1.msra.mxu0 0.0
  %427 = vmatprep.subr.mxu0 0.0
  %428 = vmatpush1.msra.mxu0 0.0
  %429 = vmatprep.subr.mxu0 0.0
  %430 = vmatpush1.msra.mxu0 0.0
  %431 = vmatprep.subr.mxu0 0.0
  %432 = vmatpush1.msra.mxu0 0.0
  %433 = vmatprep.subr.mxu0 0.0
  %434 = vmatpush1.msra.mxu0 0.0
  %435 = vmatprep.subr.mxu0 0.0
  %436 = vmatpush1.msra.mxu0 0.0
  %437 = vmatprep.subr.mxu0 0.0
  %438 = vmatpush1.msra.mxu0 0.0
  %439 = vmatprep.subr.mxu0 0.0
  %440 = vmatpush1.msra.mxu0 0.0
  %441 = vmatprep.subr.mxu0 0.0
  %442 = vmatpush1.msra.mxu0 0.0
  %443 = vmatprep.subr.mxu0 0.0
  %444 = vmatpush1.msra.mxu0 0.0
  %445 = vmatprep.subr.mxu0 0.0
  %446 = vmatpush1.msra.mxu0 0.0
  %447 = vmatprep.subr.mxu0 0.0
  %448 = vmatpush1.msra.mxu0 0.0
  %449 = vmatprep.subr.mxu0 0.0
  %450 = vmatpush1.msra.mxu0 0.0
  %451 = vmatprep.subr.mxu0 0.0
  %452 = vmatpush1.msra.mxu0 0.0
  %453 = vmatprep.subr.mxu0 0.0
  %454 = vmatpush1.msra.mxu0 0.0
  %455 = vmatprep.subr.mxu0 0.0
  %456 = vmatpush1.msra.mxu0 0.0
  %457 = vmatprep.subr.mxu0 0.0
  %458 = vmatpush1.msra.mxu0 0.0
  %459 = vmatprep.subr.mxu0 0.0
  %460 = vmatpush1.msra.mxu0 0.0
  %461 = vmatprep.subr.mxu0 0.0
  %462 = vmatpush1.msra.mxu0 0.0
  %463 = vmatprep.subr.mxu0 0.0
  %464 = vmatpush1.msra.mxu0 0.0
  %465 = vmatprep.subr.mxu0 0.0
  %466 = vmatpush1.msra.mxu0 0.0
  %467 = vmatprep.subr.mxu0 0.0
  %468 = vmatpush1.msra.mxu0 0.0
  %469 = vmatprep.subr.mxu0 0.0
  %470 = vmatpush1.msra.mxu0 0.0
  %471 = vmatprep.subr.mxu0 0.0
  %472 = vmatpush1.msra.mxu0 0.0
  %473 = vmatprep.subr.mxu0 0.0
  %474 = vmatpush1.msra.mxu0 0.0
  %475 = vmatprep.subr.mxu0 0.0
  %476 = vmatpush1.msra.mxu0 0.0
  %477 = vmatprep.subr.mxu0 0.0
  %478 = vmatpush1.msra.mxu0 0.0
  %479 = vmatprep.subr.mxu0 0.0
  %480 = vmatpush1.msra.mxu0 0.0
  %481 = vmatprep.mubr.f32.mxu0 0.0
  %482 = vmatmul.mubr.f32.gmra.mrb[0].mxu0 %v410
  %v483 = vpop.f32.mrb[0].mxu0
  %v484 = vadd.f32 0.0, %v483
  %v485 = vpop.f32.mrb[0].mxu0
  %486 = vmatprep.mubr.f32.mxu0 0.0
  %487 = vmatmul.mubr.f32.gmra.mrb[0].mxu0 %v412
  %v488 = vpop.f32.mrb[0].mxu0
  %v489 = vadd.f32 0.0, %v488
  %v490 = vpop.f32.mrb[0].mxu0
  %491 = vdwg.mxu0
  %v492 = vadd.f32 %v399, %v484
  %v493 = vadd.f32 %v400, %v489
  %494 = vrot.lane.b32.xlu0 %v22, 127
  %v495 = vpop.permute.xlu0 %494
  %v496 = vlaneseq
  %v497 = vshrl.u32 %v496, 7
  %v498 = vsub.s32 7, %v497
  %v499 = vrot.slane %v20, %v498
  %v500 = vmul.f32 %v495, %v499
  %501 = vrot.lane.b32.xlu0 %v30, 108
  %v502 = vpop.permute.xlu0 %501
  %503 = vrot.lane.b32.xlu0 %v31, 108
  %v504 = vpop.permute.xlu0 %503
  %v505 = vsel %vm45, %v502, 0
  %v507 = vsel %vm45, %v504, 0
  %v510 = vsel %vm50, %v500, 0
  %512 = vmatprep.subr.mxu0 0.0
  %513 = vmatpush1.msra.mxu0 %v510
  %514 = vmatprep.subr.mxu0 0.0
  %515 = vmatpush1.msra.mxu0 0.0
  %516 = vmatprep.subr.mxu0 0.0
  %517 = vmatpush1.msra.mxu0 0.0
  %518 = vmatprep.subr.mxu0 0.0
  %519 = vmatpush1.msra.mxu0 0.0
  %520 = vmatprep.subr.mxu0 0.0
  %521 = vmatpush1.msra.mxu0 0.0
  %522 = vmatprep.subr.mxu0 0.0
  %523 = vmatpush1.msra.mxu0 0.0
  %524 = vmatprep.subr.mxu0 0.0
  %525 = vmatpush1.msra.mxu0 0.0
  %526 = vmatprep.subr.mxu0 0.0
  %527 = vmatpush1.msra.mxu0 0.0
  %528 = vmatprep.subr.mxu0 0.0
  %529 = vmatpush1.msra.mxu0 0.0
  %530 = vmatprep.subr.mxu0 0.0
  %531 = vmatpush1.msra.mxu0 0.0
  %532 = vmatprep.subr.mxu0 0.0
  %533 = vmatpush1.msra.mxu0 0.0
  %534 = vmatprep.subr.mxu0 0.0
  %535 = vmatpush1.msra.mxu0 0.0
  %536 = vmatprep.subr.mxu0 0.0
  %537 = vmatpush1.msra.mxu0 0.0
  %538 = vmatprep.subr.mxu0 0.0
  %539 = vmatpush1.msra.mxu0 0.0
  %540 = vmatprep.subr.mxu0 0.0
  %541 = vmatpush1.msra.mxu0 0.0
  %542 = vmatprep.subr.mxu0 0.0
  %543 = vmatpush1.msra.mxu0 0.0
  %544 = vmatprep.subr.mxu0 0.0
  %545 = vmatpush1.msra.mxu0 0.0
  %546 = vmatprep.subr.mxu0 0.0
  %547 = vmatpush1.msra.mxu0 0.0
  %548 = vmatprep.subr.mxu0 0.0
  %549 = vmatpush1.msra.mxu0 0.0
  %550 = vmatprep.subr.mxu0 0.0
  %551 = vmatpush1.msra.mxu0 0.0
  %552 = vmatprep.subr.mxu0 0.0
  %553 = vmatpush1.msra.mxu0 0.0
  %554 = vmatprep.subr.mxu0 0.0
  %555 = vmatpush1.msra.mxu0 0.0
  %556 = vmatprep.subr.mxu0 0.0
  %557 = vmatpush1.msra.mxu0 0.0
  %558 = vmatprep.subr.mxu0 0.0
  %559 = vmatpush1.msra.mxu0 0.0
  %560 = vmatprep.subr.mxu0 0.0
  %561 = vmatpush1.msra.mxu0 0.0
  %562 = vmatprep.subr.mxu0 0.0
  %563 = vmatpush1.msra.mxu0 0.0
  %564 = vmatprep.subr.mxu0 0.0
  %565 = vmatpush1.msra.mxu0 0.0
  %566 = vmatprep.subr.mxu0 0.0
  %567 = vmatpush1.msra.mxu0 0.0
  %568 = vmatprep.subr.mxu0 0.0
  %569 = vmatpush1.msra.mxu0 0.0
  %570 = vmatprep.subr.mxu0 0.0
  %571 = vmatpush1.msra.mxu0 0.0
  %572 = vmatprep.subr.mxu0 0.0
  %573 = vmatpush1.msra.mxu0 0.0
  %574 = vmatprep.subr.mxu0 0.0
  %575 = vmatpush1.msra.mxu0 0.0
  %576 = vmatprep.mubr.f32.mxu0 0.0
  %577 = vmatmul.mubr.f32.gmra.mrb[0].mxu0 %v505
  %v578 = vpop.f32.mrb[0].mxu0
  %v579 = vadd.f32 0.0, %v578
  %v580 = vpop.f32.mrb[0].mxu0
  %581 = vmatprep.mubr.f32.mxu0 0.0
  %582 = vmatmul.mubr.f32.gmra.mrb[0].mxu0 %v507
  %v583 = vpop.f32.mrb[0].mxu0
  %v584 = vadd.f32 0.0, %v583
  %v585 = vpop.f32.mrb[0].mxu0
  %586 = vdwg.mxu0
  %v587 = vadd.f32 %v492, %v579
  %v588 = vadd.f32 %v493, %v584
  %589 = vrot.lane.b32.xlu0 %v22, 121
  %v590 = vpop.permute.xlu0 %589
  %v591 = vlaneseq
  %v592 = vshrl.u32 %v591, 7
  %v593 = vsub.s32 0, %v592
  %v594 = vrot.slane %v21, %v593
  %v595 = vmul.f32 %v590, %v594
  %596 = vrot.lane.b32.xlu0 %v30, 104
  %v597 = vpop.permute.xlu0 %596
  %598 = vrot.lane.b32.xlu0 %v31, 104
  %v599 = vpop.permute.xlu0 %598
  %v600 = vsel %vm45, %v597, 0
  %v602 = vsel %vm45, %v599, 0
  %v605 = vsel %vm50, %v595, 0
  %607 = vmatprep.subr.mxu0 0.0
  %608 = vmatpush1.msra.mxu0 %v605
  %609 = vmatprep.subr.mxu0 0.0
  %610 = vmatpush1.msra.mxu0 0.0
  %611 = vmatprep.subr.mxu0 0.0
  %612 = vmatpush1.msra.mxu0 0.0
  %613 = vmatprep.subr.mxu0 0.0
  %614 = vmatpush1.msra.mxu0 0.0
  %615 = vmatprep.subr.mxu0 0.0
  %616 = vmatpush1.msra.mxu0 0.0
  %617 = vmatprep.subr.mxu0 0.0
  %618 = vmatpush1.msra.mxu0 0.0
  %619 = vmatprep.subr.mxu0 0.0
  %620 = vmatpush1.msra.mxu0 0.0
  %621 = vmatprep.subr.mxu0 0.0
  %622 = vmatpush1.msra.mxu0 0.0
  %623 = vmatprep.subr.mxu0 0.0
  %624 = vmatpush1.msra.mxu0 0.0
  %625 = vmatprep.subr.mxu0 0.0
  %626 = vmatpush1.msra.mxu0 0.0
  %627 = vmatprep.subr.mxu0 0.0
  %628 = vmatpush1.msra.mxu0 0.0
  %629 = vmatprep.subr.mxu0 0.0
  %630 = vmatpush1.msra.mxu0 0.0
  %631 = vmatprep.subr.mxu0 0.0
  %632 = vmatpush1.msra.mxu0 0.0
  %633 = vmatprep.subr.mxu0 0.0
  %634 = vmatpush1.msra.mxu0 0.0
  %635 = vmatprep.subr.mxu0 0.0
  %636 = vmatpush1.msra.mxu0 0.0
  %637 = vmatprep.subr.mxu0 0.0
  %638 = vmatpush1.msra.mxu0 0.0
  %639 = vmatprep.subr.mxu0 0.0
  %640 = vmatpush1.msra.mxu0 0.0
  %641 = vmatprep.subr.mxu0 0.0
  %642 = vmatpush1.msra.mxu0 0.0
  %643 = vmatprep.subr.mxu0 0.0
  %644 = vmatpush1.msra.mxu0 0.0
  %645 = vmatprep.subr.mxu0 0.0
  %646 = vmatpush1.msra.mxu0 0.0
  %647 = vmatprep.subr.mxu0 0.0
  %648 = vmatpush1.msra.mxu0 0.0
  %649 = vmatprep.subr.mxu0 0.0
  %650 = vmatpush1.msra.mxu0 0.0
  %651 = vmatprep.subr.mxu0 0.0
  %652 = vmatpush1.msra.mxu0 0.0
  %653 = vmatprep.subr.mxu0 0.0
  %654 = vmatpush1.msra.mxu0 0.0
  %655 = vmatprep.subr.mxu0 0.0
  %656 = vmatpush1.msra.mxu0 0.0
  %657 = vmatprep.subr.mxu0 0.0
  %658 = vmatpush1.msra.mxu0 0.0
  %659 = vmatprep.subr.mxu0 0.0
  %660 = vmatpush1.msra.mxu0 0.0
  %661 = vmatprep.subr.mxu0 0.0
  %662 = vmatpush1.msra.mxu0 0.0
  %663 = vmatprep.subr.mxu0 0.0
  %664 = vmatpush1.msra.mxu0 0.0
  %665 = vmatprep.subr.mxu0 0.0
  %666 = vmatpush1.msra.mxu0 0.0
  %667 = vmatprep.subr.mxu0 0.0
  %668 = vmatpush1.msra.mxu0 0.0
  %669 = vmatprep.subr.mxu0 0.0
  %670 = vmatpush1.msra.mxu0 0.0
  %671 = vmatprep.mubr.f32.mxu0 0.0
  %672 = vmatmul.mubr.f32.gmra.mrb[0].mxu0 %v600
  %v673 = vpop.f32.mrb[0].mxu0
  %v674 = vadd.f32 0.0, %v673
  %v675 = vpop.f32.mrb[0].mxu0
  %676 = vmatprep.mubr.f32.mxu0 0.0
  %677 = vmatmul.mubr.f32.gmra.mrb[0].mxu0 %v602
  %v678 = vpop.f32.mrb[0].mxu0
  %v679 = vadd.f32 0.0, %v678
  %v680 = vpop.f32.mrb[0].mxu0
  %681 = vdwg.mxu0
  %v682 = vadd.f32 %v587, %v674
  %v683 = vadd.f32 %v588, %v679
  %684 = vrot.lane.b32.xlu0 %v22, 120
  %v685 = vpop.permute.xlu0 %684
  %v686 = vlaneseq
  %v687 = vshrl.u32 %v686, 7
  %v688 = vsub.s32 1, %v687
  %v689 = vrot.slane %v21, %v688
  %v690 = vmul.f32 %v685, %v689
  %691 = vrot.lane.b32.xlu0 %v30, 100
  %v692 = vpop.permute.xlu0 %691
  %693 = vrot.lane.b32.xlu0 %v31, 100
  %v694 = vpop.permute.xlu0 %693
  %v695 = vsel %vm45, %v692, 0
  %v697 = vsel %vm45, %v694, 0
  %v700 = vsel %vm50, %v690, 0
  %702 = vmatprep.subr.mxu0 0.0
  %703 = vmatpush1.msra.mxu0 %v700
  %704 = vmatprep.subr.mxu0 0.0
  %705 = vmatpush1.msra.mxu0 0.0
  %706 = vmatprep.subr.mxu0 0.0
  %707 = vmatpush1.msra.mxu0 0.0
  %708 = vmatprep.subr.mxu0 0.0
  %709 = vmatpush1.msra.mxu0 0.0
  %710 = vmatprep.subr.mxu0 0.0
  %711 = vmatpush1.msra.mxu0 0.0
  %712 = vmatprep.subr.mxu0 0.0
  %713 = vmatpush1.msra.mxu0 0.0
  %714 = vmatprep.subr.mxu0 0.0
  %715 = vmatpush1.msra.mxu0 0.0
  %716 = vmatprep.subr.mxu0 0.0
  %717 = vmatpush1.msra.mxu0 0.0
  %718 = vmatprep.subr.mxu0 0.0
  %719 = vmatpush1.msra.mxu0 0.0
  %720 = vmatprep.subr.mxu0 0.0
  %721 = vmatpush1.msra.mxu0 0.0
  %722 = vmatprep.subr.mxu0 0.0
  %723 = vmatpush1.msra.mxu0 0.0
  %724 = vmatprep.subr.mxu0 0.0
  %725 = vmatpush1.msra.mxu0 0.0
  %726 = vmatprep.subr.mxu0 0.0
  %727 = vmatpush1.msra.mxu0 0.0
  %728 = vmatprep.subr.mxu0 0.0
  %729 = vmatpush1.msra.mxu0 0.0
  %730 = vmatprep.subr.mxu0 0.0
  %731 = vmatpush1.msra.mxu0 0.0
  %732 = vmatprep.subr.mxu0 0.0
  %733 = vmatpush1.msra.mxu0 0.0
  %734 = vmatprep.subr.mxu0 0.0
  %735 = vmatpush1.msra.mxu0 0.0
  %736 = vmatprep.subr.mxu0 0.0
  %737 = vmatpush1.msra.mxu0 0.0
  %738 = vmatprep.subr.mxu0 0.0
  %739 = vmatpush1.msra.mxu0 0.0
  %740 = vmatprep.subr.mxu0 0.0
  %741 = vmatpush1.msra.mxu0 0.0
  %742 = vmatprep.subr.mxu0 0.0
  %743 = vmatpush1.msra.mxu0 0.0
  %744 = vmatprep.subr.mxu0 0.0
  %745 = vmatpush1.msra.mxu0 0.0
  %746 = vmatprep.subr.mxu0 0.0
  %747 = vmatpush1.msra.mxu0 0.0
  %748 = vmatprep.subr.mxu0 0.0
  %749 = vmatpush1.msra.mxu0 0.0
  %750 = vmatprep.subr.mxu0 0.0
  %751 = vmatpush1.msra.mxu0 0.0
  %752 = vmatprep.subr.mxu0 0.0
  %753 = vmatpush1.msra.mxu0 0.0
  %754 = vmatprep.subr.mxu0 0.0
  %755 = vmatpush1.msra.mxu0 0.0
  %756 = vmatprep.subr.mxu0 0.0
  %757 = vmatpush1.msra.mxu0 0.0
  %758 = vmatprep.subr.mxu0 0.0
  %759 = vmatpush1.msra.mxu0 0.0
  %760 = vmatprep.subr.mxu0 0.0
  %761 = vmatpush1.msra.mxu0 0.0
  %762 = vmatprep.subr.mxu0 0.0
  %763 = vmatpush1.msra.mxu0 0.0
  %764 = vmatprep.subr.mxu0 0.0
  %765 = vmatpush1.msra.mxu0 0.0
  %766 = vmatprep.mubr.f32.mxu0 0.0
  %767 = vmatmul.mubr.f32.gmra.mrb[0].mxu0 %v695
  %v768 = vpop.f32.mrb[0].mxu0
  %v769 = vadd.f32 0.0, %v768
  %v770 = vpop.f32.mrb[0].mxu0
  %771 = vmatprep.mubr.f32.mxu0 0.0
  %772 = vmatmul.mubr.f32.gmra.mrb[0].mxu0 %v697
  %v773 = vpop.f32.mrb[0].mxu0
  %v774 = vadd.f32 0.0, %v773
  %v775 = vpop.f32.mrb[0].mxu0
  %776 = vdwg.mxu0
  %v777 = vadd.f32 %v682, %v769
  %v778 = vadd.f32 %v683, %v774
  %779 = vrot.lane.b32.xlu0 %v22, 119
  %v780 = vpop.permute.xlu0 %779
  %v781 = vlaneseq
  %v782 = vshrl.u32 %v781, 7
  %v783 = vsub.s32 2, %v782
  %v784 = vrot.slane %v21, %v783
  %v785 = vmul.f32 %v780, %v784
  %786 = vrot.lane.b32.xlu0 %v30, 96
  %v787 = vpop.permute.xlu0 %786
  %788 = vrot.lane.b32.xlu0 %v31, 96
  %v789 = vpop.permute.xlu0 %788
  %v790 = vsel %vm45, %v787, 0
  %v792 = vsel %vm45, %v789, 0
  %v795 = vsel %vm50, %v785, 0
  %797 = vmatprep.subr.mxu0 0.0
  %798 = vmatpush1.msra.mxu0 %v795
  %799 = vmatprep.subr.mxu0 0.0
  %800 = vmatpush1.msra.mxu0 0.0
  %801 = vmatprep.subr.mxu0 0.0
  %802 = vmatpush1.msra.mxu0 0.0
  %803 = vmatprep.subr.mxu0 0.0
  %804 = vmatpush1.msra.mxu0 0.0
  %805 = vmatprep.subr.mxu0 0.0
  %806 = vmatpush1.msra.mxu0 0.0
  %807 = vmatprep.subr.mxu0 0.0
  %808 = vmatpush1.msra.mxu0 0.0
  %809 = vmatprep.subr.mxu0 0.0
  %810 = vmatpush1.msra.mxu0 0.0
  %811 = vmatprep.subr.mxu0 0.0
  %812 = vmatpush1.msra.mxu0 0.0
  %813 = vmatprep.subr.mxu0 0.0
  %814 = vmatpush1.msra.mxu0 0.0
  %815 = vmatprep.subr.mxu0 0.0
  %816 = vmatpush1.msra.mxu0 0.0
  %817 = vmatprep.subr.mxu0 0.0
  %818 = vmatpush1.msra.mxu0 0.0
  %819 = vmatprep.subr.mxu0 0.0
  %820 = vmatpush1.msra.mxu0 0.0
  %821 = vmatprep.subr.mxu0 0.0
  %822 = vmatpush1.msra.mxu0 0.0
  %823 = vmatprep.subr.mxu0 0.0
  %824 = vmatpush1.msra.mxu0 0.0
  %825 = vmatprep.subr.mxu0 0.0
  %826 = vmatpush1.msra.mxu0 0.0
  %827 = vmatprep.subr.mxu0 0.0
  %828 = vmatpush1.msra.mxu0 0.0
  %829 = vmatprep.subr.mxu0 0.0
  %830 = vmatpush1.msra.mxu0 0.0
  %831 = vmatprep.subr.mxu0 0.0
  %832 = vmatpush1.msra.mxu0 0.0
  %833 = vmatprep.subr.mxu0 0.0
  %834 = vmatpush1.msra.mxu0 0.0
  %835 = vmatprep.subr.mxu0 0.0
  %836 = vmatpush1.msra.mxu0 0.0
  %837 = vmatprep.subr.mxu0 0.0
  %838 = vmatpush1.msra.mxu0 0.0
  %839 = vmatprep.subr.mxu0 0.0
  %840 = vmatpush1.msra.mxu0 0.0
  %841 = vmatprep.subr.mxu0 0.0
  %842 = vmatpush1.msra.mxu0 0.0
  %843 = vmatprep.subr.mxu0 0.0
  %844 = vmatpush1.msra.mxu0 0.0
  %845 = vmatprep.subr.mxu0 0.0
  %846 = vmatpush1.msra.mxu0 0.0
  %847 = vmatprep.subr.mxu0 0.0
  %848 = vmatpush1.msra.mxu0 0.0
  %849 = vmatprep.subr.mxu0 0.0
  %850 = vmatpush1.msra.mxu0 0.0
  %851 = vmatprep.subr.mxu0 0.0
  %852 = vmatpush1.msra.mxu0 0.0
  %853 = vmatprep.subr.mxu0 0.0
  %854 = vmatpush1.msra.mxu0 0.0
  %855 = vmatprep.subr.mxu0 0.0
  %856 = vmatpush1.msra.mxu0 0.0
  %857 = vmatprep.subr.mxu0 0.0
  %858 = vmatpush1.msra.mxu0 0.0
  %859 = vmatprep.subr.mxu0 0.0
  %860 = vmatpush1.msra.mxu0 0.0
  %861 = vmatprep.mubr.f32.mxu0 0.0
  %862 = vmatmul.mubr.f32.gmra.mrb[0].mxu0 %v790
  %v863 = vpop.f32.mrb[0].mxu0
  %v864 = vadd.f32 0.0, %v863
  %v865 = vpop.f32.mrb[0].mxu0
  %866 = vmatprep.mubr.f32.mxu0 0.0
  %867 = vmatmul.mubr.f32.gmra.mrb[0].mxu0 %v792
  %v868 = vpop.f32.mrb[0].mxu0
  %v869 = vadd.f32 0.0, %v868
  %v870 = vpop.f32.mrb[0].mxu0
  %871 = vdwg.mxu0
  %v872 = vadd.f32 %v777, %v864
  %v873 = vadd.f32 %v778, %v869
  %v874 = vld [vmem:[%s3] sm:$0xff]
  %v875 = vld [vmem:[%s3 + $0x8] sm:$0xff]
  %876 = vadd.xlane.f32.xlu0 %v872
  %v877 = vpop.xlane.xlu0 %876
  %878 = vadd.xlane.f32.xlu0 %v873
  %v879 = vpop.xlane.xlu0 %878
  %v880 = vmul.f32 %v877, 0.0078125
  %v881 = vmul.f32 %v879, 0.0078125
  %v882 = vsub.f32 %v872, %v880
  %v883 = vsub.f32 %v873, %v881
  %v884 = vmul.f32 %v882, %v882
  %v885 = vmul.f32 %v883, %v883
  %886 = vadd.xlane.f32.xlu0 %v884
  %v887 = vpop.xlane.xlu0 %886
  %888 = vadd.xlane.f32.xlu0 %v885
  %v889 = vpop.xlane.xlu0 %888
  %v890 = vmul.f32 %v887, 0.0078125
  %v891 = vmul.f32 %v889, 0.0078125
  %v892 = vadd.f32 %v890, 1e-05
  %v893 = vadd.f32 %v891, 1e-05
  %v894 = vrsqrt.pop %v892
  %v895 = vrsqrt.pop %v893
  %v896 = vmul.f32 %v874, %v894
  %v897 = vmul.f32 %v875, %v895
  %899 = vset.pattern.permute.xlu0 0
  %900 = vperm.xlu0 %899, %v896
  %v901 = vpop.permute.xlu0 %900
  %904 = vset.pattern.permute.xlu0 0
  %905 = vperm.xlu0 %904, %v897
  %v906 = vpop.permute.xlu0 %905
  %v908 = vmul.f32 %v882, %v901
  %v909 = vmul.f32 %v883, %v906
  %911 = vset.pattern.permute.xlu0 1
  %912 = vperm.xlu0 %911, %v874
  %v913 = vpop.permute.xlu0 %912
  %916 = vset.pattern.permute.xlu0 1
  %917 = vperm.xlu0 %916, %v875
  %v918 = vpop.permute.xlu0 %917
  %v920 = vadd.f32 %v908, %v913
  %v921 = vadd.f32 %v909, %v918
  %v922 = vmax.f32 %v920, 0.0
  %v923 = vmax.f32 %v921, 0.0
  %924 = vrot.lane.b32.xlu0 %v922, 9
  %v925 = vpop.permute.xlu0 %924
  %926 = vrot.lane.b32.xlu0 %v923, 9
  %v927 = vpop.permute.xlu0 %926
  %v928 = vmul.f32 %v925, %v28
  %v929 = vmul.f32 %v927, %v28
  %v930 = vld [vmem:[%s2 + $0x20] sm:$0xff]
  %v931 = vld [vmem:[%s2 + $0x30] sm:$0xff]
  %932 = vrot.lane.b32.xlu0 %v922, 8
  %v933 = vpop.permute.xlu0 %932
  %934 = vrot.lane.b32.xlu0 %v923, 8
  %v935 = vpop.permute.xlu0 %934
  %v936 = vmul.f32 %v933, %v37
  %v937 = vmul.f32 %v935, %v37
  %940 = vrot.lane.b32.xlu0 %v930, 112
  %v941 = vpop.permute.xlu0 %940
  %942 = vrot.lane.b32.xlu0 %v931, 112
  %v943 = vpop.permute.xlu0 %942
  %vm944 = vcmask 130048
  %v945 = vsel %vm944, %v941, 0
  %v947 = vsel %vm944, %v943, 0
  %949 = vmatprep.subr.mxu0 0.0
  %950 = vmatpush1.msra.mxu0 %v936
  %951 = vmatprep.subr.mxu0 0.0
  %952 = vmatpush1.msra.mxu0 %v937
  %953 = vmatprep.subr.mxu0 0.0
  %954 = vmatpush1.msra.mxu0 0.0
  %955 = vmatprep.subr.mxu0 0.0
  %956 = vmatpush1.msra.mxu0 0.0
  %957 = vmatprep.subr.mxu0 0.0
  %958 = vmatpush1.msra.mxu0 0.0
  %959 = vmatprep.subr.mxu0 0.0
  %960 = vmatpush1.msra.mxu0 0.0
  %961 = vmatprep.subr.mxu0 0.0
  %962 = vmatpush1.msra.mxu0 0.0
  %963 = vmatprep.subr.mxu0 0.0
  %964 = vmatpush1.msra.mxu0 0.0
  %965 = vmatprep.subr.mxu0 0.0
  %966 = vmatpush1.msra.mxu0 0.0
  %967 = vmatprep.subr.mxu0 0.0
  %968 = vmatpush1.msra.mxu0 0.0
  %969 = vmatprep.subr.mxu0 0.0
  %970 = vmatpush1.msra.mxu0 0.0
  %971 = vmatprep.subr.mxu0 0.0
  %972 = vmatpush1.msra.mxu0 0.0
  %973 = vmatprep.subr.mxu0 0.0
  %974 = vmatpush1.msra.mxu0 0.0
  %975 = vmatprep.subr.mxu0 0.0
  %976 = vmatpush1.msra.mxu0 0.0
  %977 = vmatprep.subr.mxu0 0.0
  %978 = vmatpush1.msra.mxu0 0.0
  %979 = vmatprep.subr.mxu0 0.0
  %980 = vmatpush1.msra.mxu0 0.0
  %981 = vmatprep.subr.mxu0 0.0
  %982 = vmatpush1.msra.mxu0 0.0
  %983 = vmatprep.subr.mxu0 0.0
  %984 = vmatpush1.msra.mxu0 0.0
  %985 = vmatprep.subr.mxu0 0.0
  %986 = vmatpush1.msra.mxu0 0.0
  %987 = vmatprep.subr.mxu0 0.0
  %988 = vmatpush1.msra.mxu0 0.0
  %989 = vmatprep.subr.mxu0 0.0
  %990 = vmatpush1.msra.mxu0 0.0
  %991 = vmatprep.subr.mxu0 0.0
  %992 = vmatpush1.msra.mxu0 0.0
  %993 = vmatprep.subr.mxu0 0.0
  %994 = vmatpush1.msra.mxu0 0.0
  %995 = vmatprep.subr.mxu0 0.0
  %996 = vmatpush1.msra.mxu0 0.0
  %997 = vmatprep.subr.mxu0 0.0
  %998 = vmatpush1.msra.mxu0 0.0
  %999 = vmatprep.subr.mxu0 0.0
  %1000 = vmatpush1.msra.mxu0 0.0
  %1001 = vmatprep.subr.mxu0 0.0
  %1002 = vmatpush1.msra.mxu0 0.0
  %1003 = vmatprep.subr.mxu0 0.0
  %1004 = vmatpush1.msra.mxu0 0.0
  %1005 = vmatprep.subr.mxu0 0.0
  %1006 = vmatpush1.msra.mxu0 0.0
  %1007 = vmatprep.subr.mxu0 0.0
  %1008 = vmatpush1.msra.mxu0 0.0
  %1009 = vmatprep.subr.mxu0 0.0
  %1010 = vmatpush1.msra.mxu0 0.0
  %1011 = vmatprep.subr.mxu0 0.0
  %1012 = vmatpush1.msra.mxu0 0.0
  %1013 = vmatprep.mubr.f32.mxu0 0.0
  %1014 = vmatmul.mubr.f32.gmra.mrb[0].mxu0 %v945
  %v1015 = vpop.f32.mrb[0].mxu0
  %v1016 = vadd.f32 0.0, %v1015
  %v1017 = vpop.f32.mrb[0].mxu0
  %1018 = vmatprep.mubr.f32.mxu0 0.0
  %1019 = vmatmul.mubr.f32.gmra.mrb[0].mxu0 %v947
  %v1020 = vpop.f32.mrb[0].mxu0
  %v1021 = vadd.f32 0.0, %v1020
  %v1022 = vpop.f32.mrb[0].mxu0
  %1023 = vdwg.mxu0
  %v1024 = vsel %vm944, %v930, 0
  %v1026 = vsel %vm944, %v931, 0
  %1028 = vmatprep.subr.mxu0 0.0
  %1029 = vmatpush1.msra.mxu0 %v928
  %1030 = vmatprep.subr.mxu0 0.0
  %1031 = vmatpush1.msra.mxu0 %v929
  %1032 = vmatprep.subr.mxu0 0.0
  %1033 = vmatpush1.msra.mxu0 0.0
  %1034 = vmatprep.subr.mxu0 0.0
  %1035 = vmatpush1.msra.mxu0 0.0
  %1036 = vmatprep.subr.mxu0 0.0
  %1037 = vmatpush1.msra.mxu0 0.0
  %1038 = vmatprep.subr.mxu0 0.0
  %1039 = vmatpush1.msra.mxu0 0.0
  %1040 = vmatprep.subr.mxu0 0.0
  %1041 = vmatpush1.msra.mxu0 0.0
  %1042 = vmatprep.subr.mxu0 0.0
  %1043 = vmatpush1.msra.mxu0 0.0
  %1044 = vmatprep.subr.mxu0 0.0
  %1045 = vmatpush1.msra.mxu0 0.0
  %1046 = vmatprep.subr.mxu0 0.0
  %1047 = vmatpush1.msra.mxu0 0.0
  %1048 = vmatprep.subr.mxu0 0.0
  %1049 = vmatpush1.msra.mxu0 0.0
  %1050 = vmatprep.subr.mxu0 0.0
  %1051 = vmatpush1.msra.mxu0 0.0
  %1052 = vmatprep.subr.mxu0 0.0
  %1053 = vmatpush1.msra.mxu0 0.0
  %1054 = vmatprep.subr.mxu0 0.0
  %1055 = vmatpush1.msra.mxu0 0.0
  %1056 = vmatprep.subr.mxu0 0.0
  %1057 = vmatpush1.msra.mxu0 0.0
  %1058 = vmatprep.subr.mxu0 0.0
  %1059 = vmatpush1.msra.mxu0 0.0
  %1060 = vmatprep.subr.mxu0 0.0
  %1061 = vmatpush1.msra.mxu0 0.0
  %1062 = vmatprep.subr.mxu0 0.0
  %1063 = vmatpush1.msra.mxu0 0.0
  %1064 = vmatprep.subr.mxu0 0.0
  %1065 = vmatpush1.msra.mxu0 0.0
  %1066 = vmatprep.subr.mxu0 0.0
  %1067 = vmatpush1.msra.mxu0 0.0
  %1068 = vmatprep.subr.mxu0 0.0
  %1069 = vmatpush1.msra.mxu0 0.0
  %1070 = vmatprep.subr.mxu0 0.0
  %1071 = vmatpush1.msra.mxu0 0.0
  %1072 = vmatprep.subr.mxu0 0.0
  %1073 = vmatpush1.msra.mxu0 0.0
  %1074 = vmatprep.subr.mxu0 0.0
  %1075 = vmatpush1.msra.mxu0 0.0
  %1076 = vmatprep.subr.mxu0 0.0
  %1077 = vmatpush1.msra.mxu0 0.0
  %1078 = vmatprep.subr.mxu0 0.0
  %1079 = vmatpush1.msra.mxu0 0.0
  %1080 = vmatprep.subr.mxu0 0.0
  %1081 = vmatpush1.msra.mxu0 0.0
  %1082 = vmatprep.subr.mxu0 0.0
  %1083 = vmatpush1.msra.mxu0 0.0
  %1084 = vmatprep.subr.mxu0 0.0
  %1085 = vmatpush1.msra.mxu0 0.0
  %1086 = vmatprep.subr.mxu0 0.0
  %1087 = vmatpush1.msra.mxu0 0.0
  %1088 = vmatprep.subr.mxu0 0.0
  %1089 = vmatpush1.msra.mxu0 0.0
  %1090 = vmatprep.subr.mxu0 0.0
  %1091 = vmatpush1.msra.mxu0 0.0
  %1092 = vmatprep.mubr.f32.mxu0 0.0
  %1093 = vmatmul.mubr.f32.gmra.mrb[0].mxu0 %v1024
  %v1094 = vpop.f32.mrb[0].mxu0
  %v1095 = vadd.f32 %v1016, %v1094
  %v1096 = vpop.f32.mrb[0].mxu0
  %1097 = vmatprep.mubr.f32.mxu0 0.0
  %1098 = vmatmul.mubr.f32.gmra.mrb[0].mxu0 %v1026
  %v1099 = vpop.f32.mrb[0].mxu0
  %v1100 = vadd.f32 %v1021, %v1099
  %v1101 = vpop.f32.mrb[0].mxu0
  %1102 = vdwg.mxu0
  %1103 = vrot.lane.b32.xlu0 %v922, 7
  %v1104 = vpop.permute.xlu0 %1103
  %1105 = vrot.lane.b32.xlu0 %v923, 7
  %v1106 = vpop.permute.xlu0 %1105
  %v1107 = vmul.f32 %v1104, %v216
  %v1108 = vmul.f32 %v1106, %v216
  %1109 = vrot.lane.b32.xlu0 %v930, 96
  %v1110 = vpop.permute.xlu0 %1109
  %1111 = vrot.lane.b32.xlu0 %v931, 96
  %v1112 = vpop.permute.xlu0 %1111
  %v1113 = vsel %vm944, %v1110, 0
  %v1115 = vsel %vm944, %v1112, 0
  %1117 = vmatprep.subr.mxu0 0.0
  %1118 = vmatpush1.msra.mxu0 %v1107
  %1119 = vmatprep.subr.mxu0 0.0
  %1120 = vmatpush1.msra.mxu0 %v1108
  %1121 = vmatprep.subr.mxu0 0.0
  %1122 = vmatpush1.msra.mxu0 0.0
  %1123 = vmatprep.subr.mxu0 0.0
  %1124 = vmatpush1.msra.mxu0 0.0
  %1125 = vmatprep.subr.mxu0 0.0
  %1126 = vmatpush1.msra.mxu0 0.0
  %1127 = vmatprep.subr.mxu0 0.0
  %1128 = vmatpush1.msra.mxu0 0.0
  %1129 = vmatprep.subr.mxu0 0.0
  %1130 = vmatpush1.msra.mxu0 0.0
  %1131 = vmatprep.subr.mxu0 0.0
  %1132 = vmatpush1.msra.mxu0 0.0
  %1133 = vmatprep.subr.mxu0 0.0
  %1134 = vmatpush1.msra.mxu0 0.0
  %1135 = vmatprep.subr.mxu0 0.0
  %1136 = vmatpush1.msra.mxu0 0.0
  %1137 = vmatprep.subr.mxu0 0.0
  %1138 = vmatpush1.msra.mxu0 0.0
  %1139 = vmatprep.subr.mxu0 0.0
  %1140 = vmatpush1.msra.mxu0 0.0
  %1141 = vmatprep.subr.mxu0 0.0
  %1142 = vmatpush1.msra.mxu0 0.0
  %1143 = vmatprep.subr.mxu0 0.0
  %1144 = vmatpush1.msra.mxu0 0.0
  %1145 = vmatprep.subr.mxu0 0.0
  %1146 = vmatpush1.msra.mxu0 0.0
  %1147 = vmatprep.subr.mxu0 0.0
  %1148 = vmatpush1.msra.mxu0 0.0
  %1149 = vmatprep.subr.mxu0 0.0
  %1150 = vmatpush1.msra.mxu0 0.0
  %1151 = vmatprep.subr.mxu0 0.0
  %1152 = vmatpush1.msra.mxu0 0.0
  %1153 = vmatprep.subr.mxu0 0.0
  %1154 = vmatpush1.msra.mxu0 0.0
  %1155 = vmatprep.subr.mxu0 0.0
  %1156 = vmatpush1.msra.mxu0 0.0
  %1157 = vmatprep.subr.mxu0 0.0
  %1158 = vmatpush1.msra.mxu0 0.0
  %1159 = vmatprep.subr.mxu0 0.0
  %1160 = vmatpush1.msra.mxu0 0.0
  %1161 = vmatprep.subr.mxu0 0.0
  %1162 = vmatpush1.msra.mxu0 0.0
  %1163 = vmatprep.subr.mxu0 0.0
  %1164 = vmatpush1.msra.mxu0 0.0
  %1165 = vmatprep.subr.mxu0 0.0
  %1166 = vmatpush1.msra.mxu0 0.0
  %1167 = vmatprep.subr.mxu0 0.0
  %1168 = vmatpush1.msra.mxu0 0.0
  %1169 = vmatprep.subr.mxu0 0.0
  %1170 = vmatpush1.msra.mxu0 0.0
  %1171 = vmatprep.subr.mxu0 0.0
  %1172 = vmatpush1.msra.mxu0 0.0
  %1173 = vmatprep.subr.mxu0 0.0
  %1174 = vmatpush1.msra.mxu0 0.0
  %1175 = vmatprep.subr.mxu0 0.0
  %1176 = vmatpush1.msra.mxu0 0.0
  %1177 = vmatprep.subr.mxu0 0.0
  %1178 = vmatpush1.msra.mxu0 0.0
  %1179 = vmatprep.subr.mxu0 0.0
  %1180 = vmatpush1.msra.mxu0 0.0
  %1181 = vmatprep.mubr.f32.mxu0 0.0
  %1182 = vmatmul.mubr.f32.gmra.mrb[0].mxu0 %v1113
  %v1183 = vpop.f32.mrb[0].mxu0
  %v1184 = vadd.f32 0.0, %v1183
  %v1185 = vpop.f32.mrb[0].mxu0
  %1186 = vmatprep.mubr.f32.mxu0 0.0
  %1187 = vmatmul.mubr.f32.gmra.mrb[0].mxu0 %v1115
  %v1188 = vpop.f32.mrb[0].mxu0
  %v1189 = vadd.f32 0.0, %v1188
  %v1190 = vpop.f32.mrb[0].mxu0
  %1191 = vdwg.mxu0
  %v1192 = vadd.f32 %v1095, %v1184
  %v1193 = vadd.f32 %v1100, %v1189
  %1194 = vrot.lane.b32.xlu0 %v922, 1
  %v1195 = vpop.permute.xlu0 %1194
  %1196 = vrot.lane.b32.xlu0 %v923, 1
  %v1197 = vpop.permute.xlu0 %1196
  %v1198 = vmul.f32 %v1195, %v311
  %v1199 = vmul.f32 %v1197, %v311
  %1200 = vrot.lane.b32.xlu0 %v930, 80
  %v1201 = vpop.permute.xlu0 %1200
  %1202 = vrot.lane.b32.xlu0 %v931, 80
  %v1203 = vpop.permute.xlu0 %1202
  %v1204 = vsel %vm944, %v1201, 0
  %v1206 = vsel %vm944, %v1203, 0
  %1208 = vmatprep.subr.mxu0 0.0
  %1209 = vmatpush1.msra.mxu0 %v1198
  %1210 = vmatprep.subr.mxu0 0.0
  %1211 = vmatpush1.msra.mxu0 %v1199
  %1212 = vmatprep.subr.mxu0 0.0
  %1213 = vmatpush1.msra.mxu0 0.0
  %1214 = vmatprep.subr.mxu0 0.0
  %1215 = vmatpush1.msra.mxu0 0.0
  %1216 = vmatprep.subr.mxu0 0.0
  %1217 = vmatpush1.msra.mxu0 0.0
  %1218 = vmatprep.subr.mxu0 0.0
  %1219 = vmatpush1.msra.mxu0 0.0
  %1220 = vmatprep.subr.mxu0 0.0
  %1221 = vmatpush1.msra.mxu0 0.0
  %1222 = vmatprep.subr.mxu0 0.0
  %1223 = vmatpush1.msra.mxu0 0.0
  %1224 = vmatprep.subr.mxu0 0.0
  %1225 = vmatpush1.msra.mxu0 0.0
  %1226 = vmatprep.subr.mxu0 0.0
  %1227 = vmatpush1.msra.mxu0 0.0
  %1228 = vmatprep.subr.mxu0 0.0
  %1229 = vmatpush1.msra.mxu0 0.0
  %1230 = vmatprep.subr.mxu0 0.0
  %1231 = vmatpush1.msra.mxu0 0.0
  %1232 = vmatprep.subr.mxu0 0.0
  %1233 = vmatpush1.msra.mxu0 0.0
  %1234 = vmatprep.subr.mxu0 0.0
  %1235 = vmatpush1.msra.mxu0 0.0
  %1236 = vmatprep.subr.mxu0 0.0
  %1237 = vmatpush1.msra.mxu0 0.0
  %1238 = vmatprep.subr.mxu0 0.0
  %1239 = vmatpush1.msra.mxu0 0.0
  %1240 = vmatprep.subr.mxu0 0.0
  %1241 = vmatpush1.msra.mxu0 0.0
  %1242 = vmatprep.subr.mxu0 0.0
  %1243 = vmatpush1.msra.mxu0 0.0
  %1244 = vmatprep.subr.mxu0 0.0
  %1245 = vmatpush1.msra.mxu0 0.0
  %1246 = vmatprep.subr.mxu0 0.0
  %1247 = vmatpush1.msra.mxu0 0.0
  %1248 = vmatprep.subr.mxu0 0.0
  %1249 = vmatpush1.msra.mxu0 0.0
  %1250 = vmatprep.subr.mxu0 0.0
  %1251 = vmatpush1.msra.mxu0 0.0
  %1252 = vmatprep.subr.mxu0 0.0
  %1253 = vmatpush1.msra.mxu0 0.0
  %1254 = vmatprep.subr.mxu0 0.0
  %1255 = vmatpush1.msra.mxu0 0.0
  %1256 = vmatprep.subr.mxu0 0.0
  %1257 = vmatpush1.msra.mxu0 0.0
  %1258 = vmatprep.subr.mxu0 0.0
  %1259 = vmatpush1.msra.mxu0 0.0
  %1260 = vmatprep.subr.mxu0 0.0
  %1261 = vmatpush1.msra.mxu0 0.0
  %1262 = vmatprep.subr.mxu0 0.0
  %1263 = vmatpush1.msra.mxu0 0.0
  %1264 = vmatprep.subr.mxu0 0.0
  %1265 = vmatpush1.msra.mxu0 0.0
  %1266 = vmatprep.subr.mxu0 0.0
  %1267 = vmatpush1.msra.mxu0 0.0
  %1268 = vmatprep.subr.mxu0 0.0
  %1269 = vmatpush1.msra.mxu0 0.0
  %1270 = vmatprep.subr.mxu0 0.0
  %1271 = vmatpush1.msra.mxu0 0.0
  %1272 = vmatprep.mubr.f32.mxu0 0.0
  %1273 = vmatmul.mubr.f32.gmra.mrb[0].mxu0 %v1204
  %v1274 = vpop.f32.mrb[0].mxu0
  %v1275 = vadd.f32 0.0, %v1274
  %v1276 = vpop.f32.mrb[0].mxu0
  %1277 = vmatprep.mubr.f32.mxu0 0.0
  %1278 = vmatmul.mubr.f32.gmra.mrb[0].mxu0 %v1206
  %v1279 = vpop.f32.mrb[0].mxu0
  %v1280 = vadd.f32 0.0, %v1279
  %v1281 = vpop.f32.mrb[0].mxu0
  %1282 = vdwg.mxu0
  %v1283 = vadd.f32 %v1192, %v1275
  %v1284 = vadd.f32 %v1193, %v1280
  %v1285 = vmul.f32 %v922, %v404
  %v1286 = vmul.f32 %v923, %v404
  %1287 = vrot.lane.b32.xlu0 %v930, 64
  %v1288 = vpop.permute.xlu0 %1287
  %1289 = vrot.lane.b32.xlu0 %v931, 64
  %v1290 = vpop.permute.xlu0 %1289
  %v1291 = vsel %vm944, %v1288, 0
  %v1293 = vsel %vm944, %v1290, 0
  %1295 = vmatprep.subr.mxu0 0.0
  %1296 = vmatpush1.msra.mxu0 %v1285
  %1297 = vmatprep.subr.mxu0 0.0
  %1298 = vmatpush1.msra.mxu0 %v1286
  %1299 = vmatprep.subr.mxu0 0.0
  %1300 = vmatpush1.msra.mxu0 0.0
  %1301 = vmatprep.subr.mxu0 0.0
  %1302 = vmatpush1.msra.mxu0 0.0
  %1303 = vmatprep.subr.mxu0 0.0
  %1304 = vmatpush1.msra.mxu0 0.0
  %1305 = vmatprep.subr.mxu0 0.0
  %1306 = vmatpush1.msra.mxu0 0.0
  %1307 = vmatprep.subr.mxu0 0.0
  %1308 = vmatpush1.msra.mxu0 0.0
  %1309 = vmatprep.subr.mxu0 0.0
  %1310 = vmatpush1.msra.mxu0 0.0
  %1311 = vmatprep.subr.mxu0 0.0
  %1312 = vmatpush1.msra.mxu0 0.0
  %1313 = vmatprep.subr.mxu0 0.0
  %1314 = vmatpush1.msra.mxu0 0.0
  %1315 = vmatprep.subr.mxu0 0.0
  %1316 = vmatpush1.msra.mxu0 0.0
  %1317 = vmatprep.subr.mxu0 0.0
  %1318 = vmatpush1.msra.mxu0 0.0
  %1319 = vmatprep.subr.mxu0 0.0
  %1320 = vmatpush1.msra.mxu0 0.0
  %1321 = vmatprep.subr.mxu0 0.0
  %1322 = vmatpush1.msra.mxu0 0.0
  %1323 = vmatprep.subr.mxu0 0.0
  %1324 = vmatpush1.msra.mxu0 0.0
  %1325 = vmatprep.subr.mxu0 0.0
  %1326 = vmatpush1.msra.mxu0 0.0
  %1327 = vmatprep.subr.mxu0 0.0
  %1328 = vmatpush1.msra.mxu0 0.0
  %1329 = vmatprep.subr.mxu0 0.0
  %1330 = vmatpush1.msra.mxu0 0.0
  %1331 = vmatprep.subr.mxu0 0.0
  %1332 = vmatpush1.msra.mxu0 0.0
  %1333 = vmatprep.subr.mxu0 0.0
  %1334 = vmatpush1.msra.mxu0 0.0
  %1335 = vmatprep.subr.mxu0 0.0
  %1336 = vmatpush1.msra.mxu0 0.0
  %1337 = vmatprep.subr.mxu0 0.0
  %1338 = vmatpush1.msra.mxu0 0.0
  %1339 = vmatprep.subr.mxu0 0.0
  %1340 = vmatpush1.msra.mxu0 0.0
  %1341 = vmatprep.subr.mxu0 0.0
  %1342 = vmatpush1.msra.mxu0 0.0
  %1343 = vmatprep.subr.mxu0 0.0
  %1344 = vmatpush1.msra.mxu0 0.0
  %1345 = vmatprep.subr.mxu0 0.0
  %1346 = vmatpush1.msra.mxu0 0.0
  %1347 = vmatprep.subr.mxu0 0.0
  %1348 = vmatpush1.msra.mxu0 0.0
  %1349 = vmatprep.subr.mxu0 0.0
  %1350 = vmatpush1.msra.mxu0 0.0
  %1351 = vmatprep.subr.mxu0 0.0
  %1352 = vmatpush1.msra.mxu0 0.0
  %1353 = vmatprep.subr.mxu0 0.0
  %1354 = vmatpush1.msra.mxu0 0.0
  %1355 = vmatprep.subr.mxu0 0.0
  %1356 = vmatpush1.msra.mxu0 0.0
  %1357 = vmatprep.subr.mxu0 0.0
  %1358 = vmatpush1.msra.mxu0 0.0
  %1359 = vmatprep.mubr.f32.mxu0 0.0
  %1360 = vmatmul.mubr.f32.gmra.mrb[0].mxu0 %v1291
  %v1361 = vpop.f32.mrb[0].mxu0
  %v1362 = vadd.f32 0.0, %v1361
  %v1363 = vpop.f32.mrb[0].mxu0
  %1364 = vmatprep.mubr.f32.mxu0 0.0
  %1365 = vmatmul.mubr.f32.gmra.mrb[0].mxu0 %v1293
  %v1366 = vpop.f32.mrb[0].mxu0
  %v1367 = vadd.f32 0.0, %v1366
  %v1368 = vpop.f32.mrb[0].mxu0
  %1369 = vdwg.mxu0
  %v1370 = vadd.f32 %v1283, %v1362
  %v1371 = vadd.f32 %v1284, %v1367
  %1372 = vrot.lane.b32.xlu0 %v922, 127
  %v1373 = vpop.permute.xlu0 %1372
  %1374 = vrot.lane.b32.xlu0 %v923, 127
  %v1375 = vpop.permute.xlu0 %1374
  %v1376 = vmul.f32 %v1373, %v499
  %v1377 = vmul.f32 %v1375, %v499
  %1378 = vrot.lane.b32.xlu0 %v930, 48
  %v1379 = vpop.permute.xlu0 %1378
  %1380 = vrot.lane.b32.xlu0 %v931, 48
  %v1381 = vpop.permute.xlu0 %1380
  %v1382 = vsel %vm944, %v1379, 0
  %v1384 = vsel %vm944, %v1381, 0
  %1386 = vmatprep.subr.mxu0 0.0
  %1387 = vmatpush1.msra.mxu0 %v1376
  %1388 = vmatprep.subr.mxu0 0.0
  %1389 = vmatpush1.msra.mxu0 %v1377
  %1390 = vmatprep.subr.mxu0 0.0
  %1391 = vmatpush1.msra.mxu0 0.0
  %1392 = vmatprep.subr.mxu0 0.0
  %1393 = vmatpush1.msra.mxu0 0.0
  %1394 = vmatprep.subr.mxu0 0.0
  %1395 = vmatpush1.msra.mxu0 0.0
  %1396 = vmatprep.subr.mxu0 0.0
  %1397 = vmatpush1.msra.mxu0 0.0
  %1398 = vmatprep.subr.mxu0 0.0
  %1399 = vmatpush1.msra.mxu0 0.0
  %1400 = vmatprep.subr.mxu0 0.0
  %1401 = vmatpush1.msra.mxu0 0.0
  %1402 = vmatprep.subr.mxu0 0.0
  %1403 = vmatpush1.msra.mxu0 0.0
  %1404 = vmatprep.subr.mxu0 0.0
  %1405 = vmatpush1.msra.mxu0 0.0
  %1406 = vmatprep.subr.mxu0 0.0
  %1407 = vmatpush1.msra.mxu0 0.0
  %1408 = vmatprep.subr.mxu0 0.0
  %1409 = vmatpush1.msra.mxu0 0.0
  %1410 = vmatprep.subr.mxu0 0.0
  %1411 = vmatpush1.msra.mxu0 0.0
  %1412 = vmatprep.subr.mxu0 0.0
  %1413 = vmatpush1.msra.mxu0 0.0
  %1414 = vmatprep.subr.mxu0 0.0
  %1415 = vmatpush1.msra.mxu0 0.0
  %1416 = vmatprep.subr.mxu0 0.0
  %1417 = vmatpush1.msra.mxu0 0.0
  %1418 = vmatprep.subr.mxu0 0.0
  %1419 = vmatpush1.msra.mxu0 0.0
  %1420 = vmatprep.subr.mxu0 0.0
  %1421 = vmatpush1.msra.mxu0 0.0
  %1422 = vmatprep.subr.mxu0 0.0
  %1423 = vmatpush1.msra.mxu0 0.0
  %1424 = vmatprep.subr.mxu0 0.0
  %1425 = vmatpush1.msra.mxu0 0.0
  %1426 = vmatprep.subr.mxu0 0.0
  %1427 = vmatpush1.msra.mxu0 0.0
  %1428 = vmatprep.subr.mxu0 0.0
  %1429 = vmatpush1.msra.mxu0 0.0
  %1430 = vmatprep.subr.mxu0 0.0
  %1431 = vmatpush1.msra.mxu0 0.0
  %1432 = vmatprep.subr.mxu0 0.0
  %1433 = vmatpush1.msra.mxu0 0.0
  %1434 = vmatprep.subr.mxu0 0.0
  %1435 = vmatpush1.msra.mxu0 0.0
  %1436 = vmatprep.subr.mxu0 0.0
  %1437 = vmatpush1.msra.mxu0 0.0
  %1438 = vmatprep.subr.mxu0 0.0
  %1439 = vmatpush1.msra.mxu0 0.0
  %1440 = vmatprep.subr.mxu0 0.0
  %1441 = vmatpush1.msra.mxu0 0.0
  %1442 = vmatprep.subr.mxu0 0.0
  %1443 = vmatpush1.msra.mxu0 0.0
  %1444 = vmatprep.subr.mxu0 0.0
  %1445 = vmatpush1.msra.mxu0 0.0
  %1446 = vmatprep.subr.mxu0 0.0
  %1447 = vmatpush1.msra.mxu0 0.0
  %1448 = vmatprep.subr.mxu0 0.0
  %1449 = vmatpush1.msra.mxu0 0.0
  %1450 = vmatprep.mubr.f32.mxu0 0.0
  %1451 = vmatmul.mubr.f32.gmra.mrb[0].mxu0 %v1382
  %v1452 = vpop.f32.mrb[0].mxu0
  %v1453 = vadd.f32 0.0, %v1452
  %v1454 = vpop.f32.mrb[0].mxu0
  %1455 = vmatprep.mubr.f32.mxu0 0.0
  %1456 = vmatmul.mubr.f32.gmra.mrb[0].mxu0 %v1384
  %v1457 = vpop.f32.mrb[0].mxu0
  %v1458 = vadd.f32 0.0, %v1457
  %v1459 = vpop.f32.mrb[0].mxu0
  %1460 = vdwg.mxu0
  %v1461 = vadd.f32 %v1370, %v1453
  %v1462 = vadd.f32 %v1371, %v1458
  %1463 = vrot.lane.b32.xlu0 %v922, 121
  %v1464 = vpop.permute.xlu0 %1463
  %1465 = vrot.lane.b32.xlu0 %v923, 121
  %v1466 = vpop.permute.xlu0 %1465
  %v1467 = vmul.f32 %v1464, %v594
  %v1468 = vmul.f32 %v1466, %v594
  %1469 = vrot.lane.b32.xlu0 %v930, 32
  %v1470 = vpop.permute.xlu0 %1469
  %1471 = vrot.lane.b32.xlu0 %v931, 32
  %v1472 = vpop.permute.xlu0 %1471
  %v1473 = vsel %vm944, %v1470, 0
  %v1475 = vsel %vm944, %v1472, 0
  %1477 = vmatprep.subr.mxu0 0.0
  %1478 = vmatpush1.msra.mxu0 %v1467
  %1479 = vmatprep.subr.mxu0 0.0
  %1480 = vmatpush1.msra.mxu0 %v1468
  %1481 = vmatprep.subr.mxu0 0.0
  %1482 = vmatpush1.msra.mxu0 0.0
  %1483 = vmatprep.subr.mxu0 0.0
  %1484 = vmatpush1.msra.mxu0 0.0
  %1485 = vmatprep.subr.mxu0 0.0
  %1486 = vmatpush1.msra.mxu0 0.0
  %1487 = vmatprep.subr.mxu0 0.0
  %1488 = vmatpush1.msra.mxu0 0.0
  %1489 = vmatprep.subr.mxu0 0.0
  %1490 = vmatpush1.msra.mxu0 0.0
  %1491 = vmatprep.subr.mxu0 0.0
  %1492 = vmatpush1.msra.mxu0 0.0
  %1493 = vmatprep.subr.mxu0 0.0
  %1494 = vmatpush1.msra.mxu0 0.0
  %1495 = vmatprep.subr.mxu0 0.0
  %1496 = vmatpush1.msra.mxu0 0.0
  %1497 = vmatprep.subr.mxu0 0.0
  %1498 = vmatpush1.msra.mxu0 0.0
  %1499 = vmatprep.subr.mxu0 0.0
  %1500 = vmatpush1.msra.mxu0 0.0
  %1501 = vmatprep.subr.mxu0 0.0
  %1502 = vmatpush1.msra.mxu0 0.0
  %1503 = vmatprep.subr.mxu0 0.0
  %1504 = vmatpush1.msra.mxu0 0.0
  %1505 = vmatprep.subr.mxu0 0.0
  %1506 = vmatpush1.msra.mxu0 0.0
  %1507 = vmatprep.subr.mxu0 0.0
  %1508 = vmatpush1.msra.mxu0 0.0
  %1509 = vmatprep.subr.mxu0 0.0
  %1510 = vmatpush1.msra.mxu0 0.0
  %1511 = vmatprep.subr.mxu0 0.0
  %1512 = vmatpush1.msra.mxu0 0.0
  %1513 = vmatprep.subr.mxu0 0.0
  %1514 = vmatpush1.msra.mxu0 0.0
  %1515 = vmatprep.subr.mxu0 0.0
  %1516 = vmatpush1.msra.mxu0 0.0
  %1517 = vmatprep.subr.mxu0 0.0
  %1518 = vmatpush1.msra.mxu0 0.0
  %1519 = vmatprep.subr.mxu0 0.0
  %1520 = vmatpush1.msra.mxu0 0.0
  %1521 = vmatprep.subr.mxu0 0.0
  %1522 = vmatpush1.msra.mxu0 0.0
  %1523 = vmatprep.subr.mxu0 0.0
  %1524 = vmatpush1.msra.mxu0 0.0
  %1525 = vmatprep.subr.mxu0 0.0
  %1526 = vmatpush1.msra.mxu0 0.0
  %1527 = vmatprep.subr.mxu0 0.0
  %1528 = vmatpush1.msra.mxu0 0.0
  %1529 = vmatprep.subr.mxu0 0.0
  %1530 = vmatpush1.msra.mxu0 0.0
  %1531 = vmatprep.subr.mxu0 0.0
  %1532 = vmatpush1.msra.mxu0 0.0
  %1533 = vmatprep.subr.mxu0 0.0
  %1534 = vmatpush1.msra.mxu0 0.0
  %1535 = vmatprep.subr.mxu0 0.0
  %1536 = vmatpush1.msra.mxu0 0.0
  %1537 = vmatprep.subr.mxu0 0.0
  %1538 = vmatpush1.msra.mxu0 0.0
  %1539 = vmatprep.subr.mxu0 0.0
  %1540 = vmatpush1.msra.mxu0 0.0
  %1541 = vmatprep.mubr.f32.mxu0 0.0
  %1542 = vmatmul.mubr.f32.gmra.mrb[0].mxu0 %v1473
  %v1543 = vpop.f32.mrb[0].mxu0
  %v1544 = vadd.f32 0.0, %v1543
  %v1545 = vpop.f32.mrb[0].mxu0
  %1546 = vmatprep.mubr.f32.mxu0 0.0
  %1547 = vmatmul.mubr.f32.gmra.mrb[0].mxu0 %v1475
  %v1548 = vpop.f32.mrb[0].mxu0
  %v1549 = vadd.f32 0.0, %v1548
  %v1550 = vpop.f32.mrb[0].mxu0
  %1551 = vdwg.mxu0
  %v1552 = vadd.f32 %v1461, %v1544
  %v1553 = vadd.f32 %v1462, %v1549
  %1554 = vrot.lane.b32.xlu0 %v922, 120
  %v1555 = vpop.permute.xlu0 %1554
  %1556 = vrot.lane.b32.xlu0 %v923, 120
  %v1557 = vpop.permute.xlu0 %1556
  %v1558 = vmul.f32 %v1555, %v689
  %v1559 = vmul.f32 %v1557, %v689
  %1560 = vrot.lane.b32.xlu0 %v930, 16
  %v1561 = vpop.permute.xlu0 %1560
  %1562 = vrot.lane.b32.xlu0 %v931, 16
  %v1563 = vpop.permute.xlu0 %1562
  %v1564 = vsel %vm944, %v1561, 0
  %v1566 = vsel %vm944, %v1563, 0
  %1568 = vmatprep.subr.mxu0 0.0
  %1569 = vmatpush1.msra.mxu0 %v1558
  %1570 = vmatprep.subr.mxu0 0.0
  %1571 = vmatpush1.msra.mxu0 %v1559
  %1572 = vmatprep.subr.mxu0 0.0
  %1573 = vmatpush1.msra.mxu0 0.0
  %1574 = vmatprep.subr.mxu0 0.0
  %1575 = vmatpush1.msra.mxu0 0.0
  %1576 = vmatprep.subr.mxu0 0.0
  %1577 = vmatpush1.msra.mxu0 0.0
  %1578 = vmatprep.subr.mxu0 0.0
  %1579 = vmatpush1.msra.mxu0 0.0
  %1580 = vmatprep.subr.mxu0 0.0
  %1581 = vmatpush1.msra.mxu0 0.0
  %1582 = vmatprep.subr.mxu0 0.0
  %1583 = vmatpush1.msra.mxu0 0.0
  %1584 = vmatprep.subr.mxu0 0.0
  %1585 = vmatpush1.msra.mxu0 0.0
  %1586 = vmatprep.subr.mxu0 0.0
  %1587 = vmatpush1.msra.mxu0 0.0
  %1588 = vmatprep.subr.mxu0 0.0
  %1589 = vmatpush1.msra.mxu0 0.0
  %1590 = vmatprep.subr.mxu0 0.0
  %1591 = vmatpush1.msra.mxu0 0.0
  %1592 = vmatprep.subr.mxu0 0.0
  %1593 = vmatpush1.msra.mxu0 0.0
  %1594 = vmatprep.subr.mxu0 0.0
  %1595 = vmatpush1.msra.mxu0 0.0
  %1596 = vmatprep.subr.mxu0 0.0
  %1597 = vmatpush1.msra.mxu0 0.0
  %1598 = vmatprep.subr.mxu0 0.0
  %1599 = vmatpush1.msra.mxu0 0.0
  %1600 = vmatprep.subr.mxu0 0.0
  %1601 = vmatpush1.msra.mxu0 0.0
  %1602 = vmatprep.subr.mxu0 0.0
  %1603 = vmatpush1.msra.mxu0 0.0
  %1604 = vmatprep.subr.mxu0 0.0
  %1605 = vmatpush1.msra.mxu0 0.0
  %1606 = vmatprep.subr.mxu0 0.0
  %1607 = vmatpush1.msra.mxu0 0.0
  %1608 = vmatprep.subr.mxu0 0.0
  %1609 = vmatpush1.msra.mxu0 0.0
  %1610 = vmatprep.subr.mxu0 0.0
  %1611 = vmatpush1.msra.mxu0 0.0
  %1612 = vmatprep.subr.mxu0 0.0
  %1613 = vmatpush1.msra.mxu0 0.0
  %1614 = vmatprep.subr.mxu0 0.0
  %1615 = vmatpush1.msra.mxu0 0.0
  %1616 = vmatprep.subr.mxu0 0.0
  %1617 = vmatpush1.msra.mxu0 0.0
  %1618 = vmatprep.subr.mxu0 0.0
  %1619 = vmatpush1.msra.mxu0 0.0
  %1620 = vmatprep.subr.mxu0 0.0
  %1621 = vmatpush1.msra.mxu0 0.0
  %1622 = vmatprep.subr.mxu0 0.0
  %1623 = vmatpush1.msra.mxu0 0.0
  %1624 = vmatprep.subr.mxu0 0.0
  %1625 = vmatpush1.msra.mxu0 0.0
  %1626 = vmatprep.subr.mxu0 0.0
  %1627 = vmatpush1.msra.mxu0 0.0
  %1628 = vmatprep.subr.mxu0 0.0
  %1629 = vmatpush1.msra.mxu0 0.0
  %1630 = vmatprep.subr.mxu0 0.0
  %1631 = vmatpush1.msra.mxu0 0.0
  %1632 = vmatprep.mubr.f32.mxu0 0.0
  %1633 = vmatmul.mubr.f32.gmra.mrb[0].mxu0 %v1564
  %v1634 = vpop.f32.mrb[0].mxu0
  %v1635 = vadd.f32 0.0, %v1634
  %v1636 = vpop.f32.mrb[0].mxu0
  %1637 = vmatprep.mubr.f32.mxu0 0.0
  %1638 = vmatmul.mubr.f32.gmra.mrb[0].mxu0 %v1566
  %v1639 = vpop.f32.mrb[0].mxu0
  %v1640 = vadd.f32 0.0, %v1639
  %v1641 = vpop.f32.mrb[0].mxu0
  %1642 = vdwg.mxu0
  %v1643 = vadd.f32 %v1552, %v1635
  %v1644 = vadd.f32 %v1553, %v1640
  %1645 = vrot.lane.b32.xlu0 %v922, 119
  %v1646 = vpop.permute.xlu0 %1645
  %1647 = vrot.lane.b32.xlu0 %v923, 119
  %v1648 = vpop.permute.xlu0 %1647
  %v1649 = vmul.f32 %v1646, %v784
  %v1650 = vmul.f32 %v1648, %v784
  %v1651 = vld [vmem:[%s2 + $0x28] sm:$0xff]
  %v1652 = vld [vmem:[%s2 + $0x38] sm:$0xff]
  %v1654 = vsel %vm944, %v1651, 0
  %v1657 = vsel %vm944, %v1652, 0
  %1659 = vmatprep.subr.mxu0 0.0
  %1660 = vmatpush1.msra.mxu0 %v1649
  %1661 = vmatprep.subr.mxu0 0.0
  %1662 = vmatpush1.msra.mxu0 %v1650
  %1663 = vmatprep.subr.mxu0 0.0
  %1664 = vmatpush1.msra.mxu0 0.0
  %1665 = vmatprep.subr.mxu0 0.0
  %1666 = vmatpush1.msra.mxu0 0.0
  %1667 = vmatprep.subr.mxu0 0.0
  %1668 = vmatpush1.msra.mxu0 0.0
  %1669 = vmatprep.subr.mxu0 0.0
  %1670 = vmatpush1.msra.mxu0 0.0
  %1671 = vmatprep.subr.mxu0 0.0
  %1672 = vmatpush1.msra.mxu0 0.0
  %1673 = vmatprep.subr.mxu0 0.0
  %1674 = vmatpush1.msra.mxu0 0.0
  %1675 = vmatprep.subr.mxu0 0.0
  %1676 = vmatpush1.msra.mxu0 0.0
  %1677 = vmatprep.subr.mxu0 0.0
  %1678 = vmatpush1.msra.mxu0 0.0
  %1679 = vmatprep.subr.mxu0 0.0
  %1680 = vmatpush1.msra.mxu0 0.0
  %1681 = vmatprep.subr.mxu0 0.0
  %1682 = vmatpush1.msra.mxu0 0.0
  %1683 = vmatprep.subr.mxu0 0.0
  %1684 = vmatpush1.msra.mxu0 0.0
  %1685 = vmatprep.subr.mxu0 0.0
  %1686 = vmatpush1.msra.mxu0 0.0
  %1687 = vmatprep.subr.mxu0 0.0
  %1688 = vmatpush1.msra.mxu0 0.0
  %1689 = vmatprep.subr.mxu0 0.0
  %1690 = vmatpush1.msra.mxu0 0.0
  %1691 = vmatprep.subr.mxu0 0.0
  %1692 = vmatpush1.msra.mxu0 0.0
  %1693 = vmatprep.subr.mxu0 0.0
  %1694 = vmatpush1.msra.mxu0 0.0
  %1695 = vmatprep.subr.mxu0 0.0
  %1696 = vmatpush1.msra.mxu0 0.0
  %1697 = vmatprep.subr.mxu0 0.0
  %1698 = vmatpush1.msra.mxu0 0.0
  %1699 = vmatprep.subr.mxu0 0.0
  %1700 = vmatpush1.msra.mxu0 0.0
  %1701 = vmatprep.subr.mxu0 0.0
  %1702 = vmatpush1.msra.mxu0 0.0
  %1703 = vmatprep.subr.mxu0 0.0
  %1704 = vmatpush1.msra.mxu0 0.0
  %1705 = vmatprep.subr.mxu0 0.0
  %1706 = vmatpush1.msra.mxu0 0.0
  %1707 = vmatprep.subr.mxu0 0.0
  %1708 = vmatpush1.msra.mxu0 0.0
  %1709 = vmatprep.subr.mxu0 0.0
  %1710 = vmatpush1.msra.mxu0 0.0
  %1711 = vmatprep.subr.mxu0 0.0
  %1712 = vmatpush1.msra.mxu0 0.0
  %1713 = vmatprep.subr.mxu0 0.0
  %1714 = vmatpush1.msra.mxu0 0.0
  %1715 = vmatprep.subr.mxu0 0.0
  %1716 = vmatpush1.msra.mxu0 0.0
  %1717 = vmatprep.subr.mxu0 0.0
  %1718 = vmatpush1.msra.mxu0 0.0
  %1719 = vmatprep.subr.mxu0 0.0
  %1720 = vmatpush1.msra.mxu0 0.0
  %1721 = vmatprep.subr.mxu0 0.0
  %1722 = vmatpush1.msra.mxu0 0.0
  %1723 = vmatprep.mubr.f32.mxu0 0.0
  %1724 = vmatmul.mubr.f32.gmra.mrb[0].mxu0 %v1654
  %v1725 = vpop.f32.mrb[0].mxu0
  %v1726 = vadd.f32 0.0, %v1725
  %v1727 = vpop.f32.mrb[0].mxu0
  %1728 = vmatprep.mubr.f32.mxu0 0.0
  %1729 = vmatmul.mubr.f32.gmra.mrb[0].mxu0 %v1657
  %v1730 = vpop.f32.mrb[0].mxu0
  %v1731 = vadd.f32 0.0, %v1730
  %v1732 = vpop.f32.mrb[0].mxu0
  %1733 = vdwg.mxu0
  %v1734 = vadd.f32 %v1643, %v1726
  %v1735 = vadd.f32 %v1644, %v1731
  %1736 = vadd.xlane.f32.xlu0 %v1734
  %v1737 = vpop.xlane.xlu0 %1736
  %1738 = vadd.xlane.f32.xlu0 %v1735
  %v1739 = vpop.xlane.xlu0 %1738
  %v1740 = vmul.f32 %v1737, 0.0078125
  %v1741 = vmul.f32 %v1739, 0.0078125
  %v1742 = vsub.f32 %v1734, %v1740
  %v1743 = vsub.f32 %v1735, %v1741
  %v1744 = vmul.f32 %v1742, %v1742
  %v1745 = vmul.f32 %v1743, %v1743
  %1746 = vadd.xlane.f32.xlu0 %v1744
  %v1747 = vpop.xlane.xlu0 %1746
  %1748 = vadd.xlane.f32.xlu0 %v1745
  %v1749 = vpop.xlane.xlu0 %1748
  %v1750 = vmul.f32 %v1747, 0.0078125
  %v1751 = vmul.f32 %v1749, 0.0078125
  %v1752 = vadd.f32 %v1750, 1e-05
  %v1753 = vadd.f32 %v1751, 1e-05
  %v1754 = vrsqrt.pop %v1752
  %v1755 = vrsqrt.pop %v1753
  %v1756 = vmul.f32 %v874, %v1754
  %v1757 = vmul.f32 %v875, %v1755
  %1759 = vset.pattern.permute.xlu0 2
  %1760 = vperm.xlu0 %1759, %v1756
  %v1761 = vpop.permute.xlu0 %1760
  %1764 = vset.pattern.permute.xlu0 2
  %1765 = vperm.xlu0 %1764, %v1757
  %v1766 = vpop.permute.xlu0 %1765
  %v1768 = vmul.f32 %v1742, %v1761
  %v1769 = vmul.f32 %v1743, %v1766
  %1770 = vset.pattern.permute.xlu0 3
  %1771 = vperm.xlu0 %1770, %v874
  %v1772 = vpop.permute.xlu0 %1771
  %1774 = vset.pattern.permute.xlu0 3
  %1775 = vperm.xlu0 %1774, %v875
  %v1776 = vpop.permute.xlu0 %1775
  %v1778 = vadd.f32 %v1768, %v1772
  %v1779 = vadd.f32 %v1769, %v1776
  %v1780 = vmax.f32 %v1778, 0.0
  %v1781 = vmax.f32 %v1779, 0.0
  %1782 = vrot.lane.b32.xlu0 %v1780, 9
  %v1783 = vpop.permute.xlu0 %1782
  %1784 = vrot.lane.b32.xlu0 %v1781, 9
  %v1785 = vpop.permute.xlu0 %1784
  %v1786 = vmul.f32 %v1783, %v28
  %v1787 = vmul.f32 %v1785, %v28
  %v1788 = vld [vmem:[%s2 + $0x40] sm:$0xff]
  %v1789 = vld [vmem:[%s2 + $0x50] sm:$0xff]
  %1790 = vrot.lane.b32.xlu0 %v1780, 8
  %v1791 = vpop.permute.xlu0 %1790
  %1792 = vrot.lane.b32.xlu0 %v1781, 8
  %v1793 = vpop.permute.xlu0 %1792
  %v1794 = vmul.f32 %v1791, %v37
  %v1795 = vmul.f32 %v1793, %v37
  %1798 = vrot.lane.b32.xlu0 %v1788, 112
  %v1799 = vpop.permute.xlu0 %1798
  %1800 = vrot.lane.b32.xlu0 %v1789, 112
  %v1801 = vpop.permute.xlu0 %1800
  %v1802 = vsel %vm944, %v1799, 0
  %v1804 = vsel %vm944, %v1801, 0
  %1806 = vmatprep.subr.mxu0 0.0
  %1807 = vmatpush1.msra.mxu0 %v1794
  %1808 = vmatprep.subr.mxu0 0.0
  %1809 = vmatpush1.msra.mxu0 %v1795
  %1810 = vmatprep.subr.mxu0 0.0
  %1811 = vmatpush1.msra.mxu0 0.0
  %1812 = vmatprep.subr.mxu0 0.0
  %1813 = vmatpush1.msra.mxu0 0.0
  %1814 = vmatprep.subr.mxu0 0.0
  %1815 = vmatpush1.msra.mxu0 0.0
  %1816 = vmatprep.subr.mxu0 0.0
  %1817 = vmatpush1.msra.mxu0 0.0
  %1818 = vmatprep.subr.mxu0 0.0
  %1819 = vmatpush1.msra.mxu0 0.0
  %1820 = vmatprep.subr.mxu0 0.0
  %1821 = vmatpush1.msra.mxu0 0.0
  %1822 = vmatprep.subr.mxu0 0.0
  %1823 = vmatpush1.msra.mxu0 0.0
  %1824 = vmatprep.subr.mxu0 0.0
  %1825 = vmatpush1.msra.mxu0 0.0
  %1826 = vmatprep.subr.mxu0 0.0
  %1827 = vmatpush1.msra.mxu0 0.0
  %1828 = vmatprep.subr.mxu0 0.0
  %1829 = vmatpush1.msra.mxu0 0.0
  %1830 = vmatprep.subr.mxu0 0.0
  %1831 = vmatpush1.msra.mxu0 0.0
  %1832 = vmatprep.subr.mxu0 0.0
  %1833 = vmatpush1.msra.mxu0 0.0
  %1834 = vmatprep.subr.mxu0 0.0
  %1835 = vmatpush1.msra.mxu0 0.0
  %1836 = vmatprep.subr.mxu0 0.0
  %1837 = vmatpush1.msra.mxu0 0.0
  %1838 = vmatprep.subr.mxu0 0.0
  %1839 = vmatpush1.msra.mxu0 0.0
  %1840 = vmatprep.subr.mxu0 0.0
  %1841 = vmatpush1.msra.mxu0 0.0
  %1842 = vmatprep.subr.mxu0 0.0
  %1843 = vmatpush1.msra.mxu0 0.0
  %1844 = vmatprep.subr.mxu0 0.0
  %1845 = vmatpush1.msra.mxu0 0.0
  %1846 = vmatprep.subr.mxu0 0.0
  %1847 = vmatpush1.msra.mxu0 0.0
  %1848 = vmatprep.subr.mxu0 0.0
  %1849 = vmatpush1.msra.mxu0 0.0
  %1850 = vmatprep.subr.mxu0 0.0
  %1851 = vmatpush1.msra.mxu0 0.0
  %1852 = vmatprep.subr.mxu0 0.0
  %1853 = vmatpush1.msra.mxu0 0.0
  %1854 = vmatprep.subr.mxu0 0.0
  %1855 = vmatpush1.msra.mxu0 0.0
  %1856 = vmatprep.subr.mxu0 0.0
  %1857 = vmatpush1.msra.mxu0 0.0
  %1858 = vmatprep.subr.mxu0 0.0
  %1859 = vmatpush1.msra.mxu0 0.0
  %1860 = vmatprep.subr.mxu0 0.0
  %1861 = vmatpush1.msra.mxu0 0.0
  %1862 = vmatprep.subr.mxu0 0.0
  %1863 = vmatpush1.msra.mxu0 0.0
  %1864 = vmatprep.subr.mxu0 0.0
  %1865 = vmatpush1.msra.mxu0 0.0
  %1866 = vmatprep.subr.mxu0 0.0
  %1867 = vmatpush1.msra.mxu0 0.0
  %1868 = vmatprep.subr.mxu0 0.0
  %1869 = vmatpush1.msra.mxu0 0.0
  %1870 = vmatprep.mubr.f32.mxu0 0.0
  %1871 = vmatmul.mubr.f32.gmra.mrb[0].mxu0 %v1802
  %v1872 = vpop.f32.mrb[0].mxu0
  %v1873 = vadd.f32 0.0, %v1872
  %v1874 = vpop.f32.mrb[0].mxu0
  %1875 = vmatprep.mubr.f32.mxu0 0.0
  %1876 = vmatmul.mubr.f32.gmra.mrb[0].mxu0 %v1804
  %v1877 = vpop.f32.mrb[0].mxu0
  %v1878 = vadd.f32 0.0, %v1877
  %v1879 = vpop.f32.mrb[0].mxu0
  %1880 = vdwg.mxu0
  %v1881 = vsel %vm944, %v1788, 0
  %v1883 = vsel %vm944, %v1789, 0
  %1885 = vmatprep.subr.mxu0 0.0
  %1886 = vmatpush1.msra.mxu0 %v1786
  %1887 = vmatprep.subr.mxu0 0.0
  %1888 = vmatpush1.msra.mxu0 %v1787
  %1889 = vmatprep.subr.mxu0 0.0
  %1890 = vmatpush1.msra.mxu0 0.0
  %1891 = vmatprep.subr.mxu0 0.0
  %1892 = vmatpush1.msra.mxu0 0.0
  %1893 = vmatprep.subr.mxu0 0.0
  %1894 = vmatpush1.msra.mxu0 0.0
  %1895 = vmatprep.subr.mxu0 0.0
  %1896 = vmatpush1.msra.mxu0 0.0
  %1897 = vmatprep.subr.mxu0 0.0
  %1898 = vmatpush1.msra.mxu0 0.0
  %1899 = vmatprep.subr.mxu0 0.0
  %1900 = vmatpush1.msra.mxu0 0.0
  %1901 = vmatprep.subr.mxu0 0.0
  %1902 = vmatpush1.msra.mxu0 0.0
  %1903 = vmatprep.subr.mxu0 0.0
  %1904 = vmatpush1.msra.mxu0 0.0
  %1905 = vmatprep.subr.mxu0 0.0
  %1906 = vmatpush1.msra.mxu0 0.0
  %1907 = vmatprep.subr.mxu0 0.0
  %1908 = vmatpush1.msra.mxu0 0.0
  %1909 = vmatprep.subr.mxu0 0.0
  %1910 = vmatpush1.msra.mxu0 0.0
  %1911 = vmatprep.subr.mxu0 0.0
  %1912 = vmatpush1.msra.mxu0 0.0
  %1913 = vmatprep.subr.mxu0 0.0
  %1914 = vmatpush1.msra.mxu0 0.0
  %1915 = vmatprep.subr.mxu0 0.0
  %1916 = vmatpush1.msra.mxu0 0.0
  %1917 = vmatprep.subr.mxu0 0.0
  %1918 = vmatpush1.msra.mxu0 0.0
  %1919 = vmatprep.subr.mxu0 0.0
  %1920 = vmatpush1.msra.mxu0 0.0
  %1921 = vmatprep.subr.mxu0 0.0
  %1922 = vmatpush1.msra.mxu0 0.0
  %1923 = vmatprep.subr.mxu0 0.0
  %1924 = vmatpush1.msra.mxu0 0.0
  %1925 = vmatprep.subr.mxu0 0.0
  %1926 = vmatpush1.msra.mxu0 0.0
  %1927 = vmatprep.subr.mxu0 0.0
  %1928 = vmatpush1.msra.mxu0 0.0
  %1929 = vmatprep.subr.mxu0 0.0
  %1930 = vmatpush1.msra.mxu0 0.0
  %1931 = vmatprep.subr.mxu0 0.0
  %1932 = vmatpush1.msra.mxu0 0.0
  %1933 = vmatprep.subr.mxu0 0.0
  %1934 = vmatpush1.msra.mxu0 0.0
  %1935 = vmatprep.subr.mxu0 0.0
  %1936 = vmatpush1.msra.mxu0 0.0
  %1937 = vmatprep.subr.mxu0 0.0
  %1938 = vmatpush1.msra.mxu0 0.0
  %1939 = vmatprep.subr.mxu0 0.0
  %1940 = vmatpush1.msra.mxu0 0.0
  %1941 = vmatprep.subr.mxu0 0.0
  %1942 = vmatpush1.msra.mxu0 0.0
  %1943 = vmatprep.subr.mxu0 0.0
  %1944 = vmatpush1.msra.mxu0 0.0
  %1945 = vmatprep.subr.mxu0 0.0
  %1946 = vmatpush1.msra.mxu0 0.0
  %1947 = vmatprep.subr.mxu0 0.0
  %1948 = vmatpush1.msra.mxu0 0.0
  %1949 = vmatprep.mubr.f32.mxu0 0.0
  %1950 = vmatmul.mubr.f32.gmra.mrb[0].mxu0 %v1881
  %v1951 = vpop.f32.mrb[0].mxu0
  %v1952 = vadd.f32 %v1873, %v1951
  %v1953 = vpop.f32.mrb[0].mxu0
  %1954 = vmatprep.mubr.f32.mxu0 0.0
  %1955 = vmatmul.mubr.f32.gmra.mrb[0].mxu0 %v1883
  %v1956 = vpop.f32.mrb[0].mxu0
  %v1957 = vadd.f32 %v1878, %v1956
  %v1958 = vpop.f32.mrb[0].mxu0
  %1959 = vdwg.mxu0
  %1960 = vrot.lane.b32.xlu0 %v1780, 7
  %v1961 = vpop.permute.xlu0 %1960
  %1962 = vrot.lane.b32.xlu0 %v1781, 7
  %v1963 = vpop.permute.xlu0 %1962
  %v1964 = vmul.f32 %v1961, %v216
  %v1965 = vmul.f32 %v1963, %v216
  %1966 = vrot.lane.b32.xlu0 %v1788, 96
  %v1967 = vpop.permute.xlu0 %1966
  %1968 = vrot.lane.b32.xlu0 %v1789, 96
  %v1969 = vpop.permute.xlu0 %1968
  %v1970 = vsel %vm944, %v1967, 0
  %v1972 = vsel %vm944, %v1969, 0
  %1974 = vmatprep.subr.mxu0 0.0
  %1975 = vmatpush1.msra.mxu0 %v1964
  %1976 = vmatprep.subr.mxu0 0.0
  %1977 = vmatpush1.msra.mxu0 %v1965
  %1978 = vmatprep.subr.mxu0 0.0
  %1979 = vmatpush1.msra.mxu0 0.0
  %1980 = vmatprep.subr.mxu0 0.0
  %1981 = vmatpush1.msra.mxu0 0.0
  %1982 = vmatprep.subr.mxu0 0.0
  %1983 = vmatpush1.msra.mxu0 0.0
  %1984 = vmatprep.subr.mxu0 0.0
  %1985 = vmatpush1.msra.mxu0 0.0
  %1986 = vmatprep.subr.mxu0 0.0
  %1987 = vmatpush1.msra.mxu0 0.0
  %1988 = vmatprep.subr.mxu0 0.0
  %1989 = vmatpush1.msra.mxu0 0.0
  %1990 = vmatprep.subr.mxu0 0.0
  %1991 = vmatpush1.msra.mxu0 0.0
  %1992 = vmatprep.subr.mxu0 0.0
  %1993 = vmatpush1.msra.mxu0 0.0
  %1994 = vmatprep.subr.mxu0 0.0
  %1995 = vmatpush1.msra.mxu0 0.0
  %1996 = vmatprep.subr.mxu0 0.0
  %1997 = vmatpush1.msra.mxu0 0.0
  %1998 = vmatprep.subr.mxu0 0.0
  %1999 = vmatpush1.msra.mxu0 0.0
  %2000 = vmatprep.subr.mxu0 0.0
  %2001 = vmatpush1.msra.mxu0 0.0
  %2002 = vmatprep.subr.mxu0 0.0
  %2003 = vmatpush1.msra.mxu0 0.0
  %2004 = vmatprep.subr.mxu0 0.0
  %2005 = vmatpush1.msra.mxu0 0.0
  %2006 = vmatprep.subr.mxu0 0.0
  %2007 = vmatpush1.msra.mxu0 0.0
  %2008 = vmatprep.subr.mxu0 0.0
  %2009 = vmatpush1.msra.mxu0 0.0
  %2010 = vmatprep.subr.mxu0 0.0
  %2011 = vmatpush1.msra.mxu0 0.0
  %2012 = vmatprep.subr.mxu0 0.0
  %2013 = vmatpush1.msra.mxu0 0.0
  %2014 = vmatprep.subr.mxu0 0.0
  %2015 = vmatpush1.msra.mxu0 0.0
  %2016 = vmatprep.subr.mxu0 0.0
  %2017 = vmatpush1.msra.mxu0 0.0
  %2018 = vmatprep.subr.mxu0 0.0
  %2019 = vmatpush1.msra.mxu0 0.0
  %2020 = vmatprep.subr.mxu0 0.0
  %2021 = vmatpush1.msra.mxu0 0.0
  %2022 = vmatprep.subr.mxu0 0.0
  %2023 = vmatpush1.msra.mxu0 0.0
  %2024 = vmatprep.subr.mxu0 0.0
  %2025 = vmatpush1.msra.mxu0 0.0
  %2026 = vmatprep.subr.mxu0 0.0
  %2027 = vmatpush1.msra.mxu0 0.0
  %2028 = vmatprep.subr.mxu0 0.0
  %2029 = vmatpush1.msra.mxu0 0.0
  %2030 = vmatprep.subr.mxu0 0.0
  %2031 = vmatpush1.msra.mxu0 0.0
  %2032 = vmatprep.subr.mxu0 0.0
  %2033 = vmatpush1.msra.mxu0 0.0
  %2034 = vmatprep.subr.mxu0 0.0
  %2035 = vmatpush1.msra.mxu0 0.0
  %2036 = vmatprep.subr.mxu0 0.0
  %2037 = vmatpush1.msra.mxu0 0.0
  %2038 = vmatprep.mubr.f32.mxu0 0.0
  %2039 = vmatmul.mubr.f32.gmra.mrb[0].mxu0 %v1970
  %v2040 = vpop.f32.mrb[0].mxu0
  %v2041 = vadd.f32 0.0, %v2040
  %v2042 = vpop.f32.mrb[0].mxu0
  %2043 = vmatprep.mubr.f32.mxu0 0.0
  %2044 = vmatmul.mubr.f32.gmra.mrb[0].mxu0 %v1972
  %v2045 = vpop.f32.mrb[0].mxu0
  %v2046 = vadd.f32 0.0, %v2045
  %v2047 = vpop.f32.mrb[0].mxu0
  %2048 = vdwg.mxu0
  %v2049 = vadd.f32 %v1952, %v2041
  %v2050 = vadd.f32 %v1957, %v2046
  %2051 = vrot.lane.b32.xlu0 %v1780, 1
  %v2052 = vpop.permute.xlu0 %2051
  %2053 = vrot.lane.b32.xlu0 %v1781, 1
  %v2054 = vpop.permute.xlu0 %2053
  %v2055 = vmul.f32 %v2052, %v311
  %v2056 = vmul.f32 %v2054, %v311
  %2057 = vrot.lane.b32.xlu0 %v1788, 80
  %v2058 = vpop.permute.xlu0 %2057
  %2059 = vrot.lane.b32.xlu0 %v1789, 80
  %v2060 = vpop.permute.xlu0 %2059
  %v2061 = vsel %vm944, %v2058, 0
  %v2063 = vsel %vm944, %v2060, 0
  %2065 = vmatprep.subr.mxu0 0.0
  %2066 = vmatpush1.msra.mxu0 %v2055
  %2067 = vmatprep.subr.mxu0 0.0
  %2068 = vmatpush1.msra.mxu0 %v2056
  %2069 = vmatprep.subr.mxu0 0.0
  %2070 = vmatpush1.msra.mxu0 0.0
  %2071 = vmatprep.subr.mxu0 0.0
  %2072 = vmatpush1.msra.mxu0 0.0
  %2073 = vmatprep.subr.mxu0 0.0
  %2074 = vmatpush1.msra.mxu0 0.0
  %2075 = vmatprep.subr.mxu0 0.0
  %2076 = vmatpush1.msra.mxu0 0.0
  %2077 = vmatprep.subr.mxu0 0.0
  %2078 = vmatpush1.msra.mxu0 0.0
  %2079 = vmatprep.subr.mxu0 0.0
  %2080 = vmatpush1.msra.mxu0 0.0
  %2081 = vmatprep.subr.mxu0 0.0
  %2082 = vmatpush1.msra.mxu0 0.0
  %2083 = vmatprep.subr.mxu0 0.0
  %2084 = vmatpush1.msra.mxu0 0.0
  %2085 = vmatprep.subr.mxu0 0.0
  %2086 = vmatpush1.msra.mxu0 0.0
  %2087 = vmatprep.subr.mxu0 0.0
  %2088 = vmatpush1.msra.mxu0 0.0
  %2089 = vmatprep.subr.mxu0 0.0
  %2090 = vmatpush1.msra.mxu0 0.0
  %2091 = vmatprep.subr.mxu0 0.0
  %2092 = vmatpush1.msra.mxu0 0.0
  %2093 = vmatprep.subr.mxu0 0.0
  %2094 = vmatpush1.msra.mxu0 0.0
  %2095 = vmatprep.subr.mxu0 0.0
  %2096 = vmatpush1.msra.mxu0 0.0
  %2097 = vmatprep.subr.mxu0 0.0
  %2098 = vmatpush1.msra.mxu0 0.0
  %2099 = vmatprep.subr.mxu0 0.0
  %2100 = vmatpush1.msra.mxu0 0.0
  %2101 = vmatprep.subr.mxu0 0.0
  %2102 = vmatpush1.msra.mxu0 0.0
  %2103 = vmatprep.subr.mxu0 0.0
  %2104 = vmatpush1.msra.mxu0 0.0
  %2105 = vmatprep.subr.mxu0 0.0
  %2106 = vmatpush1.msra.mxu0 0.0
  %2107 = vmatprep.subr.mxu0 0.0
  %2108 = vmatpush1.msra.mxu0 0.0
  %2109 = vmatprep.subr.mxu0 0.0
  %2110 = vmatpush1.msra.mxu0 0.0
  %2111 = vmatprep.subr.mxu0 0.0
  %2112 = vmatpush1.msra.mxu0 0.0
  %2113 = vmatprep.subr.mxu0 0.0
  %2114 = vmatpush1.msra.mxu0 0.0
  %2115 = vmatprep.subr.mxu0 0.0
  %2116 = vmatpush1.msra.mxu0 0.0
  %2117 = vmatprep.subr.mxu0 0.0
  %2118 = vmatpush1.msra.mxu0 0.0
  %2119 = vmatprep.subr.mxu0 0.0
  %2120 = vmatpush1.msra.mxu0 0.0
  %2121 = vmatprep.subr.mxu0 0.0
  %2122 = vmatpush1.msra.mxu0 0.0
  %2123 = vmatprep.subr.mxu0 0.0
  %2124 = vmatpush1.msra.mxu0 0.0
  %2125 = vmatprep.subr.mxu0 0.0
  %2126 = vmatpush1.msra.mxu0 0.0
  %2127 = vmatprep.subr.mxu0 0.0
  %2128 = vmatpush1.msra.mxu0 0.0
  %2129 = vmatprep.mubr.f32.mxu0 0.0
  %2130 = vmatmul.mubr.f32.gmra.mrb[0].mxu0 %v2061
  %v2131 = vpop.f32.mrb[0].mxu0
  %v2132 = vadd.f32 0.0, %v2131
  %v2133 = vpop.f32.mrb[0].mxu0
  %2134 = vmatprep.mubr.f32.mxu0 0.0
  %2135 = vmatmul.mubr.f32.gmra.mrb[0].mxu0 %v2063
  %v2136 = vpop.f32.mrb[0].mxu0
  %v2137 = vadd.f32 0.0, %v2136
  %v2138 = vpop.f32.mrb[0].mxu0
  %2139 = vdwg.mxu0
  %v2140 = vadd.f32 %v2049, %v2132
  %v2141 = vadd.f32 %v2050, %v2137
  %v2142 = vmul.f32 %v1780, %v404
  %v2143 = vmul.f32 %v1781, %v404
  %2144 = vrot.lane.b32.xlu0 %v1788, 64
  %v2145 = vpop.permute.xlu0 %2144
  %2146 = vrot.lane.b32.xlu0 %v1789, 64
  %v2147 = vpop.permute.xlu0 %2146
  %v2148 = vsel %vm944, %v2145, 0
  %v2150 = vsel %vm944, %v2147, 0
  %2152 = vmatprep.subr.mxu0 0.0
  %2153 = vmatpush1.msra.mxu0 %v2142
  %2154 = vmatprep.subr.mxu0 0.0
  %2155 = vmatpush1.msra.mxu0 %v2143
  %2156 = vmatprep.subr.mxu0 0.0
  %2157 = vmatpush1.msra.mxu0 0.0
  %2158 = vmatprep.subr.mxu0 0.0
  %2159 = vmatpush1.msra.mxu0 0.0
  %2160 = vmatprep.subr.mxu0 0.0
  %2161 = vmatpush1.msra.mxu0 0.0
  %2162 = vmatprep.subr.mxu0 0.0
  %2163 = vmatpush1.msra.mxu0 0.0
  %2164 = vmatprep.subr.mxu0 0.0
  %2165 = vmatpush1.msra.mxu0 0.0
  %2166 = vmatprep.subr.mxu0 0.0
  %2167 = vmatpush1.msra.mxu0 0.0
  %2168 = vmatprep.subr.mxu0 0.0
  %2169 = vmatpush1.msra.mxu0 0.0
  %2170 = vmatprep.subr.mxu0 0.0
  %2171 = vmatpush1.msra.mxu0 0.0
  %2172 = vmatprep.subr.mxu0 0.0
  %2173 = vmatpush1.msra.mxu0 0.0
  %2174 = vmatprep.subr.mxu0 0.0
  %2175 = vmatpush1.msra.mxu0 0.0
  %2176 = vmatprep.subr.mxu0 0.0
  %2177 = vmatpush1.msra.mxu0 0.0
  %2178 = vmatprep.subr.mxu0 0.0
  %2179 = vmatpush1.msra.mxu0 0.0
  %2180 = vmatprep.subr.mxu0 0.0
  %2181 = vmatpush1.msra.mxu0 0.0
  %2182 = vmatprep.subr.mxu0 0.0
  %2183 = vmatpush1.msra.mxu0 0.0
  %2184 = vmatprep.subr.mxu0 0.0
  %2185 = vmatpush1.msra.mxu0 0.0
  %2186 = vmatprep.subr.mxu0 0.0
  %2187 = vmatpush1.msra.mxu0 0.0
  %2188 = vmatprep.subr.mxu0 0.0
  %2189 = vmatpush1.msra.mxu0 0.0
  %2190 = vmatprep.subr.mxu0 0.0
  %2191 = vmatpush1.msra.mxu0 0.0
  %2192 = vmatprep.subr.mxu0 0.0
  %2193 = vmatpush1.msra.mxu0 0.0
  %2194 = vmatprep.subr.mxu0 0.0
  %2195 = vmatpush1.msra.mxu0 0.0
  %2196 = vmatprep.subr.mxu0 0.0
  %2197 = vmatpush1.msra.mxu0 0.0
  %2198 = vmatprep.subr.mxu0 0.0
  %2199 = vmatpush1.msra.mxu0 0.0
  %2200 = vmatprep.subr.mxu0 0.0
  %2201 = vmatpush1.msra.mxu0 0.0
  %2202 = vmatprep.subr.mxu0 0.0
  %2203 = vmatpush1.msra.mxu0 0.0
  %2204 = vmatprep.subr.mxu0 0.0
  %2205 = vmatpush1.msra.mxu0 0.0
  %2206 = vmatprep.subr.mxu0 0.0
  %2207 = vmatpush1.msra.mxu0 0.0
  %2208 = vmatprep.subr.mxu0 0.0
  %2209 = vmatpush1.msra.mxu0 0.0
  %2210 = vmatprep.subr.mxu0 0.0
  %2211 = vmatpush1.msra.mxu0 0.0
  %2212 = vmatprep.subr.mxu0 0.0
  %2213 = vmatpush1.msra.mxu0 0.0
  %2214 = vmatprep.subr.mxu0 0.0
  %2215 = vmatpush1.msra.mxu0 0.0
  %2216 = vmatprep.mubr.f32.mxu0 0.0
  %2217 = vmatmul.mubr.f32.gmra.mrb[0].mxu0 %v2148
  %v2218 = vpop.f32.mrb[0].mxu0
  %v2219 = vadd.f32 0.0, %v2218
  %v2220 = vpop.f32.mrb[0].mxu0
  %2221 = vmatprep.mubr.f32.mxu0 0.0
  %2222 = vmatmul.mubr.f32.gmra.mrb[0].mxu0 %v2150
  %v2223 = vpop.f32.mrb[0].mxu0
  %v2224 = vadd.f32 0.0, %v2223
  %v2225 = vpop.f32.mrb[0].mxu0
  %2226 = vdwg.mxu0
  %v2227 = vadd.f32 %v2140, %v2219
  %v2228 = vadd.f32 %v2141, %v2224
  %2229 = vrot.lane.b32.xlu0 %v1780, 127
  %v2230 = vpop.permute.xlu0 %2229
  %2231 = vrot.lane.b32.xlu0 %v1781, 127
  %v2232 = vpop.permute.xlu0 %2231
  %v2233 = vmul.f32 %v2230, %v499
  %v2234 = vmul.f32 %v2232, %v499
  %2235 = vrot.lane.b32.xlu0 %v1788, 48
  %v2236 = vpop.permute.xlu0 %2235
  %2237 = vrot.lane.b32.xlu0 %v1789, 48
  %v2238 = vpop.permute.xlu0 %2237
  %v2239 = vsel %vm944, %v2236, 0
  %v2241 = vsel %vm944, %v2238, 0
  %2243 = vmatprep.subr.mxu0 0.0
  %2244 = vmatpush1.msra.mxu0 %v2233
  %2245 = vmatprep.subr.mxu0 0.0
  %2246 = vmatpush1.msra.mxu0 %v2234
  %2247 = vmatprep.subr.mxu0 0.0
  %2248 = vmatpush1.msra.mxu0 0.0
  %2249 = vmatprep.subr.mxu0 0.0
  %2250 = vmatpush1.msra.mxu0 0.0
  %2251 = vmatprep.subr.mxu0 0.0
  %2252 = vmatpush1.msra.mxu0 0.0
  %2253 = vmatprep.subr.mxu0 0.0
  %2254 = vmatpush1.msra.mxu0 0.0
  %2255 = vmatprep.subr.mxu0 0.0
  %2256 = vmatpush1.msra.mxu0 0.0
  %2257 = vmatprep.subr.mxu0 0.0
  %2258 = vmatpush1.msra.mxu0 0.0
  %2259 = vmatprep.subr.mxu0 0.0
  %2260 = vmatpush1.msra.mxu0 0.0
  %2261 = vmatprep.subr.mxu0 0.0
  %2262 = vmatpush1.msra.mxu0 0.0
  %2263 = vmatprep.subr.mxu0 0.0
  %2264 = vmatpush1.msra.mxu0 0.0
  %2265 = vmatprep.subr.mxu0 0.0
  %2266 = vmatpush1.msra.mxu0 0.0
  %2267 = vmatprep.subr.mxu0 0.0
  %2268 = vmatpush1.msra.mxu0 0.0
  %2269 = vmatprep.subr.mxu0 0.0
  %2270 = vmatpush1.msra.mxu0 0.0
  %2271 = vmatprep.subr.mxu0 0.0
  %2272 = vmatpush1.msra.mxu0 0.0
  %2273 = vmatprep.subr.mxu0 0.0
  %2274 = vmatpush1.msra.mxu0 0.0
  %2275 = vmatprep.subr.mxu0 0.0
  %2276 = vmatpush1.msra.mxu0 0.0
  %2277 = vmatprep.subr.mxu0 0.0
  %2278 = vmatpush1.msra.mxu0 0.0
  %2279 = vmatprep.subr.mxu0 0.0
  %2280 = vmatpush1.msra.mxu0 0.0
  %2281 = vmatprep.subr.mxu0 0.0
  %2282 = vmatpush1.msra.mxu0 0.0
  %2283 = vmatprep.subr.mxu0 0.0
  %2284 = vmatpush1.msra.mxu0 0.0
  %2285 = vmatprep.subr.mxu0 0.0
  %2286 = vmatpush1.msra.mxu0 0.0
  %2287 = vmatprep.subr.mxu0 0.0
  %2288 = vmatpush1.msra.mxu0 0.0
  %2289 = vmatprep.subr.mxu0 0.0
  %2290 = vmatpush1.msra.mxu0 0.0
  %2291 = vmatprep.subr.mxu0 0.0
  %2292 = vmatpush1.msra.mxu0 0.0
  %2293 = vmatprep.subr.mxu0 0.0
  %2294 = vmatpush1.msra.mxu0 0.0
  %2295 = vmatprep.subr.mxu0 0.0
  %2296 = vmatpush1.msra.mxu0 0.0
  %2297 = vmatprep.subr.mxu0 0.0
  %2298 = vmatpush1.msra.mxu0 0.0
  %2299 = vmatprep.subr.mxu0 0.0
  %2300 = vmatpush1.msra.mxu0 0.0
  %2301 = vmatprep.subr.mxu0 0.0
  %2302 = vmatpush1.msra.mxu0 0.0
  %2303 = vmatprep.subr.mxu0 0.0
  %2304 = vmatpush1.msra.mxu0 0.0
  %2305 = vmatprep.subr.mxu0 0.0
  %2306 = vmatpush1.msra.mxu0 0.0
  %2307 = vmatprep.mubr.f32.mxu0 0.0
  %2308 = vmatmul.mubr.f32.gmra.mrb[0].mxu0 %v2239
  %v2309 = vpop.f32.mrb[0].mxu0
  %v2310 = vadd.f32 0.0, %v2309
  %v2311 = vpop.f32.mrb[0].mxu0
  %2312 = vmatprep.mubr.f32.mxu0 0.0
  %2313 = vmatmul.mubr.f32.gmra.mrb[0].mxu0 %v2241
  %v2314 = vpop.f32.mrb[0].mxu0
  %v2315 = vadd.f32 0.0, %v2314
  %v2316 = vpop.f32.mrb[0].mxu0
  %2317 = vdwg.mxu0
  %v2318 = vadd.f32 %v2227, %v2310
  %v2319 = vadd.f32 %v2228, %v2315
  %2320 = vrot.lane.b32.xlu0 %v1780, 121
  %v2321 = vpop.permute.xlu0 %2320
  %2322 = vrot.lane.b32.xlu0 %v1781, 121
  %v2323 = vpop.permute.xlu0 %2322
  %v2324 = vmul.f32 %v2321, %v594
  %v2325 = vmul.f32 %v2323, %v594
  %2326 = vrot.lane.b32.xlu0 %v1788, 32
  %v2327 = vpop.permute.xlu0 %2326
  %2328 = vrot.lane.b32.xlu0 %v1789, 32
  %v2329 = vpop.permute.xlu0 %2328
  %v2330 = vsel %vm944, %v2327, 0
  %v2332 = vsel %vm944, %v2329, 0
  %2334 = vmatprep.subr.mxu0 0.0
  %2335 = vmatpush1.msra.mxu0 %v2324
  %2336 = vmatprep.subr.mxu0 0.0
  %2337 = vmatpush1.msra.mxu0 %v2325
  %2338 = vmatprep.subr.mxu0 0.0
  %2339 = vmatpush1.msra.mxu0 0.0
  %2340 = vmatprep.subr.mxu0 0.0
  %2341 = vmatpush1.msra.mxu0 0.0
  %2342 = vmatprep.subr.mxu0 0.0
  %2343 = vmatpush1.msra.mxu0 0.0
  %2344 = vmatprep.subr.mxu0 0.0
  %2345 = vmatpush1.msra.mxu0 0.0
  %2346 = vmatprep.subr.mxu0 0.0
  %2347 = vmatpush1.msra.mxu0 0.0
  %2348 = vmatprep.subr.mxu0 0.0
  %2349 = vmatpush1.msra.mxu0 0.0
  %2350 = vmatprep.subr.mxu0 0.0
  %2351 = vmatpush1.msra.mxu0 0.0
  %2352 = vmatprep.subr.mxu0 0.0
  %2353 = vmatpush1.msra.mxu0 0.0
  %2354 = vmatprep.subr.mxu0 0.0
  %2355 = vmatpush1.msra.mxu0 0.0
  %2356 = vmatprep.subr.mxu0 0.0
  %2357 = vmatpush1.msra.mxu0 0.0
  %2358 = vmatprep.subr.mxu0 0.0
  %2359 = vmatpush1.msra.mxu0 0.0
  %2360 = vmatprep.subr.mxu0 0.0
  %2361 = vmatpush1.msra.mxu0 0.0
  %2362 = vmatprep.subr.mxu0 0.0
  %2363 = vmatpush1.msra.mxu0 0.0
  %2364 = vmatprep.subr.mxu0 0.0
  %2365 = vmatpush1.msra.mxu0 0.0
  %2366 = vmatprep.subr.mxu0 0.0
  %2367 = vmatpush1.msra.mxu0 0.0
  %2368 = vmatprep.subr.mxu0 0.0
  %2369 = vmatpush1.msra.mxu0 0.0
  %2370 = vmatprep.subr.mxu0 0.0
  %2371 = vmatpush1.msra.mxu0 0.0
  %2372 = vmatprep.subr.mxu0 0.0
  %2373 = vmatpush1.msra.mxu0 0.0
  %2374 = vmatprep.subr.mxu0 0.0
  %2375 = vmatpush1.msra.mxu0 0.0
  %2376 = vmatprep.subr.mxu0 0.0
  %2377 = vmatpush1.msra.mxu0 0.0
  %2378 = vmatprep.subr.mxu0 0.0
  %2379 = vmatpush1.msra.mxu0 0.0
  %2380 = vmatprep.subr.mxu0 0.0
  %2381 = vmatpush1.msra.mxu0 0.0
  %2382 = vmatprep.subr.mxu0 0.0
  %2383 = vmatpush1.msra.mxu0 0.0
  %2384 = vmatprep.subr.mxu0 0.0
  %2385 = vmatpush1.msra.mxu0 0.0
  %2386 = vmatprep.subr.mxu0 0.0
  %2387 = vmatpush1.msra.mxu0 0.0
  %2388 = vmatprep.subr.mxu0 0.0
  %2389 = vmatpush1.msra.mxu0 0.0
  %2390 = vmatprep.subr.mxu0 0.0
  %2391 = vmatpush1.msra.mxu0 0.0
  %2392 = vmatprep.subr.mxu0 0.0
  %2393 = vmatpush1.msra.mxu0 0.0
  %2394 = vmatprep.subr.mxu0 0.0
  %2395 = vmatpush1.msra.mxu0 0.0
  %2396 = vmatprep.subr.mxu0 0.0
  %2397 = vmatpush1.msra.mxu0 0.0
  %2398 = vmatprep.mubr.f32.mxu0 0.0
  %2399 = vmatmul.mubr.f32.gmra.mrb[0].mxu0 %v2330
  %v2400 = vpop.f32.mrb[0].mxu0
  %v2401 = vadd.f32 0.0, %v2400
  %v2402 = vpop.f32.mrb[0].mxu0
  %2403 = vmatprep.mubr.f32.mxu0 0.0
  %2404 = vmatmul.mubr.f32.gmra.mrb[0].mxu0 %v2332
  %v2405 = vpop.f32.mrb[0].mxu0
  %v2406 = vadd.f32 0.0, %v2405
  %v2407 = vpop.f32.mrb[0].mxu0
  %2408 = vdwg.mxu0
  %v2409 = vadd.f32 %v2318, %v2401
  %v2410 = vadd.f32 %v2319, %v2406
  %2411 = vrot.lane.b32.xlu0 %v1780, 120
  %v2412 = vpop.permute.xlu0 %2411
  %2413 = vrot.lane.b32.xlu0 %v1781, 120
  %v2414 = vpop.permute.xlu0 %2413
  %v2415 = vmul.f32 %v2412, %v689
  %v2416 = vmul.f32 %v2414, %v689
  %2417 = vrot.lane.b32.xlu0 %v1788, 16
  %v2418 = vpop.permute.xlu0 %2417
  %2419 = vrot.lane.b32.xlu0 %v1789, 16
  %v2420 = vpop.permute.xlu0 %2419
  %v2421 = vsel %vm944, %v2418, 0
  %v2423 = vsel %vm944, %v2420, 0
  %2425 = vmatprep.subr.mxu0 0.0
  %2426 = vmatpush1.msra.mxu0 %v2415
  %2427 = vmatprep.subr.mxu0 0.0
  %2428 = vmatpush1.msra.mxu0 %v2416
  %2429 = vmatprep.subr.mxu0 0.0
  %2430 = vmatpush1.msra.mxu0 0.0
  %2431 = vmatprep.subr.mxu0 0.0
  %2432 = vmatpush1.msra.mxu0 0.0
  %2433 = vmatprep.subr.mxu0 0.0
  %2434 = vmatpush1.msra.mxu0 0.0
  %2435 = vmatprep.subr.mxu0 0.0
  %2436 = vmatpush1.msra.mxu0 0.0
  %2437 = vmatprep.subr.mxu0 0.0
  %2438 = vmatpush1.msra.mxu0 0.0
  %2439 = vmatprep.subr.mxu0 0.0
  %2440 = vmatpush1.msra.mxu0 0.0
  %2441 = vmatprep.subr.mxu0 0.0
  %2442 = vmatpush1.msra.mxu0 0.0
  %2443 = vmatprep.subr.mxu0 0.0
  %2444 = vmatpush1.msra.mxu0 0.0
  %2445 = vmatprep.subr.mxu0 0.0
  %2446 = vmatpush1.msra.mxu0 0.0
  %2447 = vmatprep.subr.mxu0 0.0
  %2448 = vmatpush1.msra.mxu0 0.0
  %2449 = vmatprep.subr.mxu0 0.0
  %2450 = vmatpush1.msra.mxu0 0.0
  %2451 = vmatprep.subr.mxu0 0.0
  %2452 = vmatpush1.msra.mxu0 0.0
  %2453 = vmatprep.subr.mxu0 0.0
  %2454 = vmatpush1.msra.mxu0 0.0
  %2455 = vmatprep.subr.mxu0 0.0
  %2456 = vmatpush1.msra.mxu0 0.0
  %2457 = vmatprep.subr.mxu0 0.0
  %2458 = vmatpush1.msra.mxu0 0.0
  %2459 = vmatprep.subr.mxu0 0.0
  %2460 = vmatpush1.msra.mxu0 0.0
  %2461 = vmatprep.subr.mxu0 0.0
  %2462 = vmatpush1.msra.mxu0 0.0
  %2463 = vmatprep.subr.mxu0 0.0
  %2464 = vmatpush1.msra.mxu0 0.0
  %2465 = vmatprep.subr.mxu0 0.0
  %2466 = vmatpush1.msra.mxu0 0.0
  %2467 = vmatprep.subr.mxu0 0.0
  %2468 = vmatpush1.msra.mxu0 0.0
  %2469 = vmatprep.subr.mxu0 0.0
  %2470 = vmatpush1.msra.mxu0 0.0
  %2471 = vmatprep.subr.mxu0 0.0
  %2472 = vmatpush1.msra.mxu0 0.0
  %2473 = vmatprep.subr.mxu0 0.0
  %2474 = vmatpush1.msra.mxu0 0.0
  %2475 = vmatprep.subr.mxu0 0.0
  %2476 = vmatpush1.msra.mxu0 0.0
  %2477 = vmatprep.subr.mxu0 0.0
  %2478 = vmatpush1.msra.mxu0 0.0
  %2479 = vmatprep.subr.mxu0 0.0
  %2480 = vmatpush1.msra.mxu0 0.0
  %2481 = vmatprep.subr.mxu0 0.0
  %2482 = vmatpush1.msra.mxu0 0.0
  %2483 = vmatprep.subr.mxu0 0.0
  %2484 = vmatpush1.msra.mxu0 0.0
  %2485 = vmatprep.subr.mxu0 0.0
  %2486 = vmatpush1.msra.mxu0 0.0
  %2487 = vmatprep.subr.mxu0 0.0
  %2488 = vmatpush1.msra.mxu0 0.0
  %2489 = vmatprep.mubr.f32.mxu0 0.0
  %2490 = vmatmul.mubr.f32.gmra.mrb[0].mxu0 %v2421
  %v2491 = vpop.f32.mrb[0].mxu0
  %v2492 = vadd.f32 0.0, %v2491
  %v2493 = vpop.f32.mrb[0].mxu0
  %2494 = vmatprep.mubr.f32.mxu0 0.0
  %2495 = vmatmul.mubr.f32.gmra.mrb[0].mxu0 %v2423
  %v2496 = vpop.f32.mrb[0].mxu0
  %v2497 = vadd.f32 0.0, %v2496
  %v2498 = vpop.f32.mrb[0].mxu0
  %2499 = vdwg.mxu0
  %v2500 = vadd.f32 %v2409, %v2492
  %v2501 = vadd.f32 %v2410, %v2497
  %2502 = vrot.lane.b32.xlu0 %v1780, 119
  %v2503 = vpop.permute.xlu0 %2502
  %2504 = vrot.lane.b32.xlu0 %v1781, 119
  %v2505 = vpop.permute.xlu0 %2504
  %v2506 = vmul.f32 %v2503, %v784
  %v2507 = vmul.f32 %v2505, %v784
  %v2508 = vld [vmem:[%s2 + $0x48] sm:$0xff]
  %v2509 = vld [vmem:[%s2 + $0x58] sm:$0xff]
  %v2511 = vsel %vm944, %v2508, 0
  %v2514 = vsel %vm944, %v2509, 0
  %2516 = vmatprep.subr.mxu0 0.0
  %2517 = vmatpush1.msra.mxu0 %v2506
  %2518 = vmatprep.subr.mxu0 0.0
  %2519 = vmatpush1.msra.mxu0 %v2507
  %2520 = vmatprep.subr.mxu0 0.0
  %2521 = vmatpush1.msra.mxu0 0.0
  %2522 = vmatprep.subr.mxu0 0.0
  %2523 = vmatpush1.msra.mxu0 0.0
  %2524 = vmatprep.subr.mxu0 0.0
  %2525 = vmatpush1.msra.mxu0 0.0
  %2526 = vmatprep.subr.mxu0 0.0
  %2527 = vmatpush1.msra.mxu0 0.0
  %2528 = vmatprep.subr.mxu0 0.0
  %2529 = vmatpush1.msra.mxu0 0.0
  %2530 = vmatprep.subr.mxu0 0.0
  %2531 = vmatpush1.msra.mxu0 0.0
  %2532 = vmatprep.subr.mxu0 0.0
  %2533 = vmatpush1.msra.mxu0 0.0
  %2534 = vmatprep.subr.mxu0 0.0
  %2535 = vmatpush1.msra.mxu0 0.0
  %2536 = vmatprep.subr.mxu0 0.0
  %2537 = vmatpush1.msra.mxu0 0.0
  %2538 = vmatprep.subr.mxu0 0.0
  %2539 = vmatpush1.msra.mxu0 0.0
  %2540 = vmatprep.subr.mxu0 0.0
  %2541 = vmatpush1.msra.mxu0 0.0
  %2542 = vmatprep.subr.mxu0 0.0
  %2543 = vmatpush1.msra.mxu0 0.0
  %2544 = vmatprep.subr.mxu0 0.0
  %2545 = vmatpush1.msra.mxu0 0.0
  %2546 = vmatprep.subr.mxu0 0.0
  %2547 = vmatpush1.msra.mxu0 0.0
  %2548 = vmatprep.subr.mxu0 0.0
  %2549 = vmatpush1.msra.mxu0 0.0
  %2550 = vmatprep.subr.mxu0 0.0
  %2551 = vmatpush1.msra.mxu0 0.0
  %2552 = vmatprep.subr.mxu0 0.0
  %2553 = vmatpush1.msra.mxu0 0.0
  %2554 = vmatprep.subr.mxu0 0.0
  %2555 = vmatpush1.msra.mxu0 0.0
  %2556 = vmatprep.subr.mxu0 0.0
  %2557 = vmatpush1.msra.mxu0 0.0
  %2558 = vmatprep.subr.mxu0 0.0
  %2559 = vmatpush1.msra.mxu0 0.0
  %2560 = vmatprep.subr.mxu0 0.0
  %2561 = vmatpush1.msra.mxu0 0.0
  %2562 = vmatprep.subr.mxu0 0.0
  %2563 = vmatpush1.msra.mxu0 0.0
  %2564 = vmatprep.subr.mxu0 0.0
  %2565 = vmatpush1.msra.mxu0 0.0
  %2566 = vmatprep.subr.mxu0 0.0
  %2567 = vmatpush1.msra.mxu0 0.0
  %2568 = vmatprep.subr.mxu0 0.0
  %2569 = vmatpush1.msra.mxu0 0.0
  %2570 = vmatprep.subr.mxu0 0.0
  %2571 = vmatpush1.msra.mxu0 0.0
  %2572 = vmatprep.subr.mxu0 0.0
  %2573 = vmatpush1.msra.mxu0 0.0
  %2574 = vmatprep.subr.mxu0 0.0
  %2575 = vmatpush1.msra.mxu0 0.0
  %2576 = vmatprep.subr.mxu0 0.0
  %2577 = vmatpush1.msra.mxu0 0.0
  %2578 = vmatprep.subr.mxu0 0.0
  %2579 = vmatpush1.msra.mxu0 0.0
  %2580 = vmatprep.mubr.f32.mxu0 0.0
  %2581 = vmatmul.mubr.f32.gmra.mrb[0].mxu0 %v2511
  %v2582 = vpop.f32.mrb[0].mxu0
  %v2583 = vadd.f32 0.0, %v2582
  %v2584 = vpop.f32.mrb[0].mxu0
  %2585 = vmatprep.mubr.f32.mxu0 0.0
  %2586 = vmatmul.mubr.f32.gmra.mrb[0].mxu0 %v2514
  %v2587 = vpop.f32.mrb[0].mxu0
  %v2588 = vadd.f32 0.0, %v2587
  %v2589 = vpop.f32.mrb[0].mxu0
  %2590 = vdwg.mxu0
  %v2591 = vadd.f32 %v2500, %v2583
  %v2592 = vadd.f32 %v2501, %v2588
  %2593 = vadd.xlane.f32.xlu0 %v2591
  %v2594 = vpop.xlane.xlu0 %2593
  %2595 = vadd.xlane.f32.xlu0 %v2592
  %v2596 = vpop.xlane.xlu0 %2595
  %v2597 = vmul.f32 %v2594, 0.0078125
  %v2598 = vmul.f32 %v2596, 0.0078125
  %v2599 = vsub.f32 %v2591, %v2597
  %v2600 = vsub.f32 %v2592, %v2598
  %v2601 = vmul.f32 %v2599, %v2599
  %v2602 = vmul.f32 %v2600, %v2600
  %2603 = vadd.xlane.f32.xlu0 %v2601
  %v2604 = vpop.xlane.xlu0 %2603
  %2605 = vadd.xlane.f32.xlu0 %v2602
  %v2606 = vpop.xlane.xlu0 %2605
  %v2607 = vmul.f32 %v2604, 0.0078125
  %v2608 = vmul.f32 %v2606, 0.0078125
  %v2609 = vadd.f32 %v2607, 1e-05
  %v2610 = vadd.f32 %v2608, 1e-05
  %v2611 = vrsqrt.pop %v2609
  %v2612 = vrsqrt.pop %v2610
  %v2613 = vmul.f32 %v874, %v2611
  %v2614 = vmul.f32 %v875, %v2612
  %2616 = vset.pattern.permute.xlu0 4
  %2617 = vperm.xlu0 %2616, %v2613
  %v2618 = vpop.permute.xlu0 %2617
  %2621 = vset.pattern.permute.xlu0 4
  %2622 = vperm.xlu0 %2621, %v2614
  %v2623 = vpop.permute.xlu0 %2622
  %v2625 = vmul.f32 %v2599, %v2618
  %v2626 = vmul.f32 %v2600, %v2623
  %2627 = vset.pattern.permute.xlu0 5
  %2628 = vperm.xlu0 %2627, %v874
  %v2629 = vpop.permute.xlu0 %2628
  %2631 = vset.pattern.permute.xlu0 5
  %2632 = vperm.xlu0 %2631, %v875
  %v2633 = vpop.permute.xlu0 %2632
  %v2635 = vadd.f32 %v2625, %v2629
  %v2636 = vadd.f32 %v2626, %v2633
  %v2637 = vadd.f32 %v2635, %v922
  %v2638 = vadd.f32 %v2636, %v923
  %v2639 = vmax.f32 %v2637, 0.0
  %v2640 = vmax.f32 %v2638, 0.0
  %v2641 = vld [vmem:[%s2 + $0x60] sm:$0xff]
  %v2642 = vld [vmem:[%s2 + $0x70] sm:$0xff]
  %v2643 = vld [vmem:[%s2 + $0x80] sm:$0xff]
  %v2645 = vsel %vm944, %v2641, 0
  %v2648 = vsel %vm944, %v2642, 0
  %v2651 = vsel %vm944, %v2643, 0
  %2653 = vmatprep.subr.mxu0 0.0
  %2654 = vmatpush1.msra.mxu0 %v2639
  %2655 = vmatprep.subr.mxu0 0.0
  %2656 = vmatpush1.msra.mxu0 %v2640
  %2657 = vmatprep.subr.mxu0 0.0
  %2658 = vmatpush1.msra.mxu0 0.0
  %2659 = vmatprep.subr.mxu0 0.0
  %2660 = vmatpush1.msra.mxu0 0.0
  %2661 = vmatprep.subr.mxu0 0.0
  %2662 = vmatpush1.msra.mxu0 0.0
  %2663 = vmatprep.subr.mxu0 0.0
  %2664 = vmatpush1.msra.mxu0 0.0
  %2665 = vmatprep.subr.mxu0 0.0
  %2666 = vmatpush1.msra.mxu0 0.0
  %2667 = vmatprep.subr.mxu0 0.0
  %2668 = vmatpush1.msra.mxu0 0.0
  %2669 = vmatprep.subr.mxu0 0.0
  %2670 = vmatpush1.msra.mxu0 0.0
  %2671 = vmatprep.subr.mxu0 0.0
  %2672 = vmatpush1.msra.mxu0 0.0
  %2673 = vmatprep.subr.mxu0 0.0
  %2674 = vmatpush1.msra.mxu0 0.0
  %2675 = vmatprep.subr.mxu0 0.0
  %2676 = vmatpush1.msra.mxu0 0.0
  %2677 = vmatprep.subr.mxu0 0.0
  %2678 = vmatpush1.msra.mxu0 0.0
  %2679 = vmatprep.subr.mxu0 0.0
  %2680 = vmatpush1.msra.mxu0 0.0
  %2681 = vmatprep.subr.mxu0 0.0
  %2682 = vmatpush1.msra.mxu0 0.0
  %2683 = vmatprep.subr.mxu0 0.0
  %2684 = vmatpush1.msra.mxu0 0.0
  %2685 = vmatprep.subr.mxu0 0.0
  %2686 = vmatpush1.msra.mxu0 0.0
  %2687 = vmatprep.subr.mxu0 0.0
  %2688 = vmatpush1.msra.mxu0 0.0
  %2689 = vmatprep.subr.mxu0 0.0
  %2690 = vmatpush1.msra.mxu0 0.0
  %2691 = vmatprep.subr.mxu0 0.0
  %2692 = vmatpush1.msra.mxu0 0.0
  %2693 = vmatprep.subr.mxu0 0.0
  %2694 = vmatpush1.msra.mxu0 0.0
  %2695 = vmatprep.subr.mxu0 0.0
  %2696 = vmatpush1.msra.mxu0 0.0
  %2697 = vmatprep.subr.mxu0 0.0
  %2698 = vmatpush1.msra.mxu0 0.0
  %2699 = vmatprep.subr.mxu0 0.0
  %2700 = vmatpush1.msra.mxu0 0.0
  %2701 = vmatprep.subr.mxu0 0.0
  %2702 = vmatpush1.msra.mxu0 0.0
  %2703 = vmatprep.subr.mxu0 0.0
  %2704 = vmatpush1.msra.mxu0 0.0
  %2705 = vmatprep.subr.mxu0 0.0
  %2706 = vmatpush1.msra.mxu0 0.0
  %2707 = vmatprep.subr.mxu0 0.0
  %2708 = vmatpush1.msra.mxu0 0.0
  %2709 = vmatprep.subr.mxu0 0.0
  %2710 = vmatpush1.msra.mxu0 0.0
  %2711 = vmatprep.subr.mxu0 0.0
  %2712 = vmatpush1.msra.mxu0 0.0
  %2713 = vmatprep.subr.mxu0 0.0
  %2714 = vmatpush1.msra.mxu0 0.0
  %2715 = vmatprep.subr.mxu0 0.0
  %2716 = vmatpush1.msra.mxu0 0.0
  %2717 = vmatprep.mubr.f32.mxu0 0.0
  %2718 = vmatmul.mubr.f32.gmra.mrb[0].mxu0 %v2645
  %v2719 = vpop.f32.mrb[0].mxu0
  %v2720 = vadd.f32 0.0, %v2719
  %v2721 = vpop.f32.mrb[0].mxu0
  %2722 = vmatprep.mubr.f32.mxu0 0.0
  %2723 = vmatmul.mubr.f32.gmra.mrb[0].mxu0 %v2648
  %v2724 = vpop.f32.mrb[0].mxu0
  %v2725 = vadd.f32 0.0, %v2724
  %v2726 = vpop.f32.mrb[0].mxu0
  %2727 = vmatprep.mubr.f32.mxu0 0.0
  %2728 = vmatmul.mubr.f32.gmra.mrb[0].mxu0 %v2651
  %v2729 = vpop.f32.mrb[0].mxu0
  %v2730 = vadd.f32 0.0, %v2729
  %v2731 = vpop.f32.mrb[0].mxu0
  %2732 = vdwg.mxu0
  %v2733 = vld [vmem:[%s3] sm:$0xff]
  %v2734 = vld [vmem:[%s3 + $0x8] sm:$0xff]
  %v2735 = vld [vmem:[%s3 + $0x10] sm:$0xff]
  %2736 = vadd.xlane.f32.xlu0 %v2720
  %v2737 = vpop.xlane.xlu0 %2736
  %2738 = vadd.xlane.f32.xlu0 %v2725
  %v2739 = vpop.xlane.xlu0 %2738
  %2740 = vadd.xlane.f32.xlu0 %v2730
  %v2741 = vpop.xlane.xlu0 %2740
  %v2742 = vmul.f32 %v2737, 0.0078125
  %v2743 = vmul.f32 %v2739, 0.0078125
  %v2744 = vmul.f32 %v2741, 0.0078125
  %v2745 = vsub.f32 %v2720, %v2742
  %v2746 = vsub.f32 %v2725, %v2743
  %v2747 = vsub.f32 %v2730, %v2744
  %v2748 = vmul.f32 %v2745, %v2745
  %v2749 = vmul.f32 %v2746, %v2746
  %v2750 = vmul.f32 %v2747, %v2747
  %2751 = vadd.xlane.f32.xlu0 %v2748
  %v2752 = vpop.xlane.xlu0 %2751
  %2753 = vadd.xlane.f32.xlu0 %v2749
  %v2754 = vpop.xlane.xlu0 %2753
  %2755 = vadd.xlane.f32.xlu0 %v2750
  %v2756 = vpop.xlane.xlu0 %2755
  %v2757 = vmul.f32 %v2752, 0.0078125
  %v2758 = vmul.f32 %v2754, 0.0078125
  %v2759 = vmul.f32 %v2756, 0.0078125
  %v2760 = vadd.f32 %v2757, 1e-05
  %v2761 = vadd.f32 %v2758, 1e-05
  %v2762 = vadd.f32 %v2759, 1e-05
  %v2763 = vrsqrt.pop %v2760
  %v2764 = vrsqrt.pop %v2761
  %v2765 = vrsqrt.pop %v2762
  %v2766 = vmul.f32 %v2733, %v2763
  %v2767 = vmul.f32 %v2734, %v2764
  %v2768 = vmul.f32 %v2735, %v2765
  %2770 = vset.pattern.permute.xlu0 6
  %2771 = vperm.xlu0 %2770, %v2766
  %v2772 = vpop.permute.xlu0 %2771
  %2775 = vset.pattern.permute.xlu0 6
  %2776 = vperm.xlu0 %2775, %v2767
  %v2777 = vpop.permute.xlu0 %2776
  %2780 = vset.pattern.permute.xlu0 6
  %2781 = vperm.xlu0 %2780, %v2768
  %v2782 = vpop.permute.xlu0 %2781
  %v2784 = vmul.f32 %v2745, %v2772
  %v2785 = vmul.f32 %v2746, %v2777
  %v2786 = vmul.f32 %v2747, %v2782
  %2788 = vset.pattern.permute.xlu0 7
  %2789 = vperm.xlu0 %2788, %v2733
  %v2790 = vpop.permute.xlu0 %2789
  %2793 = vset.pattern.permute.xlu0 7
  %2794 = vperm.xlu0 %2793, %v2734
  %v2795 = vpop.permute.xlu0 %2794
  %2798 = vset.pattern.permute.xlu0 7
  %2799 = vperm.xlu0 %2798, %v2735
  %v2800 = vpop.permute.xlu0 %2799
  %v2802 = vadd.f32 %v2784, %v2790
  %v2803 = vadd.f32 %v2785, %v2795
  %v2804 = vadd.f32 %v2786, %v2800
  %v2805 = vmax.f32 %v2802, 0.0
  %v2806 = vmax.f32 %v2803, 0.0
  %v2807 = vmax.f32 %v2804, 0.0
  %v2808 = vrot.slane %v2805, 4
  %v2809 = vmin.f32 %v2805, %v2808
  %v2810 = vrot.slane %v2809, 2
  %v2811 = vmin.f32 %v2809, %v2810
  %v2812 = vrot.slane %v2811, 1
  %v2813 = vmin.f32 %v2811, %v2812
  %v2814 = vrot.slane %v2805, 4
  %v2815 = vmax.f32 %v2805, %v2814
  %v2816 = vrot.slane %v2815, 2
  %v2817 = vmax.f32 %v2815, %v2816
  %v2818 = vrot.slane %v2817, 1
  %v2819 = vmax.f32 %v2817, %v2818
  %vm2820 = vcmp.gt.f32.partialorder %v20, 0.5
  %v2821 = vsel %vm2820, %v2813, inf
  %vm2822 = vcmask 1040384
  %v2823 = vsel %vm2822, %v2821, inf
  %2824 = vmin.xlane.f32.xlu0 %v2823
  %v2825 = vpop.xlane.xlu0 %2824
  %v2826 = vsel %vm2820, %v2819, -inf
  %v2827 = vsel %vm2822, %v2826, -inf
  %2828 = vmax.xlane.f32.xlu0 %v2827
  %v2829 = vpop.xlane.xlu0 %2828
  %v2830 = vsub.f32 %v2829, %v2825
  %vm2831 = vcmp.gt.f32.partialorder %v2830, 0.0
  %v2832 = vsel %vm2831, %v2830, 1.0
  %v2833 = vmul.f32 %v2825, %v20
  %v2834 = vadd.f32 %v2833, 0.0
  %v2835 = vrcp.pop %v2832
  %v2836 = vmul.f32 1.0, %v2835
  %v2837 = vmul.f32 %v2836, %v20
  %v2838 = vadd.f32 %v2837, 0.0
  %vm2839 = vcmask 1041409
  %v2840 = vsel %vm2839, %v2821, inf
  %2841 = vmin.xlane.f32.xlu0 %v2840
  %v2842 = vpop.xlane.xlu0 %2841
  %v2843 = vsel %vm2839, %v2826, -inf
  %2844 = vmax.xlane.f32.xlu0 %v2843
  %v2845 = vpop.xlane.xlu0 %2844
  %v2846 = vsub.f32 %v2845, %v2842
  %vm2847 = vcmp.gt.f32.partialorder %v2846, 0.0
  %v2848 = vsel %vm2847, %v2846, 1.0
  %v2849 = vmul.f32 %v2842, %v20
  %v2851 = vrot.slane %v2849, 1
  %v2853 = vadd.f32 %v2834, %v2851
  %v2854 = vrcp.pop %v2848
  %v2855 = vmul.f32 1.0, %v2854
  %v2856 = vmul.f32 %v2855, %v20
  %v2858 = vrot.slane %v2856, 1
  %v2860 = vadd.f32 %v2838, %v2858
  %v2861 = vlaneseq
  %v2862 = vshrl.u32 %v2861, 7
  %v2863 = vsub.s32 0, %v2862
  %v2864 = vrot.slane %v2853, %v2863
  %v2865 = vsub.f32 %v2805, %v2864
  %v2866 = vlaneseq
  %v2867 = vshrl.u32 %v2866, 7
  %v2868 = vsub.s32 0, %v2867
  %v2869 = vrot.slane %v2860, %v2868
  %v2870 = vmul.f32 %v2865, %v2869
  %2871 = vst [vmem:[%s5] sm:$0xff] %v2870
  %v2872 = vld [vmem:[%s4] sm:$0xff]
  %v2873 = vld [vmem:[%s4 + $0x8] sm:$0xff]
  %v2874 = vlaneseq
  %v2875 = vshrl.u32 %v2874, 7
  %v2876 = vsub.s32 0, %v2875
  %v2877 = vrot.slane %v2806, %v2876
  %v2878 = vmul.f32 %v2872, %v2877
  %v2879 = vmul.f32 %v2873, %v2877
  %s2880 = scalar_lea.vmem %s4, 16
  %v2881 = vld [vmem:[%s2880] sm:$0xff]
  %v2882 = vld [vmem:[%s2880 + $0x8] sm:$0xff]
  %v2883 = vlaneseq
  %v2884 = vshrl.u32 %v2883, 7
  %v2885 = vsub.s32 1, %v2884
  %v2886 = vrot.slane %v2806, %v2885
  %v2887 = vmul.f32 %v2881, %v2886
  %v2888 = vmul.f32 %v2882, %v2886
  %v2889 = vadd.f32 %v2878, %v2887
  %v2890 = vadd.f32 %v2879, %v2888
  %s2891 = scalar_lea.vmem %s4, 32
  %v2892 = vld [vmem:[%s2891] sm:$0xff]
  %v2893 = vld [vmem:[%s2891 + $0x8] sm:$0xff]
  %v2894 = vlaneseq
  %v2895 = vshrl.u32 %v2894, 7
  %v2896 = vsub.s32 2, %v2895
  %v2897 = vrot.slane %v2806, %v2896
  %v2898 = vmul.f32 %v2892, %v2897
  %v2899 = vmul.f32 %v2893, %v2897
  %v2900 = vadd.f32 %v2889, %v2898
  %v2901 = vadd.f32 %v2890, %v2899
  %s2902 = scalar_lea.vmem %s4, 48
  %v2903 = vld [vmem:[%s2902] sm:$0xff]
  %v2904 = vld [vmem:[%s2902 + $0x8] sm:$0xff]
  %v2905 = vlaneseq
  %v2906 = vshrl.u32 %v2905, 7
  %v2907 = vsub.s32 3, %v2906
  %v2908 = vrot.slane %v2806, %v2907
  %v2909 = vmul.f32 %v2903, %v2908
  %v2910 = vmul.f32 %v2904, %v2908
  %v2911 = vadd.f32 %v2900, %v2909
  %v2912 = vadd.f32 %v2901, %v2910
  %s2913 = scalar_lea.vmem %s4, 64
  %v2914 = vld [vmem:[%s2913] sm:$0xff]
  %v2915 = vld [vmem:[%s2913 + $0x8] sm:$0xff]
  %v2916 = vlaneseq
  %v2917 = vshrl.u32 %v2916, 7
  %v2918 = vsub.s32 4, %v2917
  %v2919 = vrot.slane %v2806, %v2918
  %v2920 = vmul.f32 %v2914, %v2919
  %v2921 = vmul.f32 %v2915, %v2919
  %v2922 = vadd.f32 %v2911, %v2920
  %v2923 = vadd.f32 %v2912, %v2921
  %s2924 = scalar_lea.vmem %s4, 80
  %v2925 = vld [vmem:[%s2924] sm:$0xff]
  %v2926 = vld [vmem:[%s2924 + $0x8] sm:$0xff]
  %v2927 = vlaneseq
  %v2928 = vshrl.u32 %v2927, 7
  %v2929 = vsub.s32 5, %v2928
  %v2930 = vrot.slane %v2806, %v2929
  %v2931 = vmul.f32 %v2925, %v2930
  %v2932 = vmul.f32 %v2926, %v2930
  %v2933 = vadd.f32 %v2922, %v2931
  %v2934 = vadd.f32 %v2923, %v2932
  %s2935 = scalar_lea.vmem %s4, 96
  %v2936 = vld [vmem:[%s2935] sm:$0xff]
  %v2937 = vld [vmem:[%s2935 + $0x8] sm:$0xff]
  %v2938 = vlaneseq
  %v2939 = vshrl.u32 %v2938, 7
  %v2940 = vsub.s32 6, %v2939
  %v2941 = vrot.slane %v2806, %v2940
  %v2942 = vmul.f32 %v2936, %v2941
  %v2943 = vmul.f32 %v2937, %v2941
  %v2944 = vadd.f32 %v2933, %v2942
  %v2945 = vadd.f32 %v2934, %v2943
  %s2946 = scalar_lea.vmem %s4, 112
  %v2947 = vld [vmem:[%s2946] sm:$0xff]
  %v2948 = vld [vmem:[%s2946 + $0x8] sm:$0xff]
  %v2949 = vlaneseq
  %v2950 = vshrl.u32 %v2949, 7
  %v2951 = vsub.s32 7, %v2950
  %v2952 = vrot.slane %v2806, %v2951
  %v2953 = vmul.f32 %v2947, %v2952
  %v2954 = vmul.f32 %v2948, %v2952
  %v2955 = vadd.f32 %v2944, %v2953
  %v2956 = vadd.f32 %v2945, %v2954
  %s2957 = scalar_lea.vmem %s4, 128
  %v2958 = vld [vmem:[%s2957] sm:$0xff]
  %v2959 = vld [vmem:[%s2957 + $0x8] sm:$0xff]
  %v2960 = vlaneseq
  %v2961 = vshrl.u32 %v2960, 7
  %v2962 = vsub.s32 0, %v2961
  %v2963 = vrot.slane %v2807, %v2962
  %v2964 = vmul.f32 %v2958, %v2963
  %v2965 = vmul.f32 %v2959, %v2963
  %v2966 = vadd.f32 %v2955, %v2964
  %v2967 = vadd.f32 %v2956, %v2965
  %s2968 = scalar_lea.vmem %s4, 144
  %v2969 = vld [vmem:[%s2968] sm:$0xff]
  %v2970 = vld [vmem:[%s2968 + $0x8] sm:$0xff]
  %v2971 = vlaneseq
  %v2972 = vshrl.u32 %v2971, 7
  %v2973 = vsub.s32 1, %v2972
  %v2974 = vrot.slane %v2807, %v2973
  %v2975 = vmul.f32 %v2969, %v2974
  %v2976 = vmul.f32 %v2970, %v2974
  %v2977 = vadd.f32 %v2966, %v2975
  %v2978 = vadd.f32 %v2967, %v2976
  %s2979 = scalar_lea.vmem %s4, 160
  %v2980 = vld [vmem:[%s2979] sm:$0xff]
  %v2981 = vld [vmem:[%s2979 + $0x8] sm:$0xff]
  %v2982 = vlaneseq
  %v2983 = vshrl.u32 %v2982, 7
  %v2984 = vsub.s32 2, %v2983
  %v2985 = vrot.slane %v2807, %v2984
  %v2986 = vmul.f32 %v2980, %v2985
  %v2987 = vmul.f32 %v2981, %v2985
  %v2988 = vadd.f32 %v2977, %v2986
  %v2989 = vadd.f32 %v2978, %v2987
  %s2990 = scalar_lea.vmem %s4, 176
  %v2991 = vld [vmem:[%s2990] sm:$0xff]
  %v2992 = vld [vmem:[%s2990 + $0x8] sm:$0xff]
  %v2993 = vlaneseq
  %v2994 = vshrl.u32 %v2993, 7
  %v2995 = vsub.s32 3, %v2994
  %v2996 = vrot.slane %v2807, %v2995
  %v2997 = vmul.f32 %v2991, %v2996
  %v2998 = vmul.f32 %v2992, %v2996
  %v2999 = vadd.f32 %v2988, %v2997
  %v3000 = vadd.f32 %v2989, %v2998
  %s3001 = scalar_lea.vmem %s4, 192
  %v3002 = vld [vmem:[%s3001] sm:$0xff]
  %v3003 = vld [vmem:[%s3001 + $0x8] sm:$0xff]
  %v3004 = vlaneseq
  %v3005 = vshrl.u32 %v3004, 7
  %v3006 = vsub.s32 4, %v3005
  %v3007 = vrot.slane %v2807, %v3006
  %v3008 = vmul.f32 %v3002, %v3007
  %v3009 = vmul.f32 %v3003, %v3007
  %v3010 = vadd.f32 %v2999, %v3008
  %v3011 = vadd.f32 %v3000, %v3009
  %s3012 = scalar_lea.vmem %s4, 208
  %v3013 = vld [vmem:[%s3012] sm:$0xff]
  %v3014 = vld [vmem:[%s3012 + $0x8] sm:$0xff]
  %v3015 = vlaneseq
  %v3016 = vshrl.u32 %v3015, 7
  %v3017 = vsub.s32 5, %v3016
  %v3018 = vrot.slane %v2807, %v3017
  %v3019 = vmul.f32 %v3013, %v3018
  %v3020 = vmul.f32 %v3014, %v3018
  %v3021 = vadd.f32 %v3010, %v3019
  %v3022 = vadd.f32 %v3011, %v3020
  %s3023 = scalar_lea.vmem %s4, 224
  %v3024 = vld [vmem:[%s3023] sm:$0xff]
  %v3025 = vld [vmem:[%s3023 + $0x8] sm:$0xff]
  %v3026 = vlaneseq
  %v3027 = vshrl.u32 %v3026, 7
  %v3028 = vsub.s32 6, %v3027
  %v3029 = vrot.slane %v2807, %v3028
  %v3030 = vmul.f32 %v3024, %v3029
  %v3031 = vmul.f32 %v3025, %v3029
  %v3032 = vadd.f32 %v3021, %v3030
  %v3033 = vadd.f32 %v3022, %v3031
  %s3034 = scalar_lea.vmem %s4, 240
  %v3035 = vld [vmem:[%s3034] sm:$0xff]
  %v3036 = vld [vmem:[%s3034 + $0x8] sm:$0xff]
  %v3037 = vlaneseq
  %v3038 = vshrl.u32 %v3037, 7
  %v3039 = vsub.s32 7, %v3038
  %v3040 = vrot.slane %v2807, %v3039
  %v3041 = vmul.f32 %v3035, %v3040
  %v3042 = vmul.f32 %v3036, %v3040
  %v3043 = vadd.f32 %v3032, %v3041
  %v3044 = vadd.f32 %v3033, %v3042
  %v3045 = vld [vmem:[%s3] sm:$0xff]
  %v3046 = vld [vmem:[%s3 + $0x8] sm:$0xff]
  %3048 = vset.pattern.permute.xlu0 8
  %3049 = vperm.xlu0 %3048, %v3045
  %v3050 = vpop.permute.xlu0 %3049
  %3053 = vset.pattern.permute.xlu0 8
  %3054 = vperm.xlu0 %3053, %v3046
  %v3055 = vpop.permute.xlu0 %3054
  %3057 = vmatprep.subr.mxu0 0.0
  %3058 = vmatpush1.xpose.msra.mxu0 %v20
  %3059 = vmatprep.subr.mxu0 0.0
  %3060 = vmatpush1.xpose.msra.mxu0 0.0
  %3061 = vmatprep.subr.mxu0 0.0
  %3062 = vmatpush1.xpose.msra.mxu0 0.0
  %3063 = vmatprep.subr.mxu0 0.0
  %3064 = vmatpush1.xpose.msra.mxu0 0.0
  %3065 = vmatprep.subr.mxu0 0.0
  %3066 = vmatpush1.xpose.msra.mxu0 0.0
  %3067 = vmatprep.subr.mxu0 0.0
  %3068 = vmatpush1.xpose.msra.mxu0 0.0
  %3069 = vmatprep.subr.mxu0 0.0
  %3070 = vmatpush1.xpose.msra.mxu0 0.0
  %3071 = vmatprep.subr.mxu0 0.0
  %3072 = vmatpush1.xpose.msra.mxu0 0.0
  %3073 = vmatprep.subr.mxu0 0.0
  %3074 = vmatpush1.xpose.msra.mxu0 0.0
  %3075 = vmatprep.subr.mxu0 0.0
  %3076 = vmatpush1.xpose.msra.mxu0 0.0
  %3077 = vmatprep.subr.mxu0 0.0
  %3078 = vmatpush1.xpose.msra.mxu0 0.0
  %3079 = vmatprep.subr.mxu0 0.0
  %3080 = vmatpush1.xpose.msra.mxu0 0.0
  %3081 = vmatprep.subr.mxu0 0.0
  %3082 = vmatpush1.xpose.msra.mxu0 0.0
  %3083 = vmatprep.subr.mxu0 0.0
  %3084 = vmatpush1.xpose.msra.mxu0 0.0
  %3085 = vmatprep.subr.mxu0 0.0
  %3086 = vmatpush1.xpose.msra.mxu0 0.0
  %3087 = vmatprep.subr.mxu0 0.0
  %3088 = vmatpush1.xpose.msra.mxu0 0.0
  %3089 = vmatprep.subr.mxu0 0.0
  %3090 = vmatpush1.xpose.msra.mxu0 0.0
  %3091 = vmatprep.subr.mxu0 0.0
  %3092 = vmatpush1.xpose.msra.mxu0 0.0
  %3093 = vmatprep.subr.mxu0 0.0
  %3094 = vmatpush1.xpose.msra.mxu0 0.0
  %3095 = vmatprep.subr.mxu0 0.0
  %3096 = vmatpush1.xpose.msra.mxu0 0.0
  %3097 = vmatprep.subr.mxu0 0.0
  %3098 = vmatpush1.xpose.msra.mxu0 0.0
  %3099 = vmatprep.subr.mxu0 0.0
  %3100 = vmatpush1.xpose.msra.mxu0 0.0
  %3101 = vmatprep.subr.mxu0 0.0
  %3102 = vmatpush1.xpose.msra.mxu0 0.0
  %3103 = vmatprep.subr.mxu0 0.0
  %3104 = vmatpush1.xpose.msra.mxu0 0.0
  %3105 = vmatprep.subr.mxu0 0.0
  %3106 = vmatpush1.xpose.msra.mxu0 0.0
  %3107 = vmatprep.subr.mxu0 0.0
  %3108 = vmatpush1.xpose.msra.mxu0 0.0
  %3109 = vmatprep.subr.mxu0 0.0
  %3110 = vmatpush1.xpose.msra.mxu0 0.0
  %3111 = vmatprep.subr.mxu0 0.0
  %3112 = vmatpush1.xpose.msra.mxu0 0.0
  %3113 = vmatprep.subr.mxu0 0.0
  %3114 = vmatpush1.xpose.msra.mxu0 0.0
  %3115 = vmatprep.subr.mxu0 0.0
  %3116 = vmatpush1.xpose.msra.mxu0 0.0
  %3117 = vmatprep.subr.mxu0 0.0
  %3118 = vmatpush1.xpose.msra.mxu0 0.0
  %3119 = vmatprep.subr.mxu0 0.0
  %3120 = vmatpush1.xpose.msra.mxu0 0.0
  %3121 = vmatprep.mubr.f32.mxu0 0.0
  %3122 = vmatmul.mubr.f32.gmra.mrb[0].mxu0 %v3043
  %v3123 = vpop.f32.mrb[0].mxu0
  %v3124 = vadd.f32 %v3050, %v3123
  %v3125 = vpop.f32.mrb[0].mxu0
  %3126 = vmatprep.mubr.f32.mxu0 0.0
  %3127 = vmatmul.mubr.f32.gmra.mrb[0].mxu0 %v3044
  %v3128 = vpop.f32.mrb[0].mxu0
  %v3129 = vadd.f32 %v3055, %v3128
  %v3130 = vpop.f32.mrb[0].mxu0
  %3131 = vdwg.mxu0
  %v3132 = vmax.f32 %v3124, 0.0
  %v3133 = vmax.f32 %v3129, 0.0
  %vm3134 = vcmask 15360
  %v3135 = vsel %vm3134, %v3132, 0.0
  %3136 = vadd.xlane.f32.xlu0 %v3135
  %v3137 = vpop.xlane.xlu0 %3136
  %v3138 = vsel %vm3134, %v3133, 0.0
  %3139 = vadd.xlane.f32.xlu0 %v3138
  %v3140 = vpop.xlane.xlu0 %3139
  %v3141 = vmul.f32 %v3137, 0.5
  %v3142 = vmul.f32 %v3140, 0.5
  %v3143 = vsub.f32 %v3132, %v3141
  %v3144 = vsub.f32 %v3133, %v3142
  %v3145 = vmul.f32 %v3143, %v3143
  %v3146 = vmul.f32 %v3144, %v3144
  %v3147 = vsel %vm3134, %v3145, 0.0
  %3148 = vadd.xlane.f32.xlu0 %v3147
  %v3149 = vpop.xlane.xlu0 %3148
  %v3150 = vsel %vm3134, %v3146, 0.0
  %3151 = vadd.xlane.f32.xlu0 %v3150
  %v3152 = vpop.xlane.xlu0 %3151
  %v3153 = vmul.f32 %v3149, 0.5
  %v3154 = vmul.f32 %v3152, 0.5
  %v3155 = vadd.f32 %v3153, 1e-05
  %v3156 = vadd.f32 %v3154, 1e-05
  %v3157 = vrsqrt.pop %v3155
  %v3158 = vrsqrt.pop %v3156
  %v3159 = vmul.f32 %v3045, %v3157
  %v3160 = vmul.f32 %v3046, %v3158
  %3162 = vset.pattern.permute.xlu0 9
  %3163 = vperm.xlu0 %3162, %v3159
  %v3164 = vpop.permute.xlu0 %3163
  %3167 = vset.pattern.permute.xlu0 9
  %3168 = vperm.xlu0 %3167, %v3160
  %v3169 = vpop.permute.xlu0 %3168
  %v3171 = vmul.f32 %v3143, %v3164
  %v3172 = vmul.f32 %v3144, %v3169
  %3173 = vset.pattern.permute.xlu0 10
  %3174 = vperm.xlu0 %3173, %v3045
  %v3175 = vpop.permute.xlu0 %3174
  %3177 = vset.pattern.permute.xlu0 10
  %3178 = vperm.xlu0 %3177, %v3046
  %v3179 = vpop.permute.xlu0 %3178
  %v3181 = vadd.f32 %v3171, %v3175
  %v3182 = vadd.f32 %v3172, %v3179
  %v3183 = vld [vmem:[%s2 + $0x90] sm:$0x1f]
  %v3184 = vld [vmem:[%s3] sm:$0x1f]
  %3186 = vset.pattern.permute.xlu0 11
  %3187 = vperm.xlu0 %3186, %v3184
  %v3188 = vpop.permute.xlu0 %3187
  %v3191 = vsel %vm944, %v3183, 0
  %3193 = vmatprep.subr.mxu0 0.0
  %3194 = vmatpush1.msra.mxu0 %v3181
  %3195 = vmatprep.subr.mxu0 0.0
  %3196 = vmatpush1.msra.mxu0 %v3182
  %3197 = vmatprep.subr.mxu0 0.0
  %3198 = vmatpush1.msra.mxu0 0.0
  %3199 = vmatprep.subr.mxu0 0.0
  %3200 = vmatpush1.msra.mxu0 0.0
  %3201 = vmatprep.subr.mxu0 0.0
  %3202 = vmatpush1.msra.mxu0 0.0
  %3203 = vmatprep.subr.mxu0 0.0
  %3204 = vmatpush1.msra.mxu0 0.0
  %3205 = vmatprep.subr.mxu0 0.0
  %3206 = vmatpush1.msra.mxu0 0.0
  %3207 = vmatprep.subr.mxu0 0.0
  %3208 = vmatpush1.msra.mxu0 0.0
  %3209 = vmatprep.subr.mxu0 0.0
  %3210 = vmatpush1.msra.mxu0 0.0
  %3211 = vmatprep.subr.mxu0 0.0
  %3212 = vmatpush1.msra.mxu0 0.0
  %3213 = vmatprep.subr.mxu0 0.0
  %3214 = vmatpush1.msra.mxu0 0.0
  %3215 = vmatprep.subr.mxu0 0.0
  %3216 = vmatpush1.msra.mxu0 0.0
  %3217 = vmatprep.subr.mxu0 0.0
  %3218 = vmatpush1.msra.mxu0 0.0
  %3219 = vmatprep.subr.mxu0 0.0
  %3220 = vmatpush1.msra.mxu0 0.0
  %3221 = vmatprep.subr.mxu0 0.0
  %3222 = vmatpush1.msra.mxu0 0.0
  %3223 = vmatprep.subr.mxu0 0.0
  %3224 = vmatpush1.msra.mxu0 0.0
  %3225 = vmatprep.subr.mxu0 0.0
  %3226 = vmatpush1.msra.mxu0 0.0
  %3227 = vmatprep.subr.mxu0 0.0
  %3228 = vmatpush1.msra.mxu0 0.0
  %3229 = vmatprep.subr.mxu0 0.0
  %3230 = vmatpush1.msra.mxu0 0.0
  %3231 = vmatprep.subr.mxu0 0.0
  %3232 = vmatpush1.msra.mxu0 0.0
  %3233 = vmatprep.subr.mxu0 0.0
  %3234 = vmatpush1.msra.mxu0 0.0
  %3235 = vmatprep.subr.mxu0 0.0
  %3236 = vmatpush1.msra.mxu0 0.0
  %3237 = vmatprep.subr.mxu0 0.0
  %3238 = vmatpush1.msra.mxu0 0.0
  %3239 = vmatprep.subr.mxu0 0.0
  %3240 = vmatpush1.msra.mxu0 0.0
  %3241 = vmatprep.subr.mxu0 0.0
  %3242 = vmatpush1.msra.mxu0 0.0
  %3243 = vmatprep.subr.mxu0 0.0
  %3244 = vmatpush1.msra.mxu0 0.0
  %3245 = vmatprep.subr.mxu0 0.0
  %3246 = vmatpush1.msra.mxu0 0.0
  %3247 = vmatprep.subr.mxu0 0.0
  %3248 = vmatpush1.msra.mxu0 0.0
  %3249 = vmatprep.subr.mxu0 0.0
  %3250 = vmatpush1.msra.mxu0 0.0
  %3251 = vmatprep.subr.mxu0 0.0
  %3252 = vmatpush1.msra.mxu0 0.0
  %3253 = vmatprep.subr.mxu0 0.0
  %3254 = vmatpush1.msra.mxu0 0.0
  %3255 = vmatprep.subr.mxu0 0.0
  %3256 = vmatpush1.msra.mxu0 0.0
  %3257 = vmatprep.mubr.f32.mxu0 0.0
  %3258 = vmatmul.mubr.f32.gmra.mrb[0].mxu0 %v3191
  %v3259 = vpop.f32.mrb[0].mxu0
  %v3260 = vadd.f32 %v3188, %v3259
  %v3261 = vpop.f32.mrb[0].mxu0
  %3262 = vdwg.mxu0
  %vm3263 = vcmask 12288
  %v3264 = vsel %vm3263, %v3260, -inf
  %v3265 = vrot.slane %v3264, 4
  %v3266 = vmax.f32 %v3264, %v3265
  %v3267 = vrot.slane %v3266, 2
  %v3268 = vmax.f32 %v3266, %v3267
  %v3269 = vrot.slane %v3268, 1
  %v3270 = vmax.f32 %v3268, %v3269
  %v3271 = vsub.f32 %v3260, %v3270
  %v3272 = vmul.f32 %v3271, 1.442695
  %v3273 = vpow.pop %v3272
  %v3274 = vsel %vm3263, %v3273, 0.0
  %v3275 = vrot.slane %v3274, 4
  %v3276 = vadd.f32 %v3274, %v3275
  %v3277 = vrot.slane %v3276, 2
  %v3278 = vadd.f32 %v3276, %v3277
  %v3279 = vrot.slane %v3278, 1
  %v3280 = vadd.f32 %v3278, %v3279
  %v3281 = vlog2.pop %v3280
  %v3282 = vmul.f32 %v3281, 0.6931472
  %v3283 = vsub.f32 %v3271, %v3282
  %3284 = vst.msk [vmem:[%s5 + $0x8] sm:$0x1f] %vm3263, %v3283
  // Predicated region
  $region22: #{forward.1} parent=0 // pred_check
    _
  $region23: #{forward.1} parent=0 // pred_check_branch
    %3286 = sbr.rel (0) target = $region25
  $region24: #{forward.1} parent=0 // pred_region
    _
  $region25: #{forward.1} parent=0 // pred_fallthru
    _
  // Predicated region
  $region26: #{forward.1} parent=0 // pred_check
    _
  $region27: #{forward.1} parent=0 // pred_check_branch
    %3288 = sbr.rel (0) target = $region29
  $region28: #{forward.1} parent=0 // pred_region
    _
  $region29: #{forward.1} parent=0 // pred_fallthru
    _

</llo_original>
